<compile_context>
chip_gen: v7x
topology: tpu7x:2x2x1
jax: 0.10.0
libtpu: 0.0.40
codegen_flags: <defaults>
</compile_context>

<pallas_src>
import jax
import jax.numpy as jnp
from jax.experimental import pallas as pl
from jax.experimental.pallas import tpu as pltpu


_SQRT_2_OVER_PI = 0.7978845608028654
_XW = 128          # lane-padded width of the prediction half of the fused output


def _round_up(x, m):
    return ((x + m - 1) // m) * m


# ---------------------------------------------------------------------------
# Weight packing: many small arrays -> a few lane-dense slabs + static layouts
# ---------------------------------------------------------------------------
class _SlabPacker:
    """Packs small weight arrays into one lane-dense 2-D slab.

    Row offsets are static python ints so the kernel can take zero-cost static
    slices `slab_ref[off:off+rows, :cols]`.
    """

    def __init__(self, row_align):
        self._row_align = row_align
        self._items = []

    def add(self, name, w):
        self._items.append((name, jnp.asarray(w, jnp.float32)))

    def finalize(self, dtype):
        lanes = max(_round_up(w.shape[1], 128) for _, w in self._items)
        pieces, layout, off = [], {}, 0
        for name, w in self._items:
            r, c = w.shape
            pieces.append(jnp.pad(w, ((0, 0), (0, lanes - c))))
            layout[name] = (off, r, c)
            pad_r = (-r) % self._row_align
            if pad_r:
                pieces.append(jnp.zeros((pad_r, lanes), jnp.float32))
            off += r + pad_r
        tail = (-off) % 8
        if tail:
            pieces.append(jnp.zeros((tail, lanes), jnp.float32))
        return jnp.concatenate(pieces, axis=0).astype(dtype), layout


def pack_kernel_params(params):
    """Collapse all model weights into 3 slabs:
         matA (bf16, 128 lanes) : every matmul weight of width <= 128
         matB (bf16, 256 lanes) : the 200-wide (padded to 256) Mlp1 fc2 matrices
         vecs (f32,  256 lanes) : every (1, X) LayerNorm gain / bias row vector
    """
    H = params["l1"]["block_sc"]["to_q"].shape[1]
    scale = float(H) ** (-0.5)

    A = _SlabPacker(row_align=16)    # bf16: align rows to the (16, 128) bf16 tile
    B = _SlabPacker(row_align=16)
    Vv = _SlabPacker(row_align=1)

    for L in ("l1", "l2"):
        lp = params[L]
        Vv.add(L + ".norm_s_g", lp["norm_s_g"]); Vv.add(L + ".norm_s_b", lp["norm_s_b"])
        Vv.add(L + ".norm_c_g", lp["norm_c_g"]); Vv.add(L + ".norm_c_b", lp["norm_c_b"])
        sc, cs = lp["block_sc"], lp["block_cs"]
        # Fused Q/K/V weights of BOTH cross-attention blocks of this layer.
        # Column order [v_sc | v_cs | q_sc | k_sc | q_cs | k_cs] puts the two wide
        # C-lane value slices at lane offsets 0 and C.  Attention scale folded into Wq.
        A.add(L + ".wqkv", jnp.concatenate(
            [sc["to_v"], cs["to_v"],
             sc["to_q"] * scale, sc["to_k"],
             cs["to_q"] * scale, cs["to_k"]], axis=1))
        for tag, bp in (("sc", sc), ("cs", cs)):
            p = f"{L}.{tag}"
            Vv.add(p + ".norm_g", bp["norm_g"]); Vv.add(p + ".norm_b", bp["norm_b"])
            A.add(p + ".fc1_w", bp["fc1_w"]);    Vv.add(p + ".fc1_b", bp["fc1_b"])
            A.add(p + ".fc2_w", bp["fc2_w"]);    Vv.add(p + ".fc2_b", bp["fc2_b"])

    for key in ("l3", "l4", "predict"):
        mp = params[key]
        # Zero-pad the 200-wide hidden to 256 lanes (exact: zero activations meet
        # zero w3 rows).
        hid = mp["w2"].shape[1]
        hid_p = _round_up(hid, 128)
        w2 = jnp.pad(mp["w2"], ((0, 0), (0, hid_p - hid)))
        b2 = jnp.pad(mp["b2"], ((0, 0), (0, hid_p - hid)))
        w3 = jnp.pad(mp["w3"], ((0, hid_p - hid), (0, 0)))
        b3 = mp["b3"]
        if key == "predict":
            nt = w3.shape[1]
            w3 = jnp.pad(w3, ((0, 0), (0, _XW - nt)))     # pad n_target -> 128 lanes
            b3 = jnp.pad(b3, ((0, 0), (0, _XW - nt)))
        A.add(key + ".w1", mp["w1"]); Vv.add(key + ".b1", mp["b1"])
        B.add(key + ".w2", w2);       Vv.add(key + ".b2", b2)
        A.add(key + ".w3", w3);       Vv.add(key + ".b3", b3)

    matA, layA = A.finalize(jnp.bfloat16)
    matB, layB = B.finalize(jnp.bfloat16)
    vecs, layV = Vv.finalize(jnp.float32)
    return (matA, matB, vecs), (layA, layB, layV)


# ---------------------------------------------------------------------------
# Fused forward kernel: one grid step = NB batch elements, full forward pass.
# ---------------------------------------------------------------------------
def _make_kernel(*, NB, V, C, H, feat_dim, layA, layB, layV):
    R = NB * V           # rows per stream after folding NB into the token axis
    bf16 = jnp.bfloat16

    def kernel(sag_ref, cor_ref, mA_ref, mB_ref, vec_ref, out_ref):
        # ---- zero-cost static views into the packed slabs -------------------
        def matA(name):
            o, r, c = layA[name]
            return mA_ref[o:o + r, :c]

        def matB(name):
            o, r, c = layB[name]
            return mB_ref[o:o + r, :c]

        def vec(name):
            o, _, c = layV[name]
            return vec_ref[o:o + 1, :c]

        # bf16 operands, f32 accumulation (MXU-native on v6e/v7x, fine on v5e).
        def dotA(x, name):
            return jnp.dot(x.astype(bf16), matA(name),
                           preferred_element_type=jnp.float32)

        def dotB(x, name):
            return jnp.dot(x.astype(bf16), matB(name),
                           preferred_element_type=jnp.float32)

        def layernorm(x, p):
            m = jnp.mean(x, axis=-1, keepdims=True)
            xc = x - m
            var = jnp.mean(xc * xc, axis=-1, keepdims=True)
            return xc * jax.lax.rsqrt(var + 1e-5) * vec(p + "_g") + vec(p + "_b")

        def gelu(x):  # tanh approximation (EUP); well within the 1e-2 tolerance
            return 0.5 * x * (1.0 + jnp.tanh(_SQRT_2_OVER_PI *
                                             (x + 0.044715 * x * x * x)))

        def attn_mlp_block(x, q2, k2, v2, p):
            # Cross-attention (scale pre-folded into Wq) + residual + LN + MLP + residual.
            # The (V, V) attention is per batch element: tiny batched f32 matmuls.
            q = q2.reshape(NB, V, H)
            k = k2.reshape(NB, V, H)
            v = v2.reshape(NB, V, C)
            logits = jax.lax.dot_general(q, k, (((2,), (2,)), ((0,), (0,))),
                                         preferred_element_type=jnp.float32)
            logits = logits - jnp.max(logits, axis=-1, keepdims=True)
            e = jnp.exp(logits)
            attn = e * pl.reciprocal(jnp.sum(e, axis=-1, keepdims=True), approx=True)
            av = jax.lax.dot_general(attn, v, (((2,), (1,)), ((0,), (0,))),
                                     preferred_element_type=jnp.float32)
            x1 = x + av.reshape(R, C)                       # residual 1
            xn = layernorm(x1, p + ".norm")
            h = gelu(dotA(xn, p + ".fc1_w") + vec(p + ".fc1_b"))
            return x1 + dotA(h, p + ".fc2_w") + vec(p + ".fc2_b")   # residual 2

        def mlp1(x, p):
            # PyTorch Mlp1.forward never applies self.act — pure chain of 3 linears.
            h1 = dotA(x, p + ".w1") + vec(p + ".b1")
            h2 = dotB(h1, p + ".w2") + vec(p + ".b2")
            return dotA(h2, p + ".w3") + vec(p + ".b3")

        s = sag_ref[...].reshape(R, C)
        c = cor_ref[...].reshape(R, C)

        # -------------------- two Layers (unrolled at trace time) ------------
        for L in ("l1", "l2"):
            s_n = layernorm(s, L + ".norm_s")
            c_n = layernorm(c, L + ".norm_c")
            # One MXU matmul produces q/k/v for both blocks of the layer.
            xy = jnp.concatenate([s_n, c_n], axis=0)        # (2R, C)
            proj = dotA(xy, L + ".wqkv")                    # (2R, 2C + 4H) f32
            q0 = 2 * C
            k0 = q0 + H
            q1 = k0 + H
            k1 = q1 + H
            s = attn_mlp_block(s_n,
                               proj[:R, q0:q0 + H],         # q = s_n @ Wq_sc
                               proj[R:, k0:k0 + H],         # k = c_n @ Wk_sc
                               proj[R:, 0:C],               # v = c_n @ Wv_sc
                               L + ".sc")
            c = attn_mlp_block(c_n,
                               proj[R:, q1:q1 + H],         # q = c_n @ Wq_cs
                               proj[:R, k1:k1 + H],         # k = s_n @ Wk_cs
                               proj[:R, C:2 * C],           # v = s_n @ Wv_cs
                               L + ".cs")

        # ------------------- token-wise Mlp1 chains (l3 / l4) ----------------
        s128 = mlp1(s, "l3")                                 # (R, feat_dim)
        c128 = mlp1(c, "l4")

        # ------------------- head: token mean + predict Mlp1 -----------------
        feat = (jnp.mean(s128.reshape(NB, V, feat_dim), axis=1)
                + jnp.mean(c128.reshape(NB, V, feat_dim), axis=1))   # (NB, feat_dim)
        xpred = mlp1(feat, "predict")                        # (NB, 128); cols>=n_target are 0

        # Single lane-dense fused output: [ feat | x ].
        out_ref[:, 0:feat_dim] = feat
        out_ref[:, feat_dim:feat_dim + _XW] = xpred

    return kernel


# ---------------------------------------------------------------------------
# Wrapper — a single pallas_call for the whole model
# ---------------------------------------------------------------------------
def _model_forward(params, sagittal, coronal):
    N, V, C = sagittal.shape
    H = params["l1"]["block_sc"]["to_q"].shape[1]
    feat_dim = params["l3"]["w3"].shape[1]
    n_target = params["predict"]["w3"].shape[1]
    assert n_target <= _XW and feat_dim % 128 == 0

    (matA, matB, vecs), (layA, layB, layV) = pack_kernel_params(params)

    # Grid: >= 2 evenly-split steps keep both v7x TensorCores busy; NB batch elements
    # per step fill the MXU row dimension and amortize the per-step prologue on
    # v5e/v6e.  NB is capped so per-step activations stay comfortably in VMEM.
    NB_MAX = 64
    steps = 2 if N >= 2 else 1
    steps = max(steps, -(-N // NB_MAX))
    NB = -(-N // steps)
    steps = -(-N // NB)
    Np = steps * NB
    if Np != N:
        pad = ((0, Np - N), (0, 0), (0, 0))
        sagittal = jnp.pad(sagittal, pad)
        coronal = jnp.pad(coronal, pad)

    out_lanes = feat_dim + _XW
    kernel = _make_kernel(NB=NB, V=V, C=C, H=H, feat_dim=feat_dim,
                          layA=layA, layB=layB, layV=layV)

    out = pl.pallas_call(
        kernel,
        grid=(steps,),
        in_specs=[
            pl.BlockSpec((NB, V, C), lambda n: (n, 0, 0)),   # sagittal
            pl.BlockSpec((NB, V, C), lambda n: (n, 0, 0)),   # coronal
            pl.BlockSpec(matA.shape, lambda n: (0, 0)),      # bf16 matrix slab (128 lanes)
            pl.BlockSpec(matB.shape, lambda n: (0, 0)),      # bf16 matrix slab (256 lanes)
            pl.BlockSpec(vecs.shape, lambda n: (0, 0)),      # f32 vector slab
        ],
        out_specs=pl.BlockSpec((None, NB, out_lanes), lambda n: (n, 0, 0)),
        out_shape=jax.ShapeDtypeStruct((steps, NB, out_lanes), jnp.float32),
        compiler_params=pltpu.CompilerParams(dimension_semantics=("parallel",)),
    )(sagittal, coronal, matA, matB, vecs)

    flat = out.reshape(Np, out_lanes)[:N]
    feat = flat[:, :feat_dim]
    x = flat[:, feat_dim:feat_dim + n_target]
    return x, feat


model_forward = jax.jit(_model_forward)


# ---------------------------------------------------------------------------
# Deterministic parameter init (mirrors the PyTorch init shapes)
# ---------------------------------------------------------------------------
def _trunc_normal(key, shape, std=0.01):
    return std * jax.random.truncated_normal(key, -2.0, 2.0, shape, jnp.float32)


def _xavier_uniform(key, shape):
    fan_in, fan_out = shape
    limit = (6.0 / (fan_in + fan_out)) ** 0.5
    return jax.random.uniform(key, shape, jnp.float32, -limit, limit)


def init_block_params(key, C):
    H = C // 4
    Cm = int(C * 2.0)
    ks = jax.random.split(key, 5)
    return dict(
        to_q=_xavier_uniform(ks[0], (C, H)),
        to_k=_xavier_uniform(ks[1], (C, H)),
        to_v=_xavier_uniform(ks[2], (C, C)),
        norm_g=jnp.ones((1, C), jnp.float32),
        norm_b=jnp.zeros((1, C), jnp.float32),
        fc1_w=_trunc_normal(ks[3], (C, Cm)),
        fc1_b=jnp.zeros((1, Cm), jnp.float32),
        fc2_w=_trunc_normal(ks[4], (Cm, C)),
        fc2_b=jnp.zeros((1, C), jnp.float32),
    )


def init_layer_params(key, C):
    k1, k2 = jax.random.split(key, 2)
    return dict(
        norm_s_g=jnp.ones((1, C), jnp.float32), norm_s_b=jnp.zeros((1, C), jnp.float32),
        norm_c_g=jnp.ones((1, C), jnp.float32), norm_c_b=jnp.zeros((1, C), jnp.float32),
        block_sc=init_block_params(k1, C),
        block_cs=init_block_params(k2, C),
    )


def init_mlp1_params(key, in_features, n_target):
    ks = jax.random.split(key, 3)
    h = in_features // 2
    return dict(
        w1=_trunc_normal(ks[0], (in_features, h)), b1=jnp.zeros((1, h), jnp.float32),
        w2=_trunc_normal(ks[1], (h, 200)),         b2=jnp.zeros((1, 200), jnp.float32),
        w3=_trunc_normal(ks[2], (200, n_target)),  b3=jnp.zeros((1, n_target), jnp.float32),
    )


def init_model_params(key, in_channels, n_target=2):
    ks = jax.random.split(key, 5)
    return dict(
        l1=init_layer_params(ks[0], in_channels),
        l2=init_layer_params(ks[1], in_channels),
        l3=init_mlp1_params(ks[2], in_channels, 128),
        l4=init_mlp1_params(ks[3], in_channels, 128),
        predict=init_mlp1_params(ks[4], 128, n_target),
    )


# ---------------------------------------------------------------------------
# Pure-JAX reference (exact-erf GELU, exact reciprocal, f32) for the check
# ---------------------------------------------------------------------------
def ref_forward(params, sagittal, coronal):
    def ln(x, g, b):
        m = x.mean(-1, keepdims=True)
        v = ((x - m) ** 2).mean(-1, keepdims=True)
        return (x - m) / jnp.sqrt(v + 1e-5) * g + b

    def gelu(x):
        return 0.5 * x * (1.0 + jax.scipy.special.erf(x / jnp.sqrt(2.0)))

    def block(x, y, bp):
        H = bp['to_q'].shape[1]
        q = x @ bp['to_q']; k = y @ bp['to_k']; v = y @ bp['to_v']
        logits = jnp.einsum('nqc,nkc->nqk', q, k) * (H ** -0.5)
        attn = jax.nn.softmax(logits, axis=-1)
        x = x + jnp.einsum('nqk,nkc->nqc', attn, v)
        xn = ln(x, bp['norm_g'], bp['norm_b'])
        h = gelu(xn @ bp['fc1_w'] + bp['fc1_b'])
        return x + h @ bp['fc2_w'] + bp['fc2_b']

    def layer(s, c, lp):
        s_n = ln(s, lp['norm_s_g'], lp['norm_s_b'])
        c_n = ln(c, lp['norm_c_g'], lp['norm_c_b'])
        return block(s_n, c_n, lp['block_sc']), block(c_n, s_n, lp['block_cs'])

    def mlp1(x, p):
        h = x @ p['w1'] + p['b1']
        h = h @ p['w2'] + p['b2']
        return h @ p['w3'] + p['b3']

    s, c = layer(sagittal, coronal, params['l1'])
    s, c = layer(s, c, params['l2'])
    s = mlp1(s, params['l3'])
    c = mlp1(c, params['l4'])
    feat = s.mean(1) + c.mean(1)
    return mlp1(feat, params['predict']), feat


# ---------------------------------------------------------------------------
if __name__ == "__main__":
    N, V, C = 2, 8, 32          # batch, tokens, in_channels (in_channels % 4 == 0)

    key = jax.random.PRNGKey(0)
    k_param, k_sag, k_cor = jax.random.split(key, 3)
    params = init_model_params(k_param, C, n_target=2)

    sagittal = jax.random.normal(k_sag, (N, V, C), jnp.float32)
    coronal = jax.random.normal(k_cor, (N, V, C), jnp.float32)

    x, feat = model_forward(params, sagittal, coronal)
    x = jax.block_until_ready(x)
    feat = jax.block_until_ready(feat)

    x_ref, feat_ref = ref_forward(params, sagittal, coronal)
    assert x.shape == (N, 2) and feat.shape == (N, 128)
    assert jnp.allclose(x, x_ref, atol=1e-2, rtol=1e-2)
    assert jnp.allclose(feat, feat_ref, atol=1e-2, rtol=1e-2)

    print("KERNEL_OK")
</pallas_src>

<mosaic_0001>
module attributes {stable_mosaic.version = 11 : i64} {
  func.func @kernel(%arg0: i32, %arg1: memref<1x8x32xf32, #tpu.memory_space<vmem>>, %arg2: memref<1x8x32xf32, #tpu.memory_space<vmem>>, %arg3: memref<1408x128xbf16, #tpu.memory_space<vmem>>, %arg4: memref<96x256xbf16, #tpu.memory_space<vmem>>, %arg5: memref<40x256xf32, #tpu.memory_space<vmem>>, %arg6: memref<1x1x256xf32, #tpu.memory_space<vmem>>) attributes {dimension_semantics = [#tpu.dimension_semantics<parallel>], iteration_bounds = array<i64: 2>, scalar_prefetch = 0 : i64, scratch_operands = 0 : i64, tpu.core_type = #tpu.core_type<tc>, window_params = [{transform_indices = @transform_0, window_bounds = array<i64: 1, 8, 32>}, {transform_indices = @transform_1, window_bounds = array<i64: 1, 8, 32>}, {pipeline_mode = #tpu.pipeline_mode<synchronous>, transform_indices = @transform_2, window_bounds = array<i64: 1408, 128>}, {pipeline_mode = #tpu.pipeline_mode<synchronous>, transform_indices = @transform_3, window_bounds = array<i64: 96, 256>}, {pipeline_mode = #tpu.pipeline_mode<synchronous>, transform_indices = @transform_4, window_bounds = array<i64: 40, 256>}, {transform_indices = @transform_5, window_bounds = array<i64: 1, 1, 256>}]} {
    %c0 = arith.constant 0 : index
    %c0_0 = arith.constant 0 : index
    %c0_1 = arith.constant 0 : index
    %0 = vector.load %arg1[%c0, %c0_0, %c0_1] : memref<1x8x32xf32, #tpu.memory_space<vmem>>, vector<1x8x32xf32>
    %1 = vector.shape_cast %0 : vector<1x8x32xf32> to vector<8x32xf32>
    %c0_2 = arith.constant 0 : index
    %c0_3 = arith.constant 0 : index
    %c0_4 = arith.constant 0 : index
    %2 = vector.load %arg2[%c0_2, %c0_3, %c0_4] : memref<1x8x32xf32, #tpu.memory_space<vmem>>, vector<1x8x32xf32>
    %3 = vector.shape_cast %2 : vector<1x8x32xf32> to vector<8x32xf32>
    %cst = arith.constant dense<0.000000e+00> : vector<8xf32>
    %4 = vector.multi_reduction <add>, %1, %cst [1] : vector<8x32xf32> to vector<8xf32>
    %5 = vector.shape_cast %4 : vector<8xf32> to vector<8x1xf32>
    %cst_5 = arith.constant 3.200000e+01 : f32
    %6 = vector.broadcast %cst_5 : f32 to vector<8x1xf32>
    %7 = arith.divf %5, %6 : vector<8x1xf32>
    %8 = vector.broadcast %7 : vector<8x1xf32> to vector<8x32xf32>
    %9 = arith.subf %1, %8 : vector<8x32xf32>
    %10 = arith.mulf %9, %9 : vector<8x32xf32>
    %cst_6 = arith.constant dense<0.000000e+00> : vector<8xf32>
    %11 = vector.multi_reduction <add>, %10, %cst_6 [1] : vector<8x32xf32> to vector<8xf32>
    %12 = vector.shape_cast %11 : vector<8xf32> to vector<8x1xf32>
    %cst_7 = arith.constant 3.200000e+01 : f32
    %13 = vector.broadcast %cst_7 : f32 to vector<8x1xf32>
    %14 = arith.divf %12, %13 : vector<8x1xf32>
    %cst_8 = arith.constant 9.99999974E-6 : f32
    %15 = vector.broadcast %cst_8 : f32 to vector<8x1xf32>
    %16 = arith.addf %14, %15 : vector<8x1xf32>
    %17 = math.rsqrt %16 : vector<8x1xf32>
    %18 = vector.broadcast %17 : vector<8x1xf32> to vector<8x32xf32>
    %19 = arith.mulf %9, %18 : vector<8x32xf32>
    %c0_9 = arith.constant 0 : index
    %c0_10 = arith.constant 0 : index
    %20 = vector.load %arg5[%c0_9, %c0_10] : memref<40x256xf32, #tpu.memory_space<vmem>>, vector<1x32xf32>
    %21 = vector.broadcast %20 : vector<1x32xf32> to vector<8x32xf32>
    %22 = arith.mulf %19, %21 : vector<8x32xf32>
    %c1 = arith.constant 1 : index
    %c0_11 = arith.constant 0 : index
    %23 = vector.load %arg5[%c1, %c0_11] : memref<40x256xf32, #tpu.memory_space<vmem>>, vector<1x32xf32>
    %24 = vector.broadcast %23 : vector<1x32xf32> to vector<8x32xf32>
    %25 = arith.addf %22, %24 : vector<8x32xf32>
    %cst_12 = arith.constant dense<0.000000e+00> : vector<8xf32>
    %26 = vector.multi_reduction <add>, %3, %cst_12 [1] : vector<8x32xf32> to vector<8xf32>
    %27 = vector.shape_cast %26 : vector<8xf32> to vector<8x1xf32>
    %cst_13 = arith.constant 3.200000e+01 : f32
    %28 = vector.broadcast %cst_13 : f32 to vector<8x1xf32>
    %29 = arith.divf %27, %28 : vector<8x1xf32>
    %30 = vector.broadcast %29 : vector<8x1xf32> to vector<8x32xf32>
    %31 = arith.subf %3, %30 : vector<8x32xf32>
    %32 = arith.mulf %31, %31 : vector<8x32xf32>
    %cst_14 = arith.constant dense<0.000000e+00> : vector<8xf32>
    %33 = vector.multi_reduction <add>, %32, %cst_14 [1] : vector<8x32xf32> to vector<8xf32>
    %34 = vector.shape_cast %33 : vector<8xf32> to vector<8x1xf32>
    %cst_15 = arith.constant 3.200000e+01 : f32
    %35 = vector.broadcast %cst_15 : f32 to vector<8x1xf32>
    %36 = arith.divf %34, %35 : vector<8x1xf32>
    %cst_16 = arith.constant 9.99999974E-6 : f32
    %37 = vector.broadcast %cst_16 : f32 to vector<8x1xf32>
    %38 = arith.addf %36, %37 : vector<8x1xf32>
    %39 = math.rsqrt %38 : vector<8x1xf32>
    %40 = vector.broadcast %39 : vector<8x1xf32> to vector<8x32xf32>
    %41 = arith.mulf %31, %40 : vector<8x32xf32>
    %c2 = arith.constant 2 : index
    %c0_17 = arith.constant 0 : index
    %42 = vector.load %arg5[%c2, %c0_17] : memref<40x256xf32, #tpu.memory_space<vmem>>, vector<1x32xf32>
    %43 = vector.broadcast %42 : vector<1x32xf32> to vector<8x32xf32>
    %44 = arith.mulf %41, %43 : vector<8x32xf32>
    %c3 = arith.constant 3 : index
    %c0_18 = arith.constant 0 : index
    %45 = vector.load %arg5[%c3, %c0_18] : memref<40x256xf32, #tpu.memory_space<vmem>>, vector<1x32xf32>
    %46 = vector.broadcast %45 : vector<1x32xf32> to vector<8x32xf32>
    %47 = arith.addf %44, %46 : vector<8x32xf32>
    %48 = tpu.concatenate %25, %47 in 0 : vector<8x32xf32>, vector<8x32xf32> -> vector<16x32xf32>
    %49 = arith.truncf %48 : vector<16x32xf32> to vector<16x32xbf16>
    %c0_19 = arith.constant 0 : index
    %c0_20 = arith.constant 0 : index
    %50 = vector.load %arg3[%c0_19, %c0_20] : memref<1408x128xbf16, #tpu.memory_space<vmem>>, vector<32x96xbf16>
    %cst_21 = arith.constant dense<0.000000e+00> : vector<16x96xf32>
    %51 = tpu.matmul %49, %50, %cst_21 {dimension_numbers = #tpu.dot_dimension_numbers<[1], [0], [0], [1], [0, 0, 1, 1], [], []>} : vector<16x32xbf16>, vector<32x96xbf16>, vector<16x96xf32> -> vector<16x96xf32>
    %52 = vector.extract_strided_slice %51 {offsets = [0, 64], sizes = [8, 8], strides = [1, 1]} : vector<16x96xf32> to vector<8x8xf32>
    %53 = vector.extract_strided_slice %51 {offsets = [8, 72], sizes = [8, 8], strides = [1, 1]} : vector<16x96xf32> to vector<8x8xf32>
    %54 = vector.extract_strided_slice %51 {offsets = [8, 0], sizes = [8, 32], strides = [1, 1]} : vector<16x96xf32> to vector<8x32xf32>
    %55 = vector.shape_cast %52 : vector<8x8xf32> to vector<1x8x8xf32>
    %56 = vector.shape_cast %53 : vector<8x8xf32> to vector<1x8x8xf32>
    %57 = vector.shape_cast %54 : vector<8x32xf32> to vector<1x8x32xf32>
    %cst_22 = arith.constant dense<0.000000e+00> : vector<1x8x8xf32>
    %58 = tpu.matmul %55, %56, %cst_22 {dimension_numbers = #tpu.dot_dimension_numbers<[2], [2], [1], [1], [0, 0, 0, 1, 1, 1], [0], [0]>} : vector<1x8x8xf32>, vector<1x8x8xf32>, vector<1x8x8xf32> -> vector<1x8x8xf32>
    %cst_23 = arith.constant dense<0xFF800000> : vector<1x8xf32>
    %59 = vector.multi_reduction <maximumf>, %58, %cst_23 [2] : vector<1x8x8xf32> to vector<1x8xf32>
    %60 = vector.shape_cast %59 : vector<1x8xf32> to vector<1x8x1xf32>
    %61 = vector.broadcast %60 : vector<1x8x1xf32> to vector<1x8x8xf32>
    %62 = arith.subf %58, %61 : vector<1x8x8xf32>
    %63 = math.exp %62 : vector<1x8x8xf32>
    %cst_24 = arith.constant dense<0.000000e+00> : vector<1x8xf32>
    %64 = vector.multi_reduction <add>, %63, %cst_24 [2] : vector<1x8x8xf32> to vector<1x8xf32>
    %65 = vector.shape_cast %64 : vector<1x8xf32> to vector<1x8x1xf32>
    %66 = tpu.reciprocal %65 {approx = true} : vector<1x8x1xf32> -> vector<1x8x1xf32>
    %67 = vector.broadcast %66 : vector<1x8x1xf32> to vector<1x8x8xf32>
    %68 = arith.mulf %63, %67 : vector<1x8x8xf32>
    %cst_25 = arith.constant dense<0.000000e+00> : vector<1x8x32xf32>
    %69 = tpu.matmul %68, %57, %cst_25 {dimension_numbers = #tpu.dot_dimension_numbers<[2], [1], [1], [2], [0, 0, 0, 1, 1, 2], [0], [0]>} : vector<1x8x8xf32>, vector<1x8x32xf32>, vector<1x8x32xf32> -> vector<1x8x32xf32>
    %70 = vector.shape_cast %69 : vector<1x8x32xf32> to vector<8x32xf32>
    %71 = arith.addf %25, %70 : vector<8x32xf32>
    %cst_26 = arith.constant dense<0.000000e+00> : vector<8xf32>
    %72 = vector.multi_reduction <add>, %71, %cst_26 [1] : vector<8x32xf32> to vector<8xf32>
    %73 = vector.shape_cast %72 : vector<8xf32> to vector<8x1xf32>
    %cst_27 = arith.constant 3.200000e+01 : f32
    %74 = vector.broadcast %cst_27 : f32 to vector<8x1xf32>
    %75 = arith.divf %73, %74 : vector<8x1xf32>
    %76 = vector.broadcast %75 : vector<8x1xf32> to vector<8x32xf32>
    %77 = arith.subf %71, %76 : vector<8x32xf32>
    %78 = arith.mulf %77, %77 : vector<8x32xf32>
    %cst_28 = arith.constant dense<0.000000e+00> : vector<8xf32>
    %79 = vector.multi_reduction <add>, %78, %cst_28 [1] : vector<8x32xf32> to vector<8xf32>
    %80 = vector.shape_cast %79 : vector<8xf32> to vector<8x1xf32>
    %cst_29 = arith.constant 3.200000e+01 : f32
    %81 = vector.broadcast %cst_29 : f32 to vector<8x1xf32>
    %82 = arith.divf %80, %81 : vector<8x1xf32>
    %cst_30 = arith.constant 9.99999974E-6 : f32
    %83 = vector.broadcast %cst_30 : f32 to vector<8x1xf32>
    %84 = arith.addf %82, %83 : vector<8x1xf32>
    %85 = math.rsqrt %84 : vector<8x1xf32>
    %86 = vector.broadcast %85 : vector<8x1xf32> to vector<8x32xf32>
    %87 = arith.mulf %77, %86 : vector<8x32xf32>
    %c4 = arith.constant 4 : index
    %c0_31 = arith.constant 0 : index
    %88 = vector.load %arg5[%c4, %c0_31] : memref<40x256xf32, #tpu.memory_space<vmem>>, vector<1x32xf32>
    %89 = vector.broadcast %88 : vector<1x32xf32> to vector<8x32xf32>
    %90 = arith.mulf %87, %89 : vector<8x32xf32>
    %c5 = arith.constant 5 : index
    %c0_32 = arith.constant 0 : index
    %91 = vector.load %arg5[%c5, %c0_32] : memref<40x256xf32, #tpu.memory_space<vmem>>, vector<1x32xf32>
    %92 = vector.broadcast %91 : vector<1x32xf32> to vector<8x32xf32>
    %93 = arith.addf %90, %92 : vector<8x32xf32>
    %94 = arith.truncf %93 : vector<8x32xf32> to vector<8x32xbf16>
    %c32 = arith.constant 32 : index
    %c0_33 = arith.constant 0 : index
    %95 = vector.load %arg3[%c32, %c0_33] : memref<1408x128xbf16, #tpu.memory_space<vmem>>, vector<32x64xbf16>
    %cst_34 = arith.constant dense<0.000000e+00> : vector<8x64xf32>
    %96 = tpu.matmul %94, %95, %cst_34 {dimension_numbers = #tpu.dot_dimension_numbers<[1], [0], [0], [1], [0, 0, 1, 1], [], []>} : vector<8x32xbf16>, vector<32x64xbf16>, vector<8x64xf32> -> vector<8x64xf32>
    %c6 = arith.constant 6 : index
    %c0_35 = arith.constant 0 : index
    %97 = vector.load %arg5[%c6, %c0_35] : memref<40x256xf32, #tpu.memory_space<vmem>>, vector<1x64xf32>
    %98 = vector.broadcast %97 : vector<1x64xf32> to vector<8x64xf32>
    %99 = arith.addf %96, %98 : vector<8x64xf32>
    %cst_36 = arith.constant 5.000000e-01 : f32
    %100 = vector.broadcast %cst_36 : f32 to vector<8x64xf32>
    %101 = arith.mulf %100, %99 : vector<8x64xf32>
    %cst_37 = arith.constant 4.471500e-02 : f32
    %102 = vector.broadcast %cst_37 : f32 to vector<8x64xf32>
    %103 = arith.mulf %102, %99 : vector<8x64xf32>
    %104 = arith.mulf %103, %99 : vector<8x64xf32>
    %105 = arith.mulf %104, %99 : vector<8x64xf32>
    %106 = arith.addf %99, %105 : vector<8x64xf32>
    %cst_38 = arith.constant 0.797884583 : f32
    %107 = vector.broadcast %cst_38 : f32 to vector<8x64xf32>
    %108 = arith.mulf %107, %106 : vector<8x64xf32>
    %109 = math.tanh %108 : vector<8x64xf32>
    %cst_39 = arith.constant 1.000000e+00 : f32
    %110 = vector.broadcast %cst_39 : f32 to vector<8x64xf32>
    %111 = arith.addf %110, %109 : vector<8x64xf32>
    %112 = arith.mulf %101, %111 : vector<8x64xf32>
    %113 = arith.truncf %112 : vector<8x64xf32> to vector<8x64xbf16>
    %c64 = arith.constant 64 : index
    %c0_40 = arith.constant 0 : index
    %114 = vector.load %arg3[%c64, %c0_40] : memref<1408x128xbf16, #tpu.memory_space<vmem>>, vector<64x32xbf16>
    %cst_41 = arith.constant dense<0.000000e+00> : vector<8x32xf32>
    %115 = tpu.matmul %113, %114, %cst_41 {dimension_numbers = #tpu.dot_dimension_numbers<[1], [0], [0], [1], [0, 0, 1, 1], [], []>} : vector<8x64xbf16>, vector<64x32xbf16>, vector<8x32xf32> -> vector<8x32xf32>
    %116 = arith.addf %71, %115 : vector<8x32xf32>
    %c7 = arith.constant 7 : index
    %c0_42 = arith.constant 0 : index
    %117 = vector.load %arg5[%c7, %c0_42] : memref<40x256xf32, #tpu.memory_space<vmem>>, vector<1x32xf32>
    %118 = vector.broadcast %117 : vector<1x32xf32> to vector<8x32xf32>
    %119 = arith.addf %116, %118 : vector<8x32xf32>
    %120 = vector.extract_strided_slice %51 {offsets = [8, 80], sizes = [8, 8], strides = [1, 1]} : vector<16x96xf32> to vector<8x8xf32>
    %121 = vector.extract_strided_slice %51 {offsets = [0, 88], sizes = [8, 8], strides = [1, 1]} : vector<16x96xf32> to vector<8x8xf32>
    %122 = vector.extract_strided_slice %51 {offsets = [0, 32], sizes = [8, 32], strides = [1, 1]} : vector<16x96xf32> to vector<8x32xf32>
    %123 = vector.shape_cast %120 : vector<8x8xf32> to vector<1x8x8xf32>
    %124 = vector.shape_cast %121 : vector<8x8xf32> to vector<1x8x8xf32>
    %125 = vector.shape_cast %122 : vector<8x32xf32> to vector<1x8x32xf32>
    %cst_43 = arith.constant dense<0.000000e+00> : vector<1x8x8xf32>
    %126 = tpu.matmul %123, %124, %cst_43 {dimension_numbers = #tpu.dot_dimension_numbers<[2], [2], [1], [1], [0, 0, 0, 1, 1, 1], [0], [0]>} : vector<1x8x8xf32>, vector<1x8x8xf32>, vector<1x8x8xf32> -> vector<1x8x8xf32>
    %cst_44 = arith.constant dense<0xFF800000> : vector<1x8xf32>
    %127 = vector.multi_reduction <maximumf>, %126, %cst_44 [2] : vector<1x8x8xf32> to vector<1x8xf32>
    %128 = vector.shape_cast %127 : vector<1x8xf32> to vector<1x8x1xf32>
    %129 = vector.broadcast %128 : vector<1x8x1xf32> to vector<1x8x8xf32>
    %130 = arith.subf %126, %129 : vector<1x8x8xf32>
    %131 = math.exp %130 : vector<1x8x8xf32>
    %cst_45 = arith.constant dense<0.000000e+00> : vector<1x8xf32>
    %132 = vector.multi_reduction <add>, %131, %cst_45 [2] : vector<1x8x8xf32> to vector<1x8xf32>
    %133 = vector.shape_cast %132 : vector<1x8xf32> to vector<1x8x1xf32>
    %134 = tpu.reciprocal %133 {approx = true} : vector<1x8x1xf32> -> vector<1x8x1xf32>
    %135 = vector.broadcast %134 : vector<1x8x1xf32> to vector<1x8x8xf32>
    %136 = arith.mulf %131, %135 : vector<1x8x8xf32>
    %cst_46 = arith.constant dense<0.000000e+00> : vector<1x8x32xf32>
    %137 = tpu.matmul %136, %125, %cst_46 {dimension_numbers = #tpu.dot_dimension_numbers<[2], [1], [1], [2], [0, 0, 0, 1, 1, 2], [0], [0]>} : vector<1x8x8xf32>, vector<1x8x32xf32>, vector<1x8x32xf32> -> vector<1x8x32xf32>
    %138 = vector.shape_cast %137 : vector<1x8x32xf32> to vector<8x32xf32>
    %139 = arith.addf %47, %138 : vector<8x32xf32>
    %cst_47 = arith.constant dense<0.000000e+00> : vector<8xf32>
    %140 = vector.multi_reduction <add>, %139, %cst_47 [1] : vector<8x32xf32> to vector<8xf32>
    %141 = vector.shape_cast %140 : vector<8xf32> to vector<8x1xf32>
    %cst_48 = arith.constant 3.200000e+01 : f32
    %142 = vector.broadcast %cst_48 : f32 to vector<8x1xf32>
    %143 = arith.divf %141, %142 : vector<8x1xf32>
    %144 = vector.broadcast %143 : vector<8x1xf32> to vector<8x32xf32>
    %145 = arith.subf %139, %144 : vector<8x32xf32>
    %146 = arith.mulf %145, %145 : vector<8x32xf32>
    %cst_49 = arith.constant dense<0.000000e+00> : vector<8xf32>
    %147 = vector.multi_reduction <add>, %146, %cst_49 [1] : vector<8x32xf32> to vector<8xf32>
    %148 = vector.shape_cast %147 : vector<8xf32> to vector<8x1xf32>
    %cst_50 = arith.constant 3.200000e+01 : f32
    %149 = vector.broadcast %cst_50 : f32 to vector<8x1xf32>
    %150 = arith.divf %148, %149 : vector<8x1xf32>
    %cst_51 = arith.constant 9.99999974E-6 : f32
    %151 = vector.broadcast %cst_51 : f32 to vector<8x1xf32>
    %152 = arith.addf %150, %151 : vector<8x1xf32>
    %153 = math.rsqrt %152 : vector<8x1xf32>
    %154 = vector.broadcast %153 : vector<8x1xf32> to vector<8x32xf32>
    %155 = arith.mulf %145, %154 : vector<8x32xf32>
    %c8 = arith.constant 8 : index
    %c0_52 = arith.constant 0 : index
    %156 = vector.load %arg5[%c8, %c0_52] : memref<40x256xf32, #tpu.memory_space<vmem>>, vector<1x32xf32>
    %157 = vector.broadcast %156 : vector<1x32xf32> to vector<8x32xf32>
    %158 = arith.mulf %155, %157 : vector<8x32xf32>
    %c9 = arith.constant 9 : index
    %c0_53 = arith.constant 0 : index
    %159 = vector.load %arg5[%c9, %c0_53] : memref<40x256xf32, #tpu.memory_space<vmem>>, vector<1x32xf32>
    %160 = vector.broadcast %159 : vector<1x32xf32> to vector<8x32xf32>
    %161 = arith.addf %158, %160 : vector<8x32xf32>
    %162 = arith.truncf %161 : vector<8x32xf32> to vector<8x32xbf16>
    %c128 = arith.constant 128 : index
    %c0_54 = arith.constant 0 : index
    %163 = vector.load %arg3[%c128, %c0_54] : memref<1408x128xbf16, #tpu.memory_space<vmem>>, vector<32x64xbf16>
    %cst_55 = arith.constant dense<0.000000e+00> : vector<8x64xf32>
    %164 = tpu.matmul %162, %163, %cst_55 {dimension_numbers = #tpu.dot_dimension_numbers<[1], [0], [0], [1], [0, 0, 1, 1], [], []>} : vector<8x32xbf16>, vector<32x64xbf16>, vector<8x64xf32> -> vector<8x64xf32>
    %c10 = arith.constant 10 : index
    %c0_56 = arith.constant 0 : index
    %165 = vector.load %arg5[%c10, %c0_56] : memref<40x256xf32, #tpu.memory_space<vmem>>, vector<1x64xf32>
    %166 = vector.broadcast %165 : vector<1x64xf32> to vector<8x64xf32>
    %167 = arith.addf %164, %166 : vector<8x64xf32>
    %cst_57 = arith.constant 5.000000e-01 : f32
    %168 = vector.broadcast %cst_57 : f32 to vector<8x64xf32>
    %169 = arith.mulf %168, %167 : vector<8x64xf32>
    %cst_58 = arith.constant 4.471500e-02 : f32
    %170 = vector.broadcast %cst_58 : f32 to vector<8x64xf32>
    %171 = arith.mulf %170, %167 : vector<8x64xf32>
    %172 = arith.mulf %171, %167 : vector<8x64xf32>
    %173 = arith.mulf %172, %167 : vector<8x64xf32>
    %174 = arith.addf %167, %173 : vector<8x64xf32>
    %cst_59 = arith.constant 0.797884583 : f32
    %175 = vector.broadcast %cst_59 : f32 to vector<8x64xf32>
    %176 = arith.mulf %175, %174 : vector<8x64xf32>
    %177 = math.tanh %176 : vector<8x64xf32>
    %cst_60 = arith.constant 1.000000e+00 : f32
    %178 = vector.broadcast %cst_60 : f32 to vector<8x64xf32>
    %179 = arith.addf %178, %177 : vector<8x64xf32>
    %180 = arith.mulf %169, %179 : vector<8x64xf32>
    %181 = arith.truncf %180 : vector<8x64xf32> to vector<8x64xbf16>
    %c160 = arith.constant 160 : index
    %c0_61 = arith.constant 0 : index
    %182 = vector.load %arg3[%c160, %c0_61] : memref<1408x128xbf16, #tpu.memory_space<vmem>>, vector<64x32xbf16>
    %cst_62 = arith.constant dense<0.000000e+00> : vector<8x32xf32>
    %183 = tpu.matmul %181, %182, %cst_62 {dimension_numbers = #tpu.dot_dimension_numbers<[1], [0], [0], [1], [0, 0, 1, 1], [], []>} : vector<8x64xbf16>, vector<64x32xbf16>, vector<8x32xf32> -> vector<8x32xf32>
    %184 = arith.addf %139, %183 : vector<8x32xf32>
    %c11 = arith.constant 11 : index
    %c0_63 = arith.constant 0 : index
    %185 = vector.load %arg5[%c11, %c0_63] : memref<40x256xf32, #tpu.memory_space<vmem>>, vector<1x32xf32>
    %186 = vector.broadcast %185 : vector<1x32xf32> to vector<8x32xf32>
    %187 = arith.addf %184, %186 : vector<8x32xf32>
    %cst_64 = arith.constant dense<0.000000e+00> : vector<8xf32>
    %188 = vector.multi_reduction <add>, %119, %cst_64 [1] : vector<8x32xf32> to vector<8xf32>
    %189 = vector.shape_cast %188 : vector<8xf32> to vector<8x1xf32>
    %cst_65 = arith.constant 3.200000e+01 : f32
    %190 = vector.broadcast %cst_65 : f32 to vector<8x1xf32>
    %191 = arith.divf %189, %190 : vector<8x1xf32>
    %192 = vector.broadcast %191 : vector<8x1xf32> to vector<8x32xf32>
    %193 = arith.subf %119, %192 : vector<8x32xf32>
    %194 = arith.mulf %193, %193 : vector<8x32xf32>
    %cst_66 = arith.constant dense<0.000000e+00> : vector<8xf32>
    %195 = vector.multi_reduction <add>, %194, %cst_66 [1] : vector<8x32xf32> to vector<8xf32>
    %196 = vector.shape_cast %195 : vector<8xf32> to vector<8x1xf32>
    %cst_67 = arith.constant 3.200000e+01 : f32
    %197 = vector.broadcast %cst_67 : f32 to vector<8x1xf32>
    %198 = arith.divf %196, %197 : vector<8x1xf32>
    %cst_68 = arith.constant 9.99999974E-6 : f32
    %199 = vector.broadcast %cst_68 : f32 to vector<8x1xf32>
    %200 = arith.addf %198, %199 : vector<8x1xf32>
    %201 = math.rsqrt %200 : vector<8x1xf32>
    %202 = vector.broadcast %201 : vector<8x1xf32> to vector<8x32xf32>
    %203 = arith.mulf %193, %202 : vector<8x32xf32>
    %c12 = arith.constant 12 : index
    %c0_69 = arith.constant 0 : index
    %204 = vector.load %arg5[%c12, %c0_69] : memref<40x256xf32, #tpu.memory_space<vmem>>, vector<1x32xf32>
    %205 = vector.broadcast %204 : vector<1x32xf32> to vector<8x32xf32>
    %206 = arith.mulf %203, %205 : vector<8x32xf32>
    %c13 = arith.constant 13 : index
    %c0_70 = arith.constant 0 : index
    %207 = vector.load %arg5[%c13, %c0_70] : memref<40x256xf32, #tpu.memory_space<vmem>>, vector<1x32xf32>
    %208 = vector.broadcast %207 : vector<1x32xf32> to vector<8x32xf32>
    %209 = arith.addf %206, %208 : vector<8x32xf32>
    %cst_71 = arith.constant dense<0.000000e+00> : vector<8xf32>
    %210 = vector.multi_reduction <add>, %187, %cst_71 [1] : vector<8x32xf32> to vector<8xf32>
    %211 = vector.shape_cast %210 : vector<8xf32> to vector<8x1xf32>
    %cst_72 = arith.constant 3.200000e+01 : f32
    %212 = vector.broadcast %cst_72 : f32 to vector<8x1xf32>
    %213 = arith.divf %211, %212 : vector<8x1xf32>
    %214 = vector.broadcast %213 : vector<8x1xf32> to vector<8x32xf32>
    %215 = arith.subf %187, %214 : vector<8x32xf32>
    %216 = arith.mulf %215, %215 : vector<8x32xf32>
    %cst_73 = arith.constant dense<0.000000e+00> : vector<8xf32>
    %217 = vector.multi_reduction <add>, %216, %cst_73 [1] : vector<8x32xf32> to vector<8xf32>
    %218 = vector.shape_cast %217 : vector<8xf32> to vector<8x1xf32>
    %cst_74 = arith.constant 3.200000e+01 : f32
    %219 = vector.broadcast %cst_74 : f32 to vector<8x1xf32>
    %220 = arith.divf %218, %219 : vector<8x1xf32>
    %cst_75 = arith.constant 9.99999974E-6 : f32
    %221 = vector.broadcast %cst_75 : f32 to vector<8x1xf32>
    %222 = arith.addf %220, %221 : vector<8x1xf32>
    %223 = math.rsqrt %222 : vector<8x1xf32>
    %224 = vector.broadcast %223 : vector<8x1xf32> to vector<8x32xf32>
    %225 = arith.mulf %215, %224 : vector<8x32xf32>
    %c14 = arith.constant 14 : index
    %c0_76 = arith.constant 0 : index
    %226 = vector.load %arg5[%c14, %c0_76] : memref<40x256xf32, #tpu.memory_space<vmem>>, vector<1x32xf32>
    %227 = vector.broadcast %226 : vector<1x32xf32> to vector<8x32xf32>
    %228 = arith.mulf %225, %227 : vector<8x32xf32>
    %c15 = arith.constant 15 : index
    %c0_77 = arith.constant 0 : index
    %229 = vector.load %arg5[%c15, %c0_77] : memref<40x256xf32, #tpu.memory_space<vmem>>, vector<1x32xf32>
    %230 = vector.broadcast %229 : vector<1x32xf32> to vector<8x32xf32>
    %231 = arith.addf %228, %230 : vector<8x32xf32>
    %232 = tpu.concatenate %209, %231 in 0 : vector<8x32xf32>, vector<8x32xf32> -> vector<16x32xf32>
    %233 = arith.truncf %232 : vector<16x32xf32> to vector<16x32xbf16>
    %c224 = arith.constant 224 : index
    %c0_78 = arith.constant 0 : index
    %234 = vector.load %arg3[%c224, %c0_78] : memref<1408x128xbf16, #tpu.memory_space<vmem>>, vector<32x96xbf16>
    %cst_79 = arith.constant dense<0.000000e+00> : vector<16x96xf32>
    %235 = tpu.matmul %233, %234, %cst_79 {dimension_numbers = #tpu.dot_dimension_numbers<[1], [0], [0], [1], [0, 0, 1, 1], [], []>} : vector<16x32xbf16>, vector<32x96xbf16>, vector<16x96xf32> -> vector<16x96xf32>
    %236 = vector.extract_strided_slice %235 {offsets = [0, 64], sizes = [8, 8], strides = [1, 1]} : vector<16x96xf32> to vector<8x8xf32>
    %237 = vector.extract_strided_slice %235 {offsets = [8, 72], sizes = [8, 8], strides = [1, 1]} : vector<16x96xf32> to vector<8x8xf32>
    %238 = vector.extract_strided_slice %235 {offsets = [8, 0], sizes = [8, 32], strides = [1, 1]} : vector<16x96xf32> to vector<8x32xf32>
    %239 = vector.shape_cast %236 : vector<8x8xf32> to vector<1x8x8xf32>
    %240 = vector.shape_cast %237 : vector<8x8xf32> to vector<1x8x8xf32>
    %241 = vector.shape_cast %238 : vector<8x32xf32> to vector<1x8x32xf32>
    %cst_80 = arith.constant dense<0.000000e+00> : vector<1x8x8xf32>
    %242 = tpu.matmul %239, %240, %cst_80 {dimension_numbers = #tpu.dot_dimension_numbers<[2], [2], [1], [1], [0, 0, 0, 1, 1, 1], [0], [0]>} : vector<1x8x8xf32>, vector<1x8x8xf32>, vector<1x8x8xf32> -> vector<1x8x8xf32>
    %cst_81 = arith.constant dense<0xFF800000> : vector<1x8xf32>
    %243 = vector.multi_reduction <maximumf>, %242, %cst_81 [2] : vector<1x8x8xf32> to vector<1x8xf32>
    %244 = vector.shape_cast %243 : vector<1x8xf32> to vector<1x8x1xf32>
    %245 = vector.broadcast %244 : vector<1x8x1xf32> to vector<1x8x8xf32>
    %246 = arith.subf %242, %245 : vector<1x8x8xf32>
    %247 = math.exp %246 : vector<1x8x8xf32>
    %cst_82 = arith.constant dense<0.000000e+00> : vector<1x8xf32>
    %248 = vector.multi_reduction <add>, %247, %cst_82 [2] : vector<1x8x8xf32> to vector<1x8xf32>
    %249 = vector.shape_cast %248 : vector<1x8xf32> to vector<1x8x1xf32>
    %250 = tpu.reciprocal %249 {approx = true} : vector<1x8x1xf32> -> vector<1x8x1xf32>
    %251 = vector.broadcast %250 : vector<1x8x1xf32> to vector<1x8x8xf32>
    %252 = arith.mulf %247, %251 : vector<1x8x8xf32>
    %cst_83 = arith.constant dense<0.000000e+00> : vector<1x8x32xf32>
    %253 = tpu.matmul %252, %241, %cst_83 {dimension_numbers = #tpu.dot_dimension_numbers<[2], [1], [1], [2], [0, 0, 0, 1, 1, 2], [0], [0]>} : vector<1x8x8xf32>, vector<1x8x32xf32>, vector<1x8x32xf32> -> vector<1x8x32xf32>
    %254 = vector.shape_cast %253 : vector<1x8x32xf32> to vector<8x32xf32>
    %255 = arith.addf %209, %254 : vector<8x32xf32>
    %cst_84 = arith.constant dense<0.000000e+00> : vector<8xf32>
    %256 = vector.multi_reduction <add>, %255, %cst_84 [1] : vector<8x32xf32> to vector<8xf32>
    %257 = vector.shape_cast %256 : vector<8xf32> to vector<8x1xf32>
    %cst_85 = arith.constant 3.200000e+01 : f32
    %258 = vector.broadcast %cst_85 : f32 to vector<8x1xf32>
    %259 = arith.divf %257, %258 : vector<8x1xf32>
    %260 = vector.broadcast %259 : vector<8x1xf32> to vector<8x32xf32>
    %261 = arith.subf %255, %260 : vector<8x32xf32>
    %262 = arith.mulf %261, %261 : vector<8x32xf32>
    %cst_86 = arith.constant dense<0.000000e+00> : vector<8xf32>
    %263 = vector.multi_reduction <add>, %262, %cst_86 [1] : vector<8x32xf32> to vector<8xf32>
    %264 = vector.shape_cast %263 : vector<8xf32> to vector<8x1xf32>
    %cst_87 = arith.constant 3.200000e+01 : f32
    %265 = vector.broadcast %cst_87 : f32 to vector<8x1xf32>
    %266 = arith.divf %264, %265 : vector<8x1xf32>
    %cst_88 = arith.constant 9.99999974E-6 : f32
    %267 = vector.broadcast %cst_88 : f32 to vector<8x1xf32>
    %268 = arith.addf %266, %267 : vector<8x1xf32>
    %269 = math.rsqrt %268 : vector<8x1xf32>
    %270 = vector.broadcast %269 : vector<8x1xf32> to vector<8x32xf32>
    %271 = arith.mulf %261, %270 : vector<8x32xf32>
    %c16 = arith.constant 16 : index
    %c0_89 = arith.constant 0 : index
    %272 = vector.load %arg5[%c16, %c0_89] : memref<40x256xf32, #tpu.memory_space<vmem>>, vector<1x32xf32>
    %273 = vector.broadcast %272 : vector<1x32xf32> to vector<8x32xf32>
    %274 = arith.mulf %271, %273 : vector<8x32xf32>
    %c17 = arith.constant 17 : index
    %c0_90 = arith.constant 0 : index
    %275 = vector.load %arg5[%c17, %c0_90] : memref<40x256xf32, #tpu.memory_space<vmem>>, vector<1x32xf32>
    %276 = vector.broadcast %275 : vector<1x32xf32> to vector<8x32xf32>
    %277 = arith.addf %274, %276 : vector<8x32xf32>
    %278 = arith.truncf %277 : vector<8x32xf32> to vector<8x32xbf16>
    %c256 = arith.constant 256 : index
    %c0_91 = arith.constant 0 : index
    %279 = vector.load %arg3[%c256, %c0_91] : memref<1408x128xbf16, #tpu.memory_space<vmem>>, vector<32x64xbf16>
    %cst_92 = arith.constant dense<0.000000e+00> : vector<8x64xf32>
    %280 = tpu.matmul %278, %279, %cst_92 {dimension_numbers = #tpu.dot_dimension_numbers<[1], [0], [0], [1], [0, 0, 1, 1], [], []>} : vector<8x32xbf16>, vector<32x64xbf16>, vector<8x64xf32> -> vector<8x64xf32>
    %c18 = arith.constant 18 : index
    %c0_93 = arith.constant 0 : index
    %281 = vector.load %arg5[%c18, %c0_93] : memref<40x256xf32, #tpu.memory_space<vmem>>, vector<1x64xf32>
    %282 = vector.broadcast %281 : vector<1x64xf32> to vector<8x64xf32>
    %283 = arith.addf %280, %282 : vector<8x64xf32>
    %cst_94 = arith.constant 5.000000e-01 : f32
    %284 = vector.broadcast %cst_94 : f32 to vector<8x64xf32>
    %285 = arith.mulf %284, %283 : vector<8x64xf32>
    %cst_95 = arith.constant 4.471500e-02 : f32
    %286 = vector.broadcast %cst_95 : f32 to vector<8x64xf32>
    %287 = arith.mulf %286, %283 : vector<8x64xf32>
    %288 = arith.mulf %287, %283 : vector<8x64xf32>
    %289 = arith.mulf %288, %283 : vector<8x64xf32>
    %290 = arith.addf %283, %289 : vector<8x64xf32>
    %cst_96 = arith.constant 0.797884583 : f32
    %291 = vector.broadcast %cst_96 : f32 to vector<8x64xf32>
    %292 = arith.mulf %291, %290 : vector<8x64xf32>
    %293 = math.tanh %292 : vector<8x64xf32>
    %cst_97 = arith.constant 1.000000e+00 : f32
    %294 = vector.broadcast %cst_97 : f32 to vector<8x64xf32>
    %295 = arith.addf %294, %293 : vector<8x64xf32>
    %296 = arith.mulf %285, %295 : vector<8x64xf32>
    %297 = arith.truncf %296 : vector<8x64xf32> to vector<8x64xbf16>
    %c288 = arith.constant 288 : index
    %c0_98 = arith.constant 0 : index
    %298 = vector.load %arg3[%c288, %c0_98] : memref<1408x128xbf16, #tpu.memory_space<vmem>>, vector<64x32xbf16>
    %cst_99 = arith.constant dense<0.000000e+00> : vector<8x32xf32>
    %299 = tpu.matmul %297, %298, %cst_99 {dimension_numbers = #tpu.dot_dimension_numbers<[1], [0], [0], [1], [0, 0, 1, 1], [], []>} : vector<8x64xbf16>, vector<64x32xbf16>, vector<8x32xf32> -> vector<8x32xf32>
    %300 = arith.addf %255, %299 : vector<8x32xf32>
    %c19 = arith.constant 19 : index
    %c0_100 = arith.constant 0 : index
    %301 = vector.load %arg5[%c19, %c0_100] : memref<40x256xf32, #tpu.memory_space<vmem>>, vector<1x32xf32>
    %302 = vector.broadcast %301 : vector<1x32xf32> to vector<8x32xf32>
    %303 = arith.addf %300, %302 : vector<8x32xf32>
    %304 = vector.extract_strided_slice %235 {offsets = [8, 80], sizes = [8, 8], strides = [1, 1]} : vector<16x96xf32> to vector<8x8xf32>
    %305 = vector.extract_strided_slice %235 {offsets = [0, 88], sizes = [8, 8], strides = [1, 1]} : vector<16x96xf32> to vector<8x8xf32>
    %306 = vector.extract_strided_slice %235 {offsets = [0, 32], sizes = [8, 32], strides = [1, 1]} : vector<16x96xf32> to vector<8x32xf32>
    %307 = vector.shape_cast %304 : vector<8x8xf32> to vector<1x8x8xf32>
    %308 = vector.shape_cast %305 : vector<8x8xf32> to vector<1x8x8xf32>
    %309 = vector.shape_cast %306 : vector<8x32xf32> to vector<1x8x32xf32>
    %cst_101 = arith.constant dense<0.000000e+00> : vector<1x8x8xf32>
    %310 = tpu.matmul %307, %308, %cst_101 {dimension_numbers = #tpu.dot_dimension_numbers<[2], [2], [1], [1], [0, 0, 0, 1, 1, 1], [0], [0]>} : vector<1x8x8xf32>, vector<1x8x8xf32>, vector<1x8x8xf32> -> vector<1x8x8xf32>
    %cst_102 = arith.constant dense<0xFF800000> : vector<1x8xf32>
    %311 = vector.multi_reduction <maximumf>, %310, %cst_102 [2] : vector<1x8x8xf32> to vector<1x8xf32>
    %312 = vector.shape_cast %311 : vector<1x8xf32> to vector<1x8x1xf32>
    %313 = vector.broadcast %312 : vector<1x8x1xf32> to vector<1x8x8xf32>
    %314 = arith.subf %310, %313 : vector<1x8x8xf32>
    %315 = math.exp %314 : vector<1x8x8xf32>
    %cst_103 = arith.constant dense<0.000000e+00> : vector<1x8xf32>
    %316 = vector.multi_reduction <add>, %315, %cst_103 [2] : vector<1x8x8xf32> to vector<1x8xf32>
    %317 = vector.shape_cast %316 : vector<1x8xf32> to vector<1x8x1xf32>
    %318 = tpu.reciprocal %317 {approx = true} : vector<1x8x1xf32> -> vector<1x8x1xf32>
    %319 = vector.broadcast %318 : vector<1x8x1xf32> to vector<1x8x8xf32>
    %320 = arith.mulf %315, %319 : vector<1x8x8xf32>
    %cst_104 = arith.constant dense<0.000000e+00> : vector<1x8x32xf32>
    %321 = tpu.matmul %320, %309, %cst_104 {dimension_numbers = #tpu.dot_dimension_numbers<[2], [1], [1], [2], [0, 0, 0, 1, 1, 2], [0], [0]>} : vector<1x8x8xf32>, vector<1x8x32xf32>, vector<1x8x32xf32> -> vector<1x8x32xf32>
    %322 = vector.shape_cast %321 : vector<1x8x32xf32> to vector<8x32xf32>
    %323 = arith.addf %231, %322 : vector<8x32xf32>
    %cst_105 = arith.constant dense<0.000000e+00> : vector<8xf32>
    %324 = vector.multi_reduction <add>, %323, %cst_105 [1] : vector<8x32xf32> to vector<8xf32>
    %325 = vector.shape_cast %324 : vector<8xf32> to vector<8x1xf32>
    %cst_106 = arith.constant 3.200000e+01 : f32
    %326 = vector.broadcast %cst_106 : f32 to vector<8x1xf32>
    %327 = arith.divf %325, %326 : vector<8x1xf32>
    %328 = vector.broadcast %327 : vector<8x1xf32> to vector<8x32xf32>
    %329 = arith.subf %323, %328 : vector<8x32xf32>
    %330 = arith.mulf %329, %329 : vector<8x32xf32>
    %cst_107 = arith.constant dense<0.000000e+00> : vector<8xf32>
    %331 = vector.multi_reduction <add>, %330, %cst_107 [1] : vector<8x32xf32> to vector<8xf32>
    %332 = vector.shape_cast %331 : vector<8xf32> to vector<8x1xf32>
    %cst_108 = arith.constant 3.200000e+01 : f32
    %333 = vector.broadcast %cst_108 : f32 to vector<8x1xf32>
    %334 = arith.divf %332, %333 : vector<8x1xf32>
    %cst_109 = arith.constant 9.99999974E-6 : f32
    %335 = vector.broadcast %cst_109 : f32 to vector<8x1xf32>
    %336 = arith.addf %334, %335 : vector<8x1xf32>
    %337 = math.rsqrt %336 : vector<8x1xf32>
    %338 = vector.broadcast %337 : vector<8x1xf32> to vector<8x32xf32>
    %339 = arith.mulf %329, %338 : vector<8x32xf32>
    %c20 = arith.constant 20 : index
    %c0_110 = arith.constant 0 : index
    %340 = vector.load %arg5[%c20, %c0_110] : memref<40x256xf32, #tpu.memory_space<vmem>>, vector<1x32xf32>
    %341 = vector.broadcast %340 : vector<1x32xf32> to vector<8x32xf32>
    %342 = arith.mulf %339, %341 : vector<8x32xf32>
    %c21 = arith.constant 21 : index
    %c0_111 = arith.constant 0 : index
    %343 = vector.load %arg5[%c21, %c0_111] : memref<40x256xf32, #tpu.memory_space<vmem>>, vector<1x32xf32>
    %344 = vector.broadcast %343 : vector<1x32xf32> to vector<8x32xf32>
    %345 = arith.addf %342, %344 : vector<8x32xf32>
    %346 = arith.truncf %345 : vector<8x32xf32> to vector<8x32xbf16>
    %c352 = arith.constant 352 : index
    %c0_112 = arith.constant 0 : index
    %347 = vector.load %arg3[%c352, %c0_112] : memref<1408x128xbf16, #tpu.memory_space<vmem>>, vector<32x64xbf16>
    %cst_113 = arith.constant dense<0.000000e+00> : vector<8x64xf32>
    %348 = tpu.matmul %346, %347, %cst_113 {dimension_numbers = #tpu.dot_dimension_numbers<[1], [0], [0], [1], [0, 0, 1, 1], [], []>} : vector<8x32xbf16>, vector<32x64xbf16>, vector<8x64xf32> -> vector<8x64xf32>
    %c22 = arith.constant 22 : index
    %c0_114 = arith.constant 0 : index
    %349 = vector.load %arg5[%c22, %c0_114] : memref<40x256xf32, #tpu.memory_space<vmem>>, vector<1x64xf32>
    %350 = vector.broadcast %349 : vector<1x64xf32> to vector<8x64xf32>
    %351 = arith.addf %348, %350 : vector<8x64xf32>
    %cst_115 = arith.constant 5.000000e-01 : f32
    %352 = vector.broadcast %cst_115 : f32 to vector<8x64xf32>
    %353 = arith.mulf %352, %351 : vector<8x64xf32>
    %cst_116 = arith.constant 4.471500e-02 : f32
    %354 = vector.broadcast %cst_116 : f32 to vector<8x64xf32>
    %355 = arith.mulf %354, %351 : vector<8x64xf32>
    %356 = arith.mulf %355, %351 : vector<8x64xf32>
    %357 = arith.mulf %356, %351 : vector<8x64xf32>
    %358 = arith.addf %351, %357 : vector<8x64xf32>
    %cst_117 = arith.constant 0.797884583 : f32
    %359 = vector.broadcast %cst_117 : f32 to vector<8x64xf32>
    %360 = arith.mulf %359, %358 : vector<8x64xf32>
    %361 = math.tanh %360 : vector<8x64xf32>
    %cst_118 = arith.constant 1.000000e+00 : f32
    %362 = vector.broadcast %cst_118 : f32 to vector<8x64xf32>
    %363 = arith.addf %362, %361 : vector<8x64xf32>
    %364 = arith.mulf %353, %363 : vector<8x64xf32>
    %365 = arith.truncf %364 : vector<8x64xf32> to vector<8x64xbf16>
    %c384 = arith.constant 384 : index
    %c0_119 = arith.constant 0 : index
    %366 = vector.load %arg3[%c384, %c0_119] : memref<1408x128xbf16, #tpu.memory_space<vmem>>, vector<64x32xbf16>
    %cst_120 = arith.constant dense<0.000000e+00> : vector<8x32xf32>
    %367 = tpu.matmul %365, %366, %cst_120 {dimension_numbers = #tpu.dot_dimension_numbers<[1], [0], [0], [1], [0, 0, 1, 1], [], []>} : vector<8x64xbf16>, vector<64x32xbf16>, vector<8x32xf32> -> vector<8x32xf32>
    %368 = arith.addf %323, %367 : vector<8x32xf32>
    %c23 = arith.constant 23 : index
    %c0_121 = arith.constant 0 : index
    %369 = vector.load %arg5[%c23, %c0_121] : memref<40x256xf32, #tpu.memory_space<vmem>>, vector<1x32xf32>
    %370 = vector.broadcast %369 : vector<1x32xf32> to vector<8x32xf32>
    %371 = arith.addf %368, %370 : vector<8x32xf32>
    %372 = arith.truncf %303 : vector<8x32xf32> to vector<8x32xbf16>
    %c448 = arith.constant 448 : index
    %c0_122 = arith.constant 0 : index
    %373 = vector.load %arg3[%c448, %c0_122] : memref<1408x128xbf16, #tpu.memory_space<vmem>>, vector<32x16xbf16>
    %cst_123 = arith.constant dense<0.000000e+00> : vector<8x16xf32>
    %374 = tpu.matmul %372, %373, %cst_123 {dimension_numbers = #tpu.dot_dimension_numbers<[1], [0], [0], [1], [0, 0, 1, 1], [], []>} : vector<8x32xbf16>, vector<32x16xbf16>, vector<8x16xf32> -> vector<8x16xf32>
    %c24 = arith.constant 24 : index
    %c0_124 = arith.constant 0 : index
    %375 = vector.load %arg5[%c24, %c0_124] : memref<40x256xf32, #tpu.memory_space<vmem>>, vector<1x16xf32>
    %376 = vector.broadcast %375 : vector<1x16xf32> to vector<8x16xf32>
    %377 = arith.addf %374, %376 : vector<8x16xf32>
    %378 = arith.truncf %377 : vector<8x16xf32> to vector<8x16xbf16>
    %c0_125 = arith.constant 0 : index
    %c0_126 = arith.constant 0 : index
    %379 = vector.load %arg4[%c0_125, %c0_126] : memref<96x256xbf16, #tpu.memory_space<vmem>>, vector<16x256xbf16>
    %cst_127 = arith.constant dense<0.000000e+00> : vector<8x256xf32>
    %380 = tpu.matmul %378, %379, %cst_127 {dimension_numbers = #tpu.dot_dimension_numbers<[1], [0], [0], [1], [0, 0, 1, 1], [], []>} : vector<8x16xbf16>, vector<16x256xbf16>, vector<8x256xf32> -> vector<8x256xf32>
    %c25 = arith.constant 25 : index
    %c0_128 = arith.constant 0 : index
    %381 = vector.load %arg5[%c25, %c0_128] : memref<40x256xf32, #tpu.memory_space<vmem>>, vector<1x256xf32>
    %382 = vector.broadcast %381 : vector<1x256xf32> to vector<8x256xf32>
    %383 = arith.addf %380, %382 : vector<8x256xf32>
    %384 = arith.truncf %383 : vector<8x256xf32> to vector<8x256xbf16>
    %c480 = arith.constant 480 : index
    %c0_129 = arith.constant 0 : index
    %385 = vector.load %arg3[%c480, %c0_129] : memref<1408x128xbf16, #tpu.memory_space<vmem>>, vector<256x128xbf16>
    %cst_130 = arith.constant dense<0.000000e+00> : vector<8x128xf32>
    %386 = tpu.matmul %384, %385, %cst_130 {dimension_numbers = #tpu.dot_dimension_numbers<[1], [0], [0], [1], [0, 0, 1, 1], [], []>} : vector<8x256xbf16>, vector<256x128xbf16>, vector<8x128xf32> -> vector<8x128xf32>
    %c26 = arith.constant 26 : index
    %c0_131 = arith.constant 0 : index
    %387 = vector.load %arg5[%c26, %c0_131] : memref<40x256xf32, #tpu.memory_space<vmem>>, vector<1x128xf32>
    %388 = vector.broadcast %387 : vector<1x128xf32> to vector<8x128xf32>
    %389 = arith.addf %386, %388 : vector<8x128xf32>
    %390 = arith.truncf %371 : vector<8x32xf32> to vector<8x32xbf16>
    %c736 = arith.constant 736 : index
    %c0_132 = arith.constant 0 : index
    %391 = vector.load %arg3[%c736, %c0_132] : memref<1408x128xbf16, #tpu.memory_space<vmem>>, vector<32x16xbf16>
    %cst_133 = arith.constant dense<0.000000e+00> : vector<8x16xf32>
    %392 = tpu.matmul %390, %391, %cst_133 {dimension_numbers = #tpu.dot_dimension_numbers<[1], [0], [0], [1], [0, 0, 1, 1], [], []>} : vector<8x32xbf16>, vector<32x16xbf16>, vector<8x16xf32> -> vector<8x16xf32>
    %c27 = arith.constant 27 : index
    %c0_134 = arith.constant 0 : index
    %393 = vector.load %arg5[%c27, %c0_134] : memref<40x256xf32, #tpu.memory_space<vmem>>, vector<1x16xf32>
    %394 = vector.broadcast %393 : vector<1x16xf32> to vector<8x16xf32>
    %395 = arith.addf %392, %394 : vector<8x16xf32>
    %396 = arith.truncf %395 : vector<8x16xf32> to vector<8x16xbf16>
    %c16_135 = arith.constant 16 : index
    %c0_136 = arith.constant 0 : index
    %397 = vector.load %arg4[%c16_135, %c0_136] : memref<96x256xbf16, #tpu.memory_space<vmem>>, vector<16x256xbf16>
    %cst_137 = arith.constant dense<0.000000e+00> : vector<8x256xf32>
    %398 = tpu.matmul %396, %397, %cst_137 {dimension_numbers = #tpu.dot_dimension_numbers<[1], [0], [0], [1], [0, 0, 1, 1], [], []>} : vector<8x16xbf16>, vector<16x256xbf16>, vector<8x256xf32> -> vector<8x256xf32>
    %c28 = arith.constant 28 : index
    %c0_138 = arith.constant 0 : index
    %399 = vector.load %arg5[%c28, %c0_138] : memref<40x256xf32, #tpu.memory_space<vmem>>, vector<1x256xf32>
    %400 = vector.broadcast %399 : vector<1x256xf32> to vector<8x256xf32>
    %401 = arith.addf %398, %400 : vector<8x256xf32>
    %402 = arith.truncf %401 : vector<8x256xf32> to vector<8x256xbf16>
    %c768 = arith.constant 768 : index
    %c0_139 = arith.constant 0 : index
    %403 = vector.load %arg3[%c768, %c0_139] : memref<1408x128xbf16, #tpu.memory_space<vmem>>, vector<256x128xbf16>
    %cst_140 = arith.constant dense<0.000000e+00> : vector<8x128xf32>
    %404 = tpu.matmul %402, %403, %cst_140 {dimension_numbers = #tpu.dot_dimension_numbers<[1], [0], [0], [1], [0, 0, 1, 1], [], []>} : vector<8x256xbf16>, vector<256x128xbf16>, vector<8x128xf32> -> vector<8x128xf32>
    %c29 = arith.constant 29 : index
    %c0_141 = arith.constant 0 : index
    %405 = vector.load %arg5[%c29, %c0_141] : memref<40x256xf32, #tpu.memory_space<vmem>>, vector<1x128xf32>
    %406 = vector.broadcast %405 : vector<1x128xf32> to vector<8x128xf32>
    %407 = arith.addf %404, %406 : vector<8x128xf32>
    %408 = vector.shape_cast %389 : vector<8x128xf32> to vector<1x8x128xf32>
    %cst_142 = arith.constant dense<0.000000e+00> : vector<1x128xf32>
    %409 = vector.multi_reduction <add>, %408, %cst_142 [1] : vector<1x8x128xf32> to vector<1x128xf32>
    %cst_143 = arith.constant 8.000000e+00 : f32
    %410 = vector.broadcast %cst_143 : f32 to vector<1x128xf32>
    %411 = arith.divf %409, %410 : vector<1x128xf32>
    %412 = vector.shape_cast %407 : vector<8x128xf32> to vector<1x8x128xf32>
    %cst_144 = arith.constant dense<0.000000e+00> : vector<1x128xf32>
    %413 = vector.multi_reduction <add>, %412, %cst_144 [1] : vector<1x8x128xf32> to vector<1x128xf32>
    %cst_145 = arith.constant 8.000000e+00 : f32
    %414 = vector.broadcast %cst_145 : f32 to vector<1x128xf32>
    %415 = arith.divf %413, %414 : vector<1x128xf32>
    %416 = arith.addf %411, %415 : vector<1x128xf32>
    %417 = arith.truncf %416 : vector<1x128xf32> to vector<1x128xbf16>
    %c1024 = arith.constant 1024 : index
    %c0_146 = arith.constant 0 : index
    %418 = vector.load %arg3[%c1024, %c0_146] : memref<1408x128xbf16, #tpu.memory_space<vmem>>, vector<128x64xbf16>
    %cst_147 = arith.constant dense<0.000000e+00> : vector<1x64xf32>
    %419 = tpu.matmul %417, %418, %cst_147 {dimension_numbers = #tpu.dot_dimension_numbers<[1], [0], [0], [1], [0, 0, 1, 1], [], []>} : vector<1x128xbf16>, vector<128x64xbf16>, vector<1x64xf32> -> vector<1x64xf32>
    %c30 = arith.constant 30 : index
    %c0_148 = arith.constant 0 : index
    %420 = vector.load %arg5[%c30, %c0_148] : memref<40x256xf32, #tpu.memory_space<vmem>>, vector<1x64xf32>
    %421 = arith.addf %419, %420 : vector<1x64xf32>
    %422 = arith.truncf %421 : vector<1x64xf32> to vector<1x64xbf16>
    %c32_149 = arith.constant 32 : index
    %c0_150 = arith.constant 0 : index
    %423 = vector.load %arg4[%c32_149, %c0_150] : memref<96x256xbf16, #tpu.memory_space<vmem>>, vector<64x256xbf16>
    %cst_151 = arith.constant dense<0.000000e+00> : vector<1x256xf32>
    %424 = tpu.matmul %422, %423, %cst_151 {dimension_numbers = #tpu.dot_dimension_numbers<[1], [0], [0], [1], [0, 0, 1, 1], [], []>} : vector<1x64xbf16>, vector<64x256xbf16>, vector<1x256xf32> -> vector<1x256xf32>
    %c31 = arith.constant 31 : index
    %c0_152 = arith.constant 0 : index
    %425 = vector.load %arg5[%c31, %c0_152] : memref<40x256xf32, #tpu.memory_space<vmem>>, vector<1x256xf32>
    %426 = arith.addf %424, %425 : vector<1x256xf32>
    %427 = arith.truncf %426 : vector<1x256xf32> to vector<1x256xbf16>
    %c1152 = arith.constant 1152 : index
    %c0_153 = arith.constant 0 : index
    %428 = vector.load %arg3[%c1152, %c0_153] : memref<1408x128xbf16, #tpu.memory_space<vmem>>, vector<256x128xbf16>
    %cst_154 = arith.constant dense<0.000000e+00> : vector<1x128xf32>
    %429 = tpu.matmul %427, %428, %cst_154 {dimension_numbers = #tpu.dot_dimension_numbers<[1], [0], [0], [1], [0, 0, 1, 1], [], []>} : vector<1x256xbf16>, vector<256x128xbf16>, vector<1x128xf32> -> vector<1x128xf32>
    %c32_155 = arith.constant 32 : index
    %c0_156 = arith.constant 0 : index
    %430 = vector.load %arg5[%c32_155, %c0_156] : memref<40x256xf32, #tpu.memory_space<vmem>>, vector<1x128xf32>
    %431 = arith.addf %429, %430 : vector<1x128xf32>
    %c0_157 = arith.constant 0 : index
    %c0_158 = arith.constant 0 : index
    %c0_159 = arith.constant 0 : index
    %432 = vector.load %arg6[%c0_157, %c0_158, %c0_159] : memref<1x1x256xf32, #tpu.memory_space<vmem>>, vector<1x1x128xf32>
    %433 = vector.shape_cast %432 : vector<1x1x128xf32> to vector<1x128xf32>
    %434 = vector.shape_cast %416 : vector<1x128xf32> to vector<1x1x128xf32>
    tpu.vector_store %arg6[%c0_157, %c0_158, %c0_159], %434 {strides = array<i32>} : memref<1x1x256xf32, #tpu.memory_space<vmem>>, vector<1x1x128xf32>,
    %c0_160 = arith.constant 0 : index
    %c0_161 = arith.constant 0 : index
    %c128_162 = arith.constant 128 : index
    %435 = vector.load %arg6[%c0_160, %c0_161, %c128_162] : memref<1x1x256xf32, #tpu.memory_space<vmem>>, vector<1x1x128xf32>
    %436 = vector.shape_cast %435 : vector<1x1x128xf32> to vector<1x128xf32>
    %437 = vector.shape_cast %431 : vector<1x128xf32> to vector<1x1x128xf32>
    tpu.vector_store %arg6[%c0_160, %c0_161, %c128_162], %437 {strides = array<i32>} : memref<1x1x256xf32, #tpu.memory_space<vmem>>, vector<1x1x128xf32>,
    return
  }
  func.func @transform_0(%arg0: i32) -> (i32, i32, i32) {
    %c0_i32 = arith.constant 0 : i32
    %c0_i32_0 = arith.constant 0 : i32
    %c0_i32_1 = arith.constant 0 : i32
    return %arg0, %c0_i32, %c0_i32_0 : i32, i32, i32
  }
  func.func @transform_1(%arg0: i32) -> (i32, i32, i32) {
    %c0_i32 = arith.constant 0 : i32
    %c0_i32_0 = arith.constant 0 : i32
    %c0_i32_1 = arith.constant 0 : i32
    return %arg0, %c0_i32, %c0_i32_0 : i32, i32, i32
  }
  func.func @transform_2(%arg0: i32) -> (i32, i32) {
    %c0_i32 = arith.constant 0 : i32
    %c0_i32_0 = arith.constant 0 : i32
    %c0_i32_1 = arith.constant 0 : i32
    return %c0_i32, %c0_i32_0 : i32, i32
  }
  func.func @transform_3(%arg0: i32) -> (i32, i32) {
    %c0_i32 = arith.constant 0 : i32
    %c0_i32_0 = arith.constant 0 : i32
    %c0_i32_1 = arith.constant 0 : i32
    return %c0_i32, %c0_i32_0 : i32, i32
  }
  func.func @transform_4(%arg0: i32) -> (i32, i32) {
    %c0_i32 = arith.constant 0 : i32
    %c0_i32_0 = arith.constant 0 : i32
    %c0_i32_1 = arith.constant 0 : i32
    return %c0_i32, %c0_i32_0 : i32, i32
  }
  func.func @transform_5(%arg0: i32) -> (i32, i32, i32) {
    %c0_i32 = arith.constant 0 : i32
    %c0_i32_0 = arith.constant 0 : i32
    %c0_i32_1 = arith.constant 0 : i32
    return %arg0, %c0_i32, %c0_i32_0 : i32, i32, i32
  }
}

</mosaic_0001>

<llo_original>
// kernel: _model_forward.1
$region0: #{_model_forward.1}
  #allocation0 [shape = 'u32[]', space=smem, size = 0x4, offset = 0x4, fixed_abs, tag = 'smem constant byte address 0x4 - core index']
  #allocation1 [shape = 'u32[144,128]{1,0:T(1,128)}', space=vmem, size = 0x12000, scoped, tag = 'internal scratch']
  %s0 = inlined_call_operand.vmem [shape: f32[2,8,32], index: 0, kind: input, shape index: {}]
  %s1 = inlined_call_operand.vmem [shape: f32[2,8,32], index: 1, kind: input, shape index: {}]
  %s2 = inlined_call_operand.vmem [shape: bf16[1408,128], index: 2, kind: input, shape index: {}]
  %s3 = inlined_call_operand.vmem [shape: bf16[96,256], index: 3, kind: input, shape index: {}]
  %s4 = inlined_call_operand.vmem [shape: f32[40,256], index: 4, kind: input, shape index: {}]
  %s5 = inlined_call_operand.vmem [shape: f32[2,1,256], index: 5, kind: output, shape index: {}]
  %s6 = sld [smem:[#allocation0]]
  $region53: #{_model_forward.1} parent=0
    _
  %s8 = ssub.s32 1, %s6
  %s9 = scalar_select 0, %s8, %s6
  loop: start=0, step=1, limit=4
  $region2: #{_model_forward.1} parent=0 // loop_pre_header
    _
  $region3: #{_model_forward.1} parent=0 // loop_header
    %s11 = sphi 0, %s15
    %p12 = scmp.ge.s32.totalorder %s11, 4
    %s21 = sphi 0, %s23
    %s24 = sphi 0, %s21
    %s25 = sphi 0, %s24
    %s41 = sphi 0, %s25
    %s47 = sphi 0, %s49
    %s50 = sphi 0, %s47
    %s51 = sphi 0, %s50
    %s67 = sphi 0, %s51
    %s71 = sphi 0, %s71
    %s73 = sphi 0, %s71
    %s74 = sphi 0, %s73
    %s88 = sphi 0, %s74
    %s92 = sphi 0, %s92
    %s94 = sphi 0, %s92
    %s95 = sphi 0, %s94
    %s109 = sphi 0, %s95
    %s113 = sphi 0, %s113
    %s115 = sphi 0, %s113
    %s116 = sphi 0, %s115
    %s130 = sphi 0, %s116
    %s136 = sphi 0, %s138
    %s139 = sphi 0, %s136
    %s140 = sphi 0, %s139
    %s156 = sphi 0, %s140
  $region4: #{_model_forward.1} parent=0 // loop_header_branch
    %14 = sbr.rel (%p12) target = $region8
  $region5: #{_model_forward.1} parent=0 // loop_body
    %s16 = ssub.s32 %s11, 1
    %s17 = ssub.s32 %s11, 2
    %s18 = sadd.s32 %s11, 1
    %s19 = ssub.s32 %s11, %s18
    %p20 = scmp.eq.s32.totalorder %s19, 0
    %s22 = sadd.s32 %s21, 1
    %s23 = scalar_select %p20, %s21, %s22
    %p26 = pneg %p20
    %p27 = scmp.eq.s32.totalorder %s11, 1
    %p28 = por %p26, %p27
    %p29 = scmp.ne.s32.totalorder %s21, %s24
    %p30 = scmp.eq.s32.totalorder %s11, 0
    %p31 = por %p29, %p30
    %p32 = scmp.ne.s32.totalorder %s21, %s24
    %p33 = scmp.eq.s32.totalorder %s16, 1
    %p34 = por %p32, %p33
    %p35 = scmp.ne.s32.totalorder %s24, %s25
    %p36 = scmp.eq.s32.totalorder %s16, 0
    %p37 = por %p35, %p36
    %p38 = scmp.ne.s32.totalorder %s24, %s25
    %p39 = scmp.eq.s32.totalorder %s17, 1
    %p40 = por %p38, %p39
    %p42 = scmp.ne.s32.totalorder %s25, %s41
    %p43 = scmp.eq.s32.totalorder %s17, 0
    %p44 = por %p42, %p43
    %s45 = ssub.s32 %s11, %s18
    %p46 = scmp.eq.s32.totalorder %s45, 0
    %s48 = sadd.s32 %s47, 1
    %s49 = scalar_select %p46, %s47, %s48
    %p52 = pneg %p46
    %p53 = scmp.eq.s32.totalorder %s11, 1
    %p54 = por %p52, %p53
    %p55 = scmp.ne.s32.totalorder %s47, %s50
    %p56 = scmp.eq.s32.totalorder %s11, 0
    %p57 = por %p55, %p56
    %p58 = scmp.ne.s32.totalorder %s47, %s50
    %p59 = scmp.eq.s32.totalorder %s16, 1
    %p60 = por %p58, %p59
    %p61 = scmp.ne.s32.totalorder %s50, %s51
    %p62 = scmp.eq.s32.totalorder %s16, 0
    %p63 = por %p61, %p62
    %p64 = scmp.ne.s32.totalorder %s50, %s51
    %p65 = scmp.eq.s32.totalorder %s17, 1
    %p66 = por %p64, %p65
    %p68 = scmp.ne.s32.totalorder %s51, %s67
    %p69 = scmp.eq.s32.totalorder %s17, 0
    %p70 = por %p68, %p69
    %s72 = sadd.s32 %s71, 1
    %p75 = scmp.eq.s32.totalorder %s11, 1
    %p76 = scmp.ne.s32.totalorder %s71, %s73
    %p77 = scmp.eq.s32.totalorder %s11, 0
    %p78 = por %p76, %p77
    %p79 = scmp.ne.s32.totalorder %s71, %s73
    %p80 = scmp.eq.s32.totalorder %s16, 1
    %p81 = por %p79, %p80
    %p82 = scmp.ne.s32.totalorder %s73, %s74
    %p83 = scmp.eq.s32.totalorder %s16, 0
    %p84 = por %p82, %p83
    %p85 = scmp.ne.s32.totalorder %s73, %s74
    %p86 = scmp.eq.s32.totalorder %s17, 1
    %p87 = por %p85, %p86
    %p89 = scmp.ne.s32.totalorder %s74, %s88
    %p90 = scmp.eq.s32.totalorder %s17, 0
    %p91 = por %p89, %p90
    %s93 = sadd.s32 %s92, 1
    %p96 = scmp.eq.s32.totalorder %s11, 1
    %p97 = scmp.ne.s32.totalorder %s92, %s94
    %p98 = scmp.eq.s32.totalorder %s11, 0
    %p99 = por %p97, %p98
    %p100 = scmp.ne.s32.totalorder %s92, %s94
    %p101 = scmp.eq.s32.totalorder %s16, 1
    %p102 = por %p100, %p101
    %p103 = scmp.ne.s32.totalorder %s94, %s95
    %p104 = scmp.eq.s32.totalorder %s16, 0
    %p105 = por %p103, %p104
    %p106 = scmp.ne.s32.totalorder %s94, %s95
    %p107 = scmp.eq.s32.totalorder %s17, 1
    %p108 = por %p106, %p107
    %p110 = scmp.ne.s32.totalorder %s95, %s109
    %p111 = scmp.eq.s32.totalorder %s17, 0
    %p112 = por %p110, %p111
    %s114 = sadd.s32 %s113, 1
    %p117 = scmp.eq.s32.totalorder %s11, 1
    %p118 = scmp.ne.s32.totalorder %s113, %s115
    %p119 = scmp.eq.s32.totalorder %s11, 0
    %p120 = por %p118, %p119
    %p121 = scmp.ne.s32.totalorder %s113, %s115
    %p122 = scmp.eq.s32.totalorder %s16, 1
    %p123 = por %p121, %p122
    %p124 = scmp.ne.s32.totalorder %s115, %s116
    %p125 = scmp.eq.s32.totalorder %s16, 0
    %p126 = por %p124, %p125
    %p127 = scmp.ne.s32.totalorder %s115, %s116
    %p128 = scmp.eq.s32.totalorder %s17, 1
    %p129 = por %p127, %p128
    %p131 = scmp.ne.s32.totalorder %s116, %s130
    %p132 = scmp.eq.s32.totalorder %s17, 0
    %p133 = por %p131, %p132
    %s134 = ssub.s32 %s11, %s18
    %p135 = scmp.eq.s32.totalorder %s134, 0
    %s137 = sadd.s32 %s136, 1
    %s138 = scalar_select %p135, %s136, %s137
    %p141 = pneg %p135
    %p142 = scmp.eq.s32.totalorder %s11, 1
    %p143 = por %p141, %p142
    %p144 = scmp.ne.s32.totalorder %s136, %s139
    %p145 = scmp.eq.s32.totalorder %s11, 0
    %p146 = por %p144, %p145
    %p147 = scmp.ne.s32.totalorder %s136, %s139
    %p148 = scmp.eq.s32.totalorder %s16, 1
    %p149 = por %p147, %p148
    %p150 = scmp.ne.s32.totalorder %s139, %s140
    %p151 = scmp.eq.s32.totalorder %s16, 0
    %p152 = por %p150, %p151
    %p153 = scmp.ne.s32.totalorder %s139, %s140
    %p154 = scmp.eq.s32.totalorder %s17, 1
    %p155 = por %p153, %p154
    %p157 = scmp.ne.s32.totalorder %s140, %s156
    %p158 = scmp.eq.s32.totalorder %s17, 0
    %p159 = por %p157, %p158
    %p160 = scmp.le.s32.totalorder 1, %s11
    %p161 = scmp.lt.s32.totalorder %s11, 3
    %p162 = pnand %p160, %p161
    %p163 = pneg %p162
    // Predicated region
    $region9: #{_model_forward.1} parent=5 // pred_check
      _
    $region10: #{_model_forward.1} parent=5 // pred_check_branch
      %165 = sbr.rel (%p162) target = $region12
    $region11: #{_model_forward.1} parent=5 // pred_region
      %s166 = ssub.s32 %s11, 1
      // Predicated region
      $region13: #{_model_forward.1} parent=11 // pred_check
        %p167 = pneg %p84
      $region14: #{_model_forward.1} parent=11 // pred_check_branch
        %169 = sbr.rel (%p167) target = $region16
      $region15: #{_model_forward.1} parent=11 // pred_region
        _
      $region16: #{_model_forward.1} parent=11 // pred_fallthru
        _
      // Predicated region
      $region17: #{_model_forward.1} parent=11 // pred_check
        %p170 = pneg %p105
      $region18: #{_model_forward.1} parent=11 // pred_check_branch
        %172 = sbr.rel (%p170) target = $region20
      $region19: #{_model_forward.1} parent=11 // pred_region
        _
      $region20: #{_model_forward.1} parent=11 // pred_fallthru
        _
      // Predicated region
      $region21: #{_model_forward.1} parent=11 // pred_check
        %p173 = pneg %p126
      $region22: #{_model_forward.1} parent=11 // pred_check_branch
        %175 = sbr.rel (%p173) target = $region24
      $region23: #{_model_forward.1} parent=11 // pred_region
        _
      $region24: #{_model_forward.1} parent=11 // pred_fallthru
        _
    $region12: #{_model_forward.1} parent=5 // pred_fallthru
      _
    %p176 = scmp.lt.s32.totalorder %s11, 2
    // Predicated region
    $region25: #{_model_forward.1} parent=5 // pred_check
      %p177 = pneg %p176
    $region26: #{_model_forward.1} parent=5 // pred_check_branch
      %179 = sbr.rel (%p177) target = $region28
    $region27: #{_model_forward.1} parent=5 // pred_region
      // Predicated region
      $region29: #{_model_forward.1} parent=27 // pred_check
        %p180 = pneg %p31
      $region30: #{_model_forward.1} parent=27 // pred_check_branch
        %182 = sbr.rel (%p180) target = $region32
      $region31: #{_model_forward.1} parent=27 // pred_region
        %p183 = scmp.lt.s32.totalorder %s11, 1
        %s184 = scalar_select %p183, %s11, 1
        %s185 = smul.addr %s184, 8
        %s186 = scalar_lea.vmem %s0, %s185
      $region32: #{_model_forward.1} parent=27 // pred_fallthru
        _
      // Predicated region
      $region33: #{_model_forward.1} parent=27 // pred_check
        %p187 = pneg %p57
      $region34: #{_model_forward.1} parent=27 // pred_check_branch
        %189 = sbr.rel (%p187) target = $region36
      $region35: #{_model_forward.1} parent=27 // pred_region
        %p190 = scmp.lt.s32.totalorder %s11, 1
        %s191 = scalar_select %p190, %s11, 1
        %s192 = smul.addr %s191, 8
        %s193 = scalar_lea.vmem %s1, %s192
      $region36: #{_model_forward.1} parent=27 // pred_fallthru
        _
    $region28: #{_model_forward.1} parent=5 // pred_fallthru
      _
    %p194 = scmp.le.s32.totalorder 1, %s11
    %p195 = scmp.lt.s32.totalorder %s11, 3
    %p196 = pnand %p194, %p195
    %p197 = pneg %p196
    // Predicated region
    $region37: #{_model_forward.1} parent=5 // pred_check
      _
    $region38: #{_model_forward.1} parent=5 // pred_check_branch
      %199 = sbr.rel (%p196) target = $region40
    $region39: #{_model_forward.1} parent=5 // pred_region
      %s200 = ssub.s32 %s11, 1
      %p201 = scmp.lt.s32.totalorder %s16, 1
      %s202 = scalar_select %p201, %s16, 1
      %s203 = smul.addr %s202, 8
      %s204 = scalar_lea.vmem %s0, %s203
      %p205 = pneg %p37
      %p206 = pneg %p34
      %p207 = scmp.lt.s32.totalorder %s16, 1
      %s208 = scalar_select %p207, %s16, 1
      %s209 = smul.addr %s208, 8
      %s210 = scalar_lea.vmem %s1, %s209
      %p211 = pneg %p63
      %p212 = pneg %p60
      %p213 = pneg %p84
      %p214 = pneg %p81
      %p215 = pneg %p105
      %p216 = pneg %p102
      %p217 = pneg %p126
      %p218 = pneg %p123
      %p219 = pneg %p152
      %p220 = pneg %p149
      %p221 = scmp.lt.s32.totalorder %s16, 1
      %s222 = scalar_select %p221, %s16, 1
      %s223 = smul.addr %s222, 2
      %s224 = scalar_lea.vmem %s5, %s223
      %p225 = scmp.lt.s32.totalorder %s16, 1
      %s226 = scalar_select %p225, %s16, 1
      %s227 = smul.addr %s226, 8
      %s228 = scalar_lea.vmem %s0, %s227
      %p229 = scmp.lt.s32.totalorder %s16, 1
      %s230 = scalar_select %p229, %s16, 1
      %s231 = smul.addr %s230, 8
      %s232 = scalar_lea.vmem %s1, %s231
      %p233 = scmp.lt.s32.totalorder %s16, 1
      %s234 = scalar_select %p233, %s16, 1
      %s235 = smul.addr %s234, 2
      %s236 = scalar_lea.vmem %s5, %s235
      %v238 = vld [vmem:[%s228] sm:$0xff]
      %v239 = vld [vmem:[%s232] sm:$0xff]
      %vm240 = vcmask 261120
      %v241 = vsel %vm240, %v238, 0.0
      %242 = vadd.xlane.f32.xlu0 %v241
      %v243 = vpop.xlane.xlu0 %242
      %v244 = vrcp.pop 32.0
      %v245 = vmul.f32 %v243, %v244
      %v246 = vsub.f32 %v238, %v245
      %v247 = vmul.f32 %v246, %v246
      %v248 = vsel %vm240, %v247, 0.0
      %249 = vadd.xlane.f32.xlu0 %v248
      %v250 = vpop.xlane.xlu0 %249
      %v251 = vmul.f32 %v250, %v244
      %v252 = vadd.f32 %v251, 1e-05
      %v253 = vrsqrt.pop %v252
      %v254 = vmul.f32 %v246, %v253
      %v255 = vld [vmem:[%s4] ss:$0 sm:$0xff]
      %v256 = vmul.f32 %v254, %v255
      %v257 = vld [vmem:[%s4 + $0x1] ss:$0 sm:$0xff]
      %v258 = vadd.f32 %v256, %v257
      %v259 = vsel %vm240, %v239, 0.0
      %260 = vadd.xlane.f32.xlu0 %v259
      %v261 = vpop.xlane.xlu0 %260
      %v262 = vmul.f32 %v261, %v244
      %v263 = vsub.f32 %v239, %v262
      %v264 = vmul.f32 %v263, %v263
      %v265 = vsel %vm240, %v264, 0.0
      %266 = vadd.xlane.f32.xlu0 %v265
      %v267 = vpop.xlane.xlu0 %266
      %v268 = vmul.f32 %v267, %v244
      %v269 = vadd.f32 %v268, 1e-05
      %v270 = vrsqrt.pop %v269
      %v271 = vmul.f32 %v263, %v270
      %v272 = vld [vmem:[%s4 + $0x2] ss:$0 sm:$0xff]
      %v273 = vmul.f32 %v271, %v272
      %v274 = vld [vmem:[%s4 + $0x3] ss:$0 sm:$0xff]
      %v275 = vadd.f32 %v273, %v274
      %v276 = vpack.c.bf16 %v275, %v258
      %v277 = vld [vmem:[%s2] sm:$0xf]
      %v278 = vld [vmem:[%s2 + $0x4] sm:$0xf]
      %v279 = vld [vmem:[%s2 + $0x8] sm:$0xf]
      %v280 = vld [vmem:[%s2 + $0xc] sm:$0xf]
      %v285 = vunpack.c.l.b16 %v277
      %v286 = vunpack.c.l.b16 %v278
      %v287 = vunpack.c.l.b16 %v279
      %v288 = vunpack.c.l.b16 %v280
      %v289 = vpack.c.b16 %v286, %v285
      %v290 = vpack.c.b16 %v288, %v287
      %v294 = vsel %vm240, %v276, 0
      %296 = vmatprep.subr.bf16.mxu0 0
      %297 = vmatpush1.bf16.msra.mxu0 %v289
      %298 = vmatprep.subr.bf16.mxu0 0
      %299 = vmatpush1.bf16.msra.mxu0 %v290
      %300 = vmatprep.subr.bf16.mxu0 0
      %301 = vmatpush1.bf16.msra.mxu0 0
      %302 = vmatprep.subr.bf16.mxu0 0
      %303 = vmatpush1.bf16.msra.mxu0 0
      %304 = vmatprep.subr.bf16.mxu0 0
      %305 = vmatpush1.bf16.msra.mxu0 0
      %306 = vmatprep.subr.bf16.mxu0 0
      %307 = vmatpush1.bf16.msra.mxu0 0
      %308 = vmatprep.subr.bf16.mxu0 0
      %309 = vmatpush1.bf16.msra.mxu0 0
      %310 = vmatprep.subr.bf16.mxu0 0
      %311 = vmatpush1.bf16.msra.mxu0 0
      %312 = vmatprep.subr.bf16.mxu0 0
      %313 = vmatpush1.bf16.msra.mxu0 0
      %314 = vmatprep.subr.bf16.mxu0 0
      %315 = vmatpush1.bf16.msra.mxu0 0
      %316 = vmatprep.subr.bf16.mxu0 0
      %317 = vmatpush1.bf16.msra.mxu0 0
      %318 = vmatprep.subr.bf16.mxu0 0
      %319 = vmatpush1.bf16.msra.mxu0 0
      %320 = vmatprep.subr.bf16.mxu0 0
      %321 = vmatpush1.bf16.msra.mxu0 0
      %322 = vmatprep.subr.bf16.mxu0 0
      %323 = vmatpush1.bf16.msra.mxu0 0
      %324 = vmatprep.subr.bf16.mxu0 0
      %325 = vmatpush1.bf16.msra.mxu0 0
      %326 = vmatprep.subr.bf16.mxu0 0
      %327 = vmatpush1.bf16.msra.mxu0 0
      %328 = vmatprep.mubr.bf16.mxu0 0
      %329 = vmatmul.mubr.bf16.gmra.mrb[0].mxu0 %v294
      %v330 = vpop.f32.mrb[0].mxu0
      %v331 = vadd.f32 0.0, %v330
      %v332 = vpop.f32.mrb[0].mxu0
      %v333 = vpop.f32.mrb[0].mxu0
      %v334 = vadd.f32 0.0, %v333
      %v335 = vpop.f32.mrb[0].mxu0
      %336 = vdwg.mxu0
      %338 = vrot.lane.b32.xlu0 %v331, 64
      %v339 = vpop.permute.xlu0 %338
      %341 = vrot.lane.b32.xlu0 %v334, 56
      %v342 = vpop.permute.xlu0 %341
      %vm343 = vcmask 64512
      %v344 = vsel %vm343, %v339, 0
      %v346 = vsel %vm343, %v342, 0
      %348 = vmatprep.subr.mxu0 0.0
      %349 = vmatpush1.xpose.msra.mxu0 %v346
      %350 = vmatprep.subr.mxu0 0.0
      %351 = vmatpush1.xpose.msra.mxu0 0.0
      %352 = vmatprep.subr.mxu0 0.0
      %353 = vmatpush1.xpose.msra.mxu0 0.0
      %354 = vmatprep.subr.mxu0 0.0
      %355 = vmatpush1.xpose.msra.mxu0 0.0
      %356 = vmatprep.subr.mxu0 0.0
      %357 = vmatpush1.xpose.msra.mxu0 0.0
      %358 = vmatprep.subr.mxu0 0.0
      %359 = vmatpush1.xpose.msra.mxu0 0.0
      %360 = vmatprep.subr.mxu0 0.0
      %361 = vmatpush1.xpose.msra.mxu0 0.0
      %362 = vmatprep.subr.mxu0 0.0
      %363 = vmatpush1.xpose.msra.mxu0 0.0
      %364 = vmatprep.subr.mxu0 0.0
      %365 = vmatpush1.xpose.msra.mxu0 0.0
      %366 = vmatprep.subr.mxu0 0.0
      %367 = vmatpush1.xpose.msra.mxu0 0.0
      %368 = vmatprep.subr.mxu0 0.0
      %369 = vmatpush1.xpose.msra.mxu0 0.0
      %370 = vmatprep.subr.mxu0 0.0
      %371 = vmatpush1.xpose.msra.mxu0 0.0
      %372 = vmatprep.subr.mxu0 0.0
      %373 = vmatpush1.xpose.msra.mxu0 0.0
      %374 = vmatprep.subr.mxu0 0.0
      %375 = vmatpush1.xpose.msra.mxu0 0.0
      %376 = vmatprep.subr.mxu0 0.0
      %377 = vmatpush1.xpose.msra.mxu0 0.0
      %378 = vmatprep.subr.mxu0 0.0
      %379 = vmatpush1.xpose.msra.mxu0 0.0
      %380 = vmatprep.subr.mxu0 0.0
      %381 = vmatpush1.xpose.msra.mxu0 0.0
      %382 = vmatprep.subr.mxu0 0.0
      %383 = vmatpush1.xpose.msra.mxu0 0.0
      %384 = vmatprep.subr.mxu0 0.0
      %385 = vmatpush1.xpose.msra.mxu0 0.0
      %386 = vmatprep.subr.mxu0 0.0
      %387 = vmatpush1.xpose.msra.mxu0 0.0
      %388 = vmatprep.subr.mxu0 0.0
      %389 = vmatpush1.xpose.msra.mxu0 0.0
      %390 = vmatprep.subr.mxu0 0.0
      %391 = vmatpush1.xpose.msra.mxu0 0.0
      %392 = vmatprep.subr.mxu0 0.0
      %393 = vmatpush1.xpose.msra.mxu0 0.0
      %394 = vmatprep.subr.mxu0 0.0
      %395 = vmatpush1.xpose.msra.mxu0 0.0
      %396 = vmatprep.subr.mxu0 0.0
      %397 = vmatpush1.xpose.msra.mxu0 0.0
      %398 = vmatprep.subr.mxu0 0.0
      %399 = vmatpush1.xpose.msra.mxu0 0.0
      %400 = vmatprep.subr.mxu0 0.0
      %401 = vmatpush1.xpose.msra.mxu0 0.0
      %402 = vmatprep.subr.mxu0 0.0
      %403 = vmatpush1.xpose.msra.mxu0 0.0
      %404 = vmatprep.subr.mxu0 0.0
      %405 = vmatpush1.xpose.msra.mxu0 0.0
      %406 = vmatprep.subr.mxu0 0.0
      %407 = vmatpush1.xpose.msra.mxu0 0.0
      %408 = vmatprep.subr.mxu0 0.0
      %409 = vmatpush1.xpose.msra.mxu0 0.0
      %410 = vmatprep.subr.mxu0 0.0
      %411 = vmatpush1.xpose.msra.mxu0 0.0
      %412 = vmatprep.mubr.f32.mxu0 0.0
      %413 = vmatmul.mubr.f32.gmra.mrb[0].mxu0 %v344
      %v414 = vpop.f32.mrb[0].mxu0
      %v415 = vadd.f32 0.0, %v414
      %v416 = vpop.f32.mrb[0].mxu0
      %417 = vdwg.mxu0
      %v418 = vsel %vm343, %v415, -inf
      %419 = vmax.xlane.f32.xlu0 %v418
      %v420 = vpop.xlane.xlu0 %419
      %v421 = vsub.f32 %v415, %v420
      %v422 = vmul.f32 %v421, 1.442695
      %v423 = vpow.pop %v422
      %v424 = vsel %vm343, %v423, 0.0
      %425 = vadd.xlane.f32.xlu0 %v424
      %v426 = vpop.xlane.xlu0 %425
      %v427 = vrcp.pop %v426
      %v428 = vmul.f32 %v423, %v427
      %v430 = vsel %vm343, %v428, 0
      %432 = vmatprep.subr.mxu0 0.0
      %433 = vmatpush1.msra.mxu0 %v334
      %434 = vmatprep.subr.mxu0 0.0
      %435 = vmatpush1.msra.mxu0 0.0
      %436 = vmatprep.subr.mxu0 0.0
      %437 = vmatpush1.msra.mxu0 0.0
      %438 = vmatprep.subr.mxu0 0.0
      %439 = vmatpush1.msra.mxu0 0.0
      %440 = vmatprep.subr.mxu0 0.0
      %441 = vmatpush1.msra.mxu0 0.0
      %442 = vmatprep.subr.mxu0 0.0
      %443 = vmatpush1.msra.mxu0 0.0
      %444 = vmatprep.subr.mxu0 0.0
      %445 = vmatpush1.msra.mxu0 0.0
      %446 = vmatprep.subr.mxu0 0.0
      %447 = vmatpush1.msra.mxu0 0.0
      %448 = vmatprep.subr.mxu0 0.0
      %449 = vmatpush1.msra.mxu0 0.0
      %450 = vmatprep.subr.mxu0 0.0
      %451 = vmatpush1.msra.mxu0 0.0
      %452 = vmatprep.subr.mxu0 0.0
      %453 = vmatpush1.msra.mxu0 0.0
      %454 = vmatprep.subr.mxu0 0.0
      %455 = vmatpush1.msra.mxu0 0.0
      %456 = vmatprep.subr.mxu0 0.0
      %457 = vmatpush1.msra.mxu0 0.0
      %458 = vmatprep.subr.mxu0 0.0
      %459 = vmatpush1.msra.mxu0 0.0
      %460 = vmatprep.subr.mxu0 0.0
      %461 = vmatpush1.msra.mxu0 0.0
      %462 = vmatprep.subr.mxu0 0.0
      %463 = vmatpush1.msra.mxu0 0.0
      %464 = vmatprep.subr.mxu0 0.0
      %465 = vmatpush1.msra.mxu0 0.0
      %466 = vmatprep.subr.mxu0 0.0
      %467 = vmatpush1.msra.mxu0 0.0
      %468 = vmatprep.subr.mxu0 0.0
      %469 = vmatpush1.msra.mxu0 0.0
      %470 = vmatprep.subr.mxu0 0.0
      %471 = vmatpush1.msra.mxu0 0.0
      %472 = vmatprep.subr.mxu0 0.0
      %473 = vmatpush1.msra.mxu0 0.0
      %474 = vmatprep.subr.mxu0 0.0
      %475 = vmatpush1.msra.mxu0 0.0
      %476 = vmatprep.subr.mxu0 0.0
      %477 = vmatpush1.msra.mxu0 0.0
      %478 = vmatprep.subr.mxu0 0.0
      %479 = vmatpush1.msra.mxu0 0.0
      %480 = vmatprep.subr.mxu0 0.0
      %481 = vmatpush1.msra.mxu0 0.0
      %482 = vmatprep.subr.mxu0 0.0
      %483 = vmatpush1.msra.mxu0 0.0
      %484 = vmatprep.subr.mxu0 0.0
      %485 = vmatpush1.msra.mxu0 0.0
      %486 = vmatprep.subr.mxu0 0.0
      %487 = vmatpush1.msra.mxu0 0.0
      %488 = vmatprep.subr.mxu0 0.0
      %489 = vmatpush1.msra.mxu0 0.0
      %490 = vmatprep.subr.mxu0 0.0
      %491 = vmatpush1.msra.mxu0 0.0
      %492 = vmatprep.subr.mxu0 0.0
      %493 = vmatpush1.msra.mxu0 0.0
      %494 = vmatprep.subr.mxu0 0.0
      %495 = vmatpush1.msra.mxu0 0.0
      %496 = vmatprep.mubr.f32.mxu0 0.0
      %497 = vmatmul.mubr.f32.gmra.mrb[0].mxu0 %v430
      %v498 = vpop.f32.mrb[0].mxu0
      %v499 = vadd.f32 0.0, %v498
      %v500 = vpop.f32.mrb[0].mxu0
      %501 = vdwg.mxu0
      %v502 = vadd.f32 %v258, %v499
      %v503 = vsel %vm240, %v502, 0.0
      %504 = vadd.xlane.f32.xlu0 %v503
      %v505 = vpop.xlane.xlu0 %504
      %v506 = vmul.f32 %v505, %v244
      %v507 = vsub.f32 %v502, %v506
      %v508 = vmul.f32 %v507, %v507
      %v509 = vsel %vm240, %v508, 0.0
      %510 = vadd.xlane.f32.xlu0 %v509
      %v511 = vpop.xlane.xlu0 %510
      %v512 = vmul.f32 %v511, %v244
      %v513 = vadd.f32 %v512, 1e-05
      %v514 = vrsqrt.pop %v513
      %v515 = vmul.f32 %v507, %v514
      %v516 = vld [vmem:[%s4 + $0x4] ss:$0 sm:$0xff]
      %v517 = vmul.f32 %v515, %v516
      %v518 = vld [vmem:[%s4 + $0x5] ss:$0 sm:$0xff]
      %v519 = vadd.f32 %v517, %v518
      %v520 = vpack.c.bf16 %v519, %v519
      %v521 = vld [vmem:[%s2 + $0x10] sm:$0xf]
      %v522 = vld [vmem:[%s2 + $0x14] sm:$0xf]
      %v523 = vld [vmem:[%s2 + $0x18] sm:$0xf]
      %v524 = vld [vmem:[%s2 + $0x1c] sm:$0xf]
      %v525 = vld [vmem:[%s4 + $0x6] ss:$0 sm:$0xff]
      %v530 = vunpack.c.l.b16 %v521
      %v531 = vunpack.c.l.b16 %v522
      %v532 = vunpack.c.l.b16 %v523
      %v533 = vunpack.c.l.b16 %v524
      %v534 = vpack.c.b16 %v531, %v530
      %v535 = vpack.c.b16 %v533, %v532
      %v539 = vsel %vm240, %v520, 0
      %541 = vmatprep.subr.bf16.mxu0 0
      %542 = vmatpush1.bf16.msra.mxu0 %v534
      %543 = vmatprep.subr.bf16.mxu0 0
      %544 = vmatpush1.bf16.msra.mxu0 %v535
      %545 = vmatprep.subr.bf16.mxu0 0
      %546 = vmatpush1.bf16.msra.mxu0 0
      %547 = vmatprep.subr.bf16.mxu0 0
      %548 = vmatpush1.bf16.msra.mxu0 0
      %549 = vmatprep.subr.bf16.mxu0 0
      %550 = vmatpush1.bf16.msra.mxu0 0
      %551 = vmatprep.subr.bf16.mxu0 0
      %552 = vmatpush1.bf16.msra.mxu0 0
      %553 = vmatprep.subr.bf16.mxu0 0
      %554 = vmatpush1.bf16.msra.mxu0 0
      %555 = vmatprep.subr.bf16.mxu0 0
      %556 = vmatpush1.bf16.msra.mxu0 0
      %557 = vmatprep.subr.bf16.mxu0 0
      %558 = vmatpush1.bf16.msra.mxu0 0
      %559 = vmatprep.subr.bf16.mxu0 0
      %560 = vmatpush1.bf16.msra.mxu0 0
      %561 = vmatprep.subr.bf16.mxu0 0
      %562 = vmatpush1.bf16.msra.mxu0 0
      %563 = vmatprep.subr.bf16.mxu0 0
      %564 = vmatpush1.bf16.msra.mxu0 0
      %565 = vmatprep.subr.bf16.mxu0 0
      %566 = vmatpush1.bf16.msra.mxu0 0
      %567 = vmatprep.subr.bf16.mxu0 0
      %568 = vmatpush1.bf16.msra.mxu0 0
      %569 = vmatprep.subr.bf16.mxu0 0
      %570 = vmatpush1.bf16.msra.mxu0 0
      %571 = vmatprep.subr.bf16.mxu0 0
      %572 = vmatpush1.bf16.msra.mxu0 0
      %573 = vmatprep.mubr.bf16.mxu0 0
      %574 = vmatmul.mubr.bf16.gmra.mrb[0].mxu0 %v539
      %v575 = vpop.f32.mrb[0].mxu0
      %v576 = vadd.f32 %v525, %v575
      %v577 = vpop.f32.mrb[0].mxu0
      %v578 = vpop.f32.mrb[0].mxu0
      %v579 = vpop.f32.mrb[0].mxu0
      %580 = vdwg.mxu0
      %v581 = vmul.f32 %v576, 0.5
      %v582 = vmul.f32 %v576, 0.044715
      %v583 = vmul.f32 %v582, %v576
      %v584 = vmul.f32 %v583, %v576
      %v585 = vadd.f32 %v576, %v584
      %v586 = vmul.f32 %v585, 0.7978846
      %v587 = vtanh.pop %v586
      %v588 = vadd.f32 %v587, 1.0
      %v589 = vmul.f32 %v581, %v588
      %v590 = vpack.c.bf16 %v589, %v589
      %v591 = vld [vmem:[%s2 + $0x20] sm:$0xf]
      %v592 = vld [vmem:[%s2 + $0x24] sm:$0xf]
      %v593 = vld [vmem:[%s2 + $0x28] sm:$0xf]
      %v594 = vld [vmem:[%s2 + $0x2c] sm:$0xf]
      %v595 = vld [vmem:[%s2 + $0x30] sm:$0xf]
      %v596 = vld [vmem:[%s2 + $0x34] sm:$0xf]
      %v597 = vld [vmem:[%s2 + $0x38] sm:$0xf]
      %v598 = vld [vmem:[%s2 + $0x3c] sm:$0xf]
      %v607 = vunpack.c.l.b16 %v591
      %v608 = vunpack.c.l.b16 %v592
      %v609 = vunpack.c.l.b16 %v593
      %v610 = vunpack.c.l.b16 %v594
      %v611 = vunpack.c.l.b16 %v595
      %v612 = vunpack.c.l.b16 %v596
      %v613 = vunpack.c.l.b16 %v597
      %v614 = vunpack.c.l.b16 %v598
      %v615 = vpack.c.b16 %v608, %v607
      %v616 = vpack.c.b16 %v610, %v609
      %v617 = vpack.c.b16 %v612, %v611
      %v618 = vpack.c.b16 %v614, %v613
      %vm623 = vcmask 523264
      %v625 = vsel %vm623, %v590, 0
      %627 = vmatprep.subr.bf16.mxu0 0
      %628 = vmatpush1.bf16.msra.mxu0 %v615
      %629 = vmatprep.subr.bf16.mxu0 0
      %630 = vmatpush1.bf16.msra.mxu0 %v616
      %631 = vmatprep.subr.bf16.mxu0 0
      %632 = vmatpush1.bf16.msra.mxu0 %v617
      %633 = vmatprep.subr.bf16.mxu0 0
      %634 = vmatpush1.bf16.msra.mxu0 %v618
      %635 = vmatprep.subr.bf16.mxu0 0
      %636 = vmatpush1.bf16.msra.mxu0 0
      %637 = vmatprep.subr.bf16.mxu0 0
      %638 = vmatpush1.bf16.msra.mxu0 0
      %639 = vmatprep.subr.bf16.mxu0 0
      %640 = vmatpush1.bf16.msra.mxu0 0
      %641 = vmatprep.subr.bf16.mxu0 0
      %642 = vmatpush1.bf16.msra.mxu0 0
      %643 = vmatprep.subr.bf16.mxu0 0
      %644 = vmatpush1.bf16.msra.mxu0 0
      %645 = vmatprep.subr.bf16.mxu0 0
      %646 = vmatpush1.bf16.msra.mxu0 0
      %647 = vmatprep.subr.bf16.mxu0 0
      %648 = vmatpush1.bf16.msra.mxu0 0
      %649 = vmatprep.subr.bf16.mxu0 0
      %650 = vmatpush1.bf16.msra.mxu0 0
      %651 = vmatprep.subr.bf16.mxu0 0
      %652 = vmatpush1.bf16.msra.mxu0 0
      %653 = vmatprep.subr.bf16.mxu0 0
      %654 = vmatpush1.bf16.msra.mxu0 0
      %655 = vmatprep.subr.bf16.mxu0 0
      %656 = vmatpush1.bf16.msra.mxu0 0
      %657 = vmatprep.subr.bf16.mxu0 0
      %658 = vmatpush1.bf16.msra.mxu0 0
      %659 = vmatprep.mubr.bf16.mxu0 0
      %660 = vmatmul.mubr.bf16.gmra.mrb[0].mxu0 %v625
      %v661 = vpop.f32.mrb[0].mxu0
      %v662 = vadd.f32 0.0, %v661
      %v663 = vpop.f32.mrb[0].mxu0
      %v664 = vpop.f32.mrb[0].mxu0
      %v665 = vpop.f32.mrb[0].mxu0
      %666 = vdwg.mxu0
      %v667 = vadd.f32 %v502, %v662
      %v668 = vld [vmem:[%s4 + $0x7] ss:$0 sm:$0xff]
      %v669 = vadd.f32 %v667, %v668
      %670 = vrot.lane.b32.xlu0 %v334, 48
      %v671 = vpop.permute.xlu0 %670
      %672 = vrot.lane.b32.xlu0 %v331, 40
      %v673 = vpop.permute.xlu0 %672
      %v674 = vsel %vm343, %v671, 0
      %v676 = vsel %vm343, %v673, 0
      %678 = vmatprep.subr.mxu0 0.0
      %679 = vmatpush1.xpose.msra.mxu0 %v676
      %680 = vmatprep.subr.mxu0 0.0
      %681 = vmatpush1.xpose.msra.mxu0 0.0
      %682 = vmatprep.subr.mxu0 0.0
      %683 = vmatpush1.xpose.msra.mxu0 0.0
      %684 = vmatprep.subr.mxu0 0.0
      %685 = vmatpush1.xpose.msra.mxu0 0.0
      %686 = vmatprep.subr.mxu0 0.0
      %687 = vmatpush1.xpose.msra.mxu0 0.0
      %688 = vmatprep.subr.mxu0 0.0
      %689 = vmatpush1.xpose.msra.mxu0 0.0
      %690 = vmatprep.subr.mxu0 0.0
      %691 = vmatpush1.xpose.msra.mxu0 0.0
      %692 = vmatprep.subr.mxu0 0.0
      %693 = vmatpush1.xpose.msra.mxu0 0.0
      %694 = vmatprep.subr.mxu0 0.0
      %695 = vmatpush1.xpose.msra.mxu0 0.0
      %696 = vmatprep.subr.mxu0 0.0
      %697 = vmatpush1.xpose.msra.mxu0 0.0
      %698 = vmatprep.subr.mxu0 0.0
      %699 = vmatpush1.xpose.msra.mxu0 0.0
      %700 = vmatprep.subr.mxu0 0.0
      %701 = vmatpush1.xpose.msra.mxu0 0.0
      %702 = vmatprep.subr.mxu0 0.0
      %703 = vmatpush1.xpose.msra.mxu0 0.0
      %704 = vmatprep.subr.mxu0 0.0
      %705 = vmatpush1.xpose.msra.mxu0 0.0
      %706 = vmatprep.subr.mxu0 0.0
      %707 = vmatpush1.xpose.msra.mxu0 0.0
      %708 = vmatprep.subr.mxu0 0.0
      %709 = vmatpush1.xpose.msra.mxu0 0.0
      %710 = vmatprep.subr.mxu0 0.0
      %711 = vmatpush1.xpose.msra.mxu0 0.0
      %712 = vmatprep.subr.mxu0 0.0
      %713 = vmatpush1.xpose.msra.mxu0 0.0
      %714 = vmatprep.subr.mxu0 0.0
      %715 = vmatpush1.xpose.msra.mxu0 0.0
      %716 = vmatprep.subr.mxu0 0.0
      %717 = vmatpush1.xpose.msra.mxu0 0.0
      %718 = vmatprep.subr.mxu0 0.0
      %719 = vmatpush1.xpose.msra.mxu0 0.0
      %720 = vmatprep.subr.mxu0 0.0
      %721 = vmatpush1.xpose.msra.mxu0 0.0
      %722 = vmatprep.subr.mxu0 0.0
      %723 = vmatpush1.xpose.msra.mxu0 0.0
      %724 = vmatprep.subr.mxu0 0.0
      %725 = vmatpush1.xpose.msra.mxu0 0.0
      %726 = vmatprep.subr.mxu0 0.0
      %727 = vmatpush1.xpose.msra.mxu0 0.0
      %728 = vmatprep.subr.mxu0 0.0
      %729 = vmatpush1.xpose.msra.mxu0 0.0
      %730 = vmatprep.subr.mxu0 0.0
      %731 = vmatpush1.xpose.msra.mxu0 0.0
      %732 = vmatprep.subr.mxu0 0.0
      %733 = vmatpush1.xpose.msra.mxu0 0.0
      %734 = vmatprep.subr.mxu0 0.0
      %735 = vmatpush1.xpose.msra.mxu0 0.0
      %736 = vmatprep.subr.mxu0 0.0
      %737 = vmatpush1.xpose.msra.mxu0 0.0
      %738 = vmatprep.subr.mxu0 0.0
      %739 = vmatpush1.xpose.msra.mxu0 0.0
      %740 = vmatprep.subr.mxu0 0.0
      %741 = vmatpush1.xpose.msra.mxu0 0.0
      %742 = vmatprep.mubr.f32.mxu0 0.0
      %743 = vmatmul.mubr.f32.gmra.mrb[0].mxu0 %v674
      %v744 = vpop.f32.mrb[0].mxu0
      %v745 = vadd.f32 0.0, %v744
      %v746 = vpop.f32.mrb[0].mxu0
      %747 = vdwg.mxu0
      %v748 = vsel %vm343, %v745, -inf
      %749 = vmax.xlane.f32.xlu0 %v748
      %v750 = vpop.xlane.xlu0 %749
      %v751 = vsub.f32 %v745, %v750
      %v752 = vmul.f32 %v751, 1.442695
      %v753 = vpow.pop %v752
      %v754 = vsel %vm343, %v753, 0.0
      %755 = vadd.xlane.f32.xlu0 %v754
      %v756 = vpop.xlane.xlu0 %755
      %v757 = vrcp.pop %v756
      %v758 = vmul.f32 %v753, %v757
      %759 = vrot.lane.b32.xlu0 %v331, 96
      %v760 = vpop.permute.xlu0 %759
      %v763 = vsel %vm343, %v758, 0
      %765 = vmatprep.subr.mxu0 0.0
      %766 = vmatpush1.msra.mxu0 %v760
      %767 = vmatprep.subr.mxu0 0.0
      %768 = vmatpush1.msra.mxu0 0.0
      %769 = vmatprep.subr.mxu0 0.0
      %770 = vmatpush1.msra.mxu0 0.0
      %771 = vmatprep.subr.mxu0 0.0
      %772 = vmatpush1.msra.mxu0 0.0
      %773 = vmatprep.subr.mxu0 0.0
      %774 = vmatpush1.msra.mxu0 0.0
      %775 = vmatprep.subr.mxu0 0.0
      %776 = vmatpush1.msra.mxu0 0.0
      %777 = vmatprep.subr.mxu0 0.0
      %778 = vmatpush1.msra.mxu0 0.0
      %779 = vmatprep.subr.mxu0 0.0
      %780 = vmatpush1.msra.mxu0 0.0
      %781 = vmatprep.subr.mxu0 0.0
      %782 = vmatpush1.msra.mxu0 0.0
      %783 = vmatprep.subr.mxu0 0.0
      %784 = vmatpush1.msra.mxu0 0.0
      %785 = vmatprep.subr.mxu0 0.0
      %786 = vmatpush1.msra.mxu0 0.0
      %787 = vmatprep.subr.mxu0 0.0
      %788 = vmatpush1.msra.mxu0 0.0
      %789 = vmatprep.subr.mxu0 0.0
      %790 = vmatpush1.msra.mxu0 0.0
      %791 = vmatprep.subr.mxu0 0.0
      %792 = vmatpush1.msra.mxu0 0.0
      %793 = vmatprep.subr.mxu0 0.0
      %794 = vmatpush1.msra.mxu0 0.0
      %795 = vmatprep.subr.mxu0 0.0
      %796 = vmatpush1.msra.mxu0 0.0
      %797 = vmatprep.subr.mxu0 0.0
      %798 = vmatpush1.msra.mxu0 0.0
      %799 = vmatprep.subr.mxu0 0.0
      %800 = vmatpush1.msra.mxu0 0.0
      %801 = vmatprep.subr.mxu0 0.0
      %802 = vmatpush1.msra.mxu0 0.0
      %803 = vmatprep.subr.mxu0 0.0
      %804 = vmatpush1.msra.mxu0 0.0
      %805 = vmatprep.subr.mxu0 0.0
      %806 = vmatpush1.msra.mxu0 0.0
      %807 = vmatprep.subr.mxu0 0.0
      %808 = vmatpush1.msra.mxu0 0.0
      %809 = vmatprep.subr.mxu0 0.0
      %810 = vmatpush1.msra.mxu0 0.0
      %811 = vmatprep.subr.mxu0 0.0
      %812 = vmatpush1.msra.mxu0 0.0
      %813 = vmatprep.subr.mxu0 0.0
      %814 = vmatpush1.msra.mxu0 0.0
      %815 = vmatprep.subr.mxu0 0.0
      %816 = vmatpush1.msra.mxu0 0.0
      %817 = vmatprep.subr.mxu0 0.0
      %818 = vmatpush1.msra.mxu0 0.0
      %819 = vmatprep.subr.mxu0 0.0
      %820 = vmatpush1.msra.mxu0 0.0
      %821 = vmatprep.subr.mxu0 0.0
      %822 = vmatpush1.msra.mxu0 0.0
      %823 = vmatprep.subr.mxu0 0.0
      %824 = vmatpush1.msra.mxu0 0.0
      %825 = vmatprep.subr.mxu0 0.0
      %826 = vmatpush1.msra.mxu0 0.0
      %827 = vmatprep.subr.mxu0 0.0
      %828 = vmatpush1.msra.mxu0 0.0
      %829 = vmatprep.mubr.f32.mxu0 0.0
      %830 = vmatmul.mubr.f32.gmra.mrb[0].mxu0 %v763
      %v831 = vpop.f32.mrb[0].mxu0
      %v832 = vadd.f32 0.0, %v831
      %v833 = vpop.f32.mrb[0].mxu0
      %834 = vdwg.mxu0
      %v835 = vadd.f32 %v275, %v832
      %v836 = vsel %vm240, %v835, 0.0
      %837 = vadd.xlane.f32.xlu0 %v836
      %v838 = vpop.xlane.xlu0 %837
      %v839 = vmul.f32 %v838, %v244
      %v840 = vsub.f32 %v835, %v839
      %v841 = vmul.f32 %v840, %v840
      %v842 = vsel %vm240, %v841, 0.0
      %843 = vadd.xlane.f32.xlu0 %v842
      %v844 = vpop.xlane.xlu0 %843
      %v845 = vmul.f32 %v844, %v244
      %v846 = vadd.f32 %v845, 1e-05
      %v847 = vrsqrt.pop %v846
      %v848 = vmul.f32 %v840, %v847
      %v849 = vld [vmem:[%s4 + $0x10] ss:$0 sm:$0xff]
      %v850 = vmul.f32 %v848, %v849
      %v851 = vld [vmem:[%s4 + $0x11] ss:$0 sm:$0xff]
      %v852 = vadd.f32 %v850, %v851
      %v853 = vpack.c.bf16 %v852, %v852
      %v854 = vld [vmem:[%s2 + $0x40] sm:$0xf]
      %v855 = vld [vmem:[%s2 + $0x44] sm:$0xf]
      %v856 = vld [vmem:[%s2 + $0x48] sm:$0xf]
      %v857 = vld [vmem:[%s2 + $0x4c] sm:$0xf]
      %v858 = vld [vmem:[%s4 + $0x12] ss:$0 sm:$0xff]
      %v863 = vunpack.c.l.b16 %v854
      %v864 = vunpack.c.l.b16 %v855
      %v865 = vunpack.c.l.b16 %v856
      %v866 = vunpack.c.l.b16 %v857
      %v867 = vpack.c.b16 %v864, %v863
      %v868 = vpack.c.b16 %v866, %v865
      %v872 = vsel %vm240, %v853, 0
      %874 = vmatprep.subr.bf16.mxu0 0
      %875 = vmatpush1.bf16.msra.mxu0 %v867
      %876 = vmatprep.subr.bf16.mxu0 0
      %877 = vmatpush1.bf16.msra.mxu0 %v868
      %878 = vmatprep.subr.bf16.mxu0 0
      %879 = vmatpush1.bf16.msra.mxu0 0
      %880 = vmatprep.subr.bf16.mxu0 0
      %881 = vmatpush1.bf16.msra.mxu0 0
      %882 = vmatprep.subr.bf16.mxu0 0
      %883 = vmatpush1.bf16.msra.mxu0 0
      %884 = vmatprep.subr.bf16.mxu0 0
      %885 = vmatpush1.bf16.msra.mxu0 0
      %886 = vmatprep.subr.bf16.mxu0 0
      %887 = vmatpush1.bf16.msra.mxu0 0
      %888 = vmatprep.subr.bf16.mxu0 0
      %889 = vmatpush1.bf16.msra.mxu0 0
      %890 = vmatprep.subr.bf16.mxu0 0
      %891 = vmatpush1.bf16.msra.mxu0 0
      %892 = vmatprep.subr.bf16.mxu0 0
      %893 = vmatpush1.bf16.msra.mxu0 0
      %894 = vmatprep.subr.bf16.mxu0 0
      %895 = vmatpush1.bf16.msra.mxu0 0
      %896 = vmatprep.subr.bf16.mxu0 0
      %897 = vmatpush1.bf16.msra.mxu0 0
      %898 = vmatprep.subr.bf16.mxu0 0
      %899 = vmatpush1.bf16.msra.mxu0 0
      %900 = vmatprep.subr.bf16.mxu0 0
      %901 = vmatpush1.bf16.msra.mxu0 0
      %902 = vmatprep.subr.bf16.mxu0 0
      %903 = vmatpush1.bf16.msra.mxu0 0
      %904 = vmatprep.subr.bf16.mxu0 0
      %905 = vmatpush1.bf16.msra.mxu0 0
      %906 = vmatprep.mubr.bf16.mxu0 0
      %907 = vmatmul.mubr.bf16.gmra.mrb[0].mxu0 %v872
      %v908 = vpop.f32.mrb[0].mxu0
      %v909 = vadd.f32 %v858, %v908
      %v910 = vpop.f32.mrb[0].mxu0
      %v911 = vpop.f32.mrb[0].mxu0
      %v912 = vpop.f32.mrb[0].mxu0
      %913 = vdwg.mxu0
      %v914 = vmul.f32 %v909, 0.5
      %v915 = vmul.f32 %v909, 0.044715
      %v916 = vmul.f32 %v915, %v909
      %v917 = vmul.f32 %v916, %v909
      %v918 = vadd.f32 %v909, %v917
      %v919 = vmul.f32 %v918, 0.7978846
      %v920 = vtanh.pop %v919
      %v921 = vadd.f32 %v920, 1.0
      %v922 = vmul.f32 %v914, %v921
      %v923 = vpack.c.bf16 %v922, %v922
      %v924 = vld [vmem:[%s2 + $0x50] sm:$0xf]
      %v925 = vld [vmem:[%s2 + $0x54] sm:$0xf]
      %v926 = vld [vmem:[%s2 + $0x58] sm:$0xf]
      %v927 = vld [vmem:[%s2 + $0x5c] sm:$0xf]
      %v928 = vld [vmem:[%s2 + $0x60] sm:$0xf]
      %v929 = vld [vmem:[%s2 + $0x64] sm:$0xf]
      %v930 = vld [vmem:[%s2 + $0x68] sm:$0xf]
      %v931 = vld [vmem:[%s2 + $0x6c] sm:$0xf]
      %v940 = vunpack.c.l.b16 %v924
      %v941 = vunpack.c.l.b16 %v925
      %v942 = vunpack.c.l.b16 %v926
      %v943 = vunpack.c.l.b16 %v927
      %v944 = vunpack.c.l.b16 %v928
      %v945 = vunpack.c.l.b16 %v929
      %v946 = vunpack.c.l.b16 %v930
      %v947 = vunpack.c.l.b16 %v931
      %v948 = vpack.c.b16 %v941, %v940
      %v949 = vpack.c.b16 %v943, %v942
      %v950 = vpack.c.b16 %v945, %v944
      %v951 = vpack.c.b16 %v947, %v946
      %v957 = vsel %vm623, %v923, 0
      %959 = vmatprep.subr.bf16.mxu0 0
      %960 = vmatpush1.bf16.msra.mxu0 %v948
      %961 = vmatprep.subr.bf16.mxu0 0
      %962 = vmatpush1.bf16.msra.mxu0 %v949
      %963 = vmatprep.subr.bf16.mxu0 0
      %964 = vmatpush1.bf16.msra.mxu0 %v950
      %965 = vmatprep.subr.bf16.mxu0 0
      %966 = vmatpush1.bf16.msra.mxu0 %v951
      %967 = vmatprep.subr.bf16.mxu0 0
      %968 = vmatpush1.bf16.msra.mxu0 0
      %969 = vmatprep.subr.bf16.mxu0 0
      %970 = vmatpush1.bf16.msra.mxu0 0
      %971 = vmatprep.subr.bf16.mxu0 0
      %972 = vmatpush1.bf16.msra.mxu0 0
      %973 = vmatprep.subr.bf16.mxu0 0
      %974 = vmatpush1.bf16.msra.mxu0 0
      %975 = vmatprep.subr.bf16.mxu0 0
      %976 = vmatpush1.bf16.msra.mxu0 0
      %977 = vmatprep.subr.bf16.mxu0 0
      %978 = vmatpush1.bf16.msra.mxu0 0
      %979 = vmatprep.subr.bf16.mxu0 0
      %980 = vmatpush1.bf16.msra.mxu0 0
      %981 = vmatprep.subr.bf16.mxu0 0
      %982 = vmatpush1.bf16.msra.mxu0 0
      %983 = vmatprep.subr.bf16.mxu0 0
      %984 = vmatpush1.bf16.msra.mxu0 0
      %985 = vmatprep.subr.bf16.mxu0 0
      %986 = vmatpush1.bf16.msra.mxu0 0
      %987 = vmatprep.subr.bf16.mxu0 0
      %988 = vmatpush1.bf16.msra.mxu0 0
      %989 = vmatprep.subr.bf16.mxu0 0
      %990 = vmatpush1.bf16.msra.mxu0 0
      %991 = vmatprep.mubr.bf16.mxu0 0
      %992 = vmatmul.mubr.bf16.gmra.mrb[0].mxu0 %v957
      %v993 = vpop.f32.mrb[0].mxu0
      %v994 = vadd.f32 0.0, %v993
      %v995 = vpop.f32.mrb[0].mxu0
      %v996 = vpop.f32.mrb[0].mxu0
      %v997 = vpop.f32.mrb[0].mxu0
      %998 = vdwg.mxu0
      %v999 = vadd.f32 %v835, %v994
      %v1000 = vld [vmem:[%s4 + $0x13] ss:$0 sm:$0xff]
      %v1001 = vadd.f32 %v999, %v1000
      %v1002 = vsel %vm240, %v669, 0.0
      %1003 = vadd.xlane.f32.xlu0 %v1002
      %v1004 = vpop.xlane.xlu0 %1003
      %v1005 = vmul.f32 %v1004, %v244
      %v1006 = vsub.f32 %v669, %v1005
      %v1007 = vmul.f32 %v1006, %v1006
      %v1008 = vsel %vm240, %v1007, 0.0
      %1009 = vadd.xlane.f32.xlu0 %v1008
      %v1010 = vpop.xlane.xlu0 %1009
      %v1011 = vmul.f32 %v1010, %v244
      %v1012 = vadd.f32 %v1011, 1e-05
      %v1013 = vrsqrt.pop %v1012
      %v1014 = vmul.f32 %v1006, %v1013
      %v1015 = vld [vmem:[%s4 + $0x14] ss:$0 sm:$0xff]
      %v1016 = vmul.f32 %v1014, %v1015
      %v1017 = vld [vmem:[%s4 + $0x15] ss:$0 sm:$0xff]
      %v1018 = vadd.f32 %v1016, %v1017
      %v1019 = vsel %vm240, %v1001, 0.0
      %1020 = vadd.xlane.f32.xlu0 %v1019
      %v1021 = vpop.xlane.xlu0 %1020
      %v1022 = vmul.f32 %v1021, %v244
      %v1023 = vsub.f32 %v1001, %v1022
      %v1024 = vmul.f32 %v1023, %v1023
      %v1025 = vsel %vm240, %v1024, 0.0
      %1026 = vadd.xlane.f32.xlu0 %v1025
      %v1027 = vpop.xlane.xlu0 %1026
      %v1028 = vmul.f32 %v1027, %v244
      %v1029 = vadd.f32 %v1028, 1e-05
      %v1030 = vrsqrt.pop %v1029
      %v1031 = vmul.f32 %v1023, %v1030
      %v1032 = vld [vmem:[%s4 + $0x16] ss:$0 sm:$0xff]
      %v1033 = vmul.f32 %v1031, %v1032
      %v1034 = vld [vmem:[%s4 + $0x17] ss:$0 sm:$0xff]
      %v1035 = vadd.f32 %v1033, %v1034
      %v1036 = vpack.c.bf16 %v1035, %v1018
      %v1037 = vld [vmem:[%s2 + $0x70] sm:$0xf]
      %v1038 = vld [vmem:[%s2 + $0x74] sm:$0xf]
      %v1039 = vld [vmem:[%s2 + $0x78] sm:$0xf]
      %v1040 = vld [vmem:[%s2 + $0x7c] sm:$0xf]
      %v1045 = vunpack.c.l.b16 %v1037
      %v1046 = vunpack.c.l.b16 %v1038
      %v1047 = vunpack.c.l.b16 %v1039
      %v1048 = vunpack.c.l.b16 %v1040
      %v1049 = vpack.c.b16 %v1046, %v1045
      %v1050 = vpack.c.b16 %v1048, %v1047
      %v1054 = vsel %vm240, %v1036, 0
      %1056 = vmatprep.subr.bf16.mxu0 0
      %1057 = vmatpush1.bf16.msra.mxu0 %v1049
      %1058 = vmatprep.subr.bf16.mxu0 0
      %1059 = vmatpush1.bf16.msra.mxu0 %v1050
      %1060 = vmatprep.subr.bf16.mxu0 0
      %1061 = vmatpush1.bf16.msra.mxu0 0
      %1062 = vmatprep.subr.bf16.mxu0 0
      %1063 = vmatpush1.bf16.msra.mxu0 0
      %1064 = vmatprep.subr.bf16.mxu0 0
      %1065 = vmatpush1.bf16.msra.mxu0 0
      %1066 = vmatprep.subr.bf16.mxu0 0
      %1067 = vmatpush1.bf16.msra.mxu0 0
      %1068 = vmatprep.subr.bf16.mxu0 0
      %1069 = vmatpush1.bf16.msra.mxu0 0
      %1070 = vmatprep.subr.bf16.mxu0 0
      %1071 = vmatpush1.bf16.msra.mxu0 0
      %1072 = vmatprep.subr.bf16.mxu0 0
      %1073 = vmatpush1.bf16.msra.mxu0 0
      %1074 = vmatprep.subr.bf16.mxu0 0
      %1075 = vmatpush1.bf16.msra.mxu0 0
      %1076 = vmatprep.subr.bf16.mxu0 0
      %1077 = vmatpush1.bf16.msra.mxu0 0
      %1078 = vmatprep.subr.bf16.mxu0 0
      %1079 = vmatpush1.bf16.msra.mxu0 0
      %1080 = vmatprep.subr.bf16.mxu0 0
      %1081 = vmatpush1.bf16.msra.mxu0 0
      %1082 = vmatprep.subr.bf16.mxu0 0
      %1083 = vmatpush1.bf16.msra.mxu0 0
      %1084 = vmatprep.subr.bf16.mxu0 0
      %1085 = vmatpush1.bf16.msra.mxu0 0
      %1086 = vmatprep.subr.bf16.mxu0 0
      %1087 = vmatpush1.bf16.msra.mxu0 0
      %1088 = vmatprep.mubr.bf16.mxu0 0
      %1089 = vmatmul.mubr.bf16.gmra.mrb[0].mxu0 %v1054
      %v1090 = vpop.f32.mrb[0].mxu0
      %v1091 = vadd.f32 0.0, %v1090
      %v1092 = vpop.f32.mrb[0].mxu0
      %v1093 = vpop.f32.mrb[0].mxu0
      %v1094 = vadd.f32 0.0, %v1093
      %v1095 = vpop.f32.mrb[0].mxu0
      %1096 = vdwg.mxu0
      %1098 = vrot.lane.b32.xlu0 %v1091, 64
      %v1099 = vpop.permute.xlu0 %1098
      %1101 = vrot.lane.b32.xlu0 %v1094, 56
      %v1102 = vpop.permute.xlu0 %1101
      %v1103 = vsel %vm343, %v1099, 0
      %v1105 = vsel %vm343, %v1102, 0
      %1107 = vmatprep.subr.mxu0 0.0
      %1108 = vmatpush1.xpose.msra.mxu0 %v1105
      %1109 = vmatprep.subr.mxu0 0.0
      %1110 = vmatpush1.xpose.msra.mxu0 0.0
      %1111 = vmatprep.subr.mxu0 0.0
      %1112 = vmatpush1.xpose.msra.mxu0 0.0
      %1113 = vmatprep.subr.mxu0 0.0
      %1114 = vmatpush1.xpose.msra.mxu0 0.0
      %1115 = vmatprep.subr.mxu0 0.0
      %1116 = vmatpush1.xpose.msra.mxu0 0.0
      %1117 = vmatprep.subr.mxu0 0.0
      %1118 = vmatpush1.xpose.msra.mxu0 0.0
      %1119 = vmatprep.subr.mxu0 0.0
      %1120 = vmatpush1.xpose.msra.mxu0 0.0
      %1121 = vmatprep.subr.mxu0 0.0
      %1122 = vmatpush1.xpose.msra.mxu0 0.0
      %1123 = vmatprep.subr.mxu0 0.0
      %1124 = vmatpush1.xpose.msra.mxu0 0.0
      %1125 = vmatprep.subr.mxu0 0.0
      %1126 = vmatpush1.xpose.msra.mxu0 0.0
      %1127 = vmatprep.subr.mxu0 0.0
      %1128 = vmatpush1.xpose.msra.mxu0 0.0
      %1129 = vmatprep.subr.mxu0 0.0
      %1130 = vmatpush1.xpose.msra.mxu0 0.0
      %1131 = vmatprep.subr.mxu0 0.0
      %1132 = vmatpush1.xpose.msra.mxu0 0.0
      %1133 = vmatprep.subr.mxu0 0.0
      %1134 = vmatpush1.xpose.msra.mxu0 0.0
      %1135 = vmatprep.subr.mxu0 0.0
      %1136 = vmatpush1.xpose.msra.mxu0 0.0
      %1137 = vmatprep.subr.mxu0 0.0
      %1138 = vmatpush1.xpose.msra.mxu0 0.0
      %1139 = vmatprep.subr.mxu0 0.0
      %1140 = vmatpush1.xpose.msra.mxu0 0.0
      %1141 = vmatprep.subr.mxu0 0.0
      %1142 = vmatpush1.xpose.msra.mxu0 0.0
      %1143 = vmatprep.subr.mxu0 0.0
      %1144 = vmatpush1.xpose.msra.mxu0 0.0
      %1145 = vmatprep.subr.mxu0 0.0
      %1146 = vmatpush1.xpose.msra.mxu0 0.0
      %1147 = vmatprep.subr.mxu0 0.0
      %1148 = vmatpush1.xpose.msra.mxu0 0.0
      %1149 = vmatprep.subr.mxu0 0.0
      %1150 = vmatpush1.xpose.msra.mxu0 0.0
      %1151 = vmatprep.subr.mxu0 0.0
      %1152 = vmatpush1.xpose.msra.mxu0 0.0
      %1153 = vmatprep.subr.mxu0 0.0
      %1154 = vmatpush1.xpose.msra.mxu0 0.0
      %1155 = vmatprep.subr.mxu0 0.0
      %1156 = vmatpush1.xpose.msra.mxu0 0.0
      %1157 = vmatprep.subr.mxu0 0.0
      %1158 = vmatpush1.xpose.msra.mxu0 0.0
      %1159 = vmatprep.subr.mxu0 0.0
      %1160 = vmatpush1.xpose.msra.mxu0 0.0
      %1161 = vmatprep.subr.mxu0 0.0
      %1162 = vmatpush1.xpose.msra.mxu0 0.0
      %1163 = vmatprep.subr.mxu0 0.0
      %1164 = vmatpush1.xpose.msra.mxu0 0.0
      %1165 = vmatprep.subr.mxu0 0.0
      %1166 = vmatpush1.xpose.msra.mxu0 0.0
      %1167 = vmatprep.subr.mxu0 0.0
      %1168 = vmatpush1.xpose.msra.mxu0 0.0
      %1169 = vmatprep.subr.mxu0 0.0
      %1170 = vmatpush1.xpose.msra.mxu0 0.0
      %1171 = vmatprep.mubr.f32.mxu0 0.0
      %1172 = vmatmul.mubr.f32.gmra.mrb[0].mxu0 %v1103
      %v1173 = vpop.f32.mrb[0].mxu0
      %v1174 = vadd.f32 0.0, %v1173
      %v1175 = vpop.f32.mrb[0].mxu0
      %1176 = vdwg.mxu0
      %v1177 = vsel %vm343, %v1174, -inf
      %1178 = vmax.xlane.f32.xlu0 %v1177
      %v1179 = vpop.xlane.xlu0 %1178
      %v1180 = vsub.f32 %v1174, %v1179
      %v1181 = vmul.f32 %v1180, 1.442695
      %v1182 = vpow.pop %v1181
      %v1183 = vsel %vm343, %v1182, 0.0
      %1184 = vadd.xlane.f32.xlu0 %v1183
      %v1185 = vpop.xlane.xlu0 %1184
      %v1186 = vrcp.pop %v1185
      %v1187 = vmul.f32 %v1182, %v1186
      %v1189 = vsel %vm343, %v1187, 0
      %1191 = vmatprep.subr.mxu0 0.0
      %1192 = vmatpush1.msra.mxu0 %v1094
      %1193 = vmatprep.subr.mxu0 0.0
      %1194 = vmatpush1.msra.mxu0 0.0
      %1195 = vmatprep.subr.mxu0 0.0
      %1196 = vmatpush1.msra.mxu0 0.0
      %1197 = vmatprep.subr.mxu0 0.0
      %1198 = vmatpush1.msra.mxu0 0.0
      %1199 = vmatprep.subr.mxu0 0.0
      %1200 = vmatpush1.msra.mxu0 0.0
      %1201 = vmatprep.subr.mxu0 0.0
      %1202 = vmatpush1.msra.mxu0 0.0
      %1203 = vmatprep.subr.mxu0 0.0
      %1204 = vmatpush1.msra.mxu0 0.0
      %1205 = vmatprep.subr.mxu0 0.0
      %1206 = vmatpush1.msra.mxu0 0.0
      %1207 = vmatprep.subr.mxu0 0.0
      %1208 = vmatpush1.msra.mxu0 0.0
      %1209 = vmatprep.subr.mxu0 0.0
      %1210 = vmatpush1.msra.mxu0 0.0
      %1211 = vmatprep.subr.mxu0 0.0
      %1212 = vmatpush1.msra.mxu0 0.0
      %1213 = vmatprep.subr.mxu0 0.0
      %1214 = vmatpush1.msra.mxu0 0.0
      %1215 = vmatprep.subr.mxu0 0.0
      %1216 = vmatpush1.msra.mxu0 0.0
      %1217 = vmatprep.subr.mxu0 0.0
      %1218 = vmatpush1.msra.mxu0 0.0
      %1219 = vmatprep.subr.mxu0 0.0
      %1220 = vmatpush1.msra.mxu0 0.0
      %1221 = vmatprep.subr.mxu0 0.0
      %1222 = vmatpush1.msra.mxu0 0.0
      %1223 = vmatprep.subr.mxu0 0.0
      %1224 = vmatpush1.msra.mxu0 0.0
      %1225 = vmatprep.subr.mxu0 0.0
      %1226 = vmatpush1.msra.mxu0 0.0
      %1227 = vmatprep.subr.mxu0 0.0
      %1228 = vmatpush1.msra.mxu0 0.0
      %1229 = vmatprep.subr.mxu0 0.0
      %1230 = vmatpush1.msra.mxu0 0.0
      %1231 = vmatprep.subr.mxu0 0.0
      %1232 = vmatpush1.msra.mxu0 0.0
      %1233 = vmatprep.subr.mxu0 0.0
      %1234 = vmatpush1.msra.mxu0 0.0
      %1235 = vmatprep.subr.mxu0 0.0
      %1236 = vmatpush1.msra.mxu0 0.0
      %1237 = vmatprep.subr.mxu0 0.0
      %1238 = vmatpush1.msra.mxu0 0.0
      %1239 = vmatprep.subr.mxu0 0.0
      %1240 = vmatpush1.msra.mxu0 0.0
      %1241 = vmatprep.subr.mxu0 0.0
      %1242 = vmatpush1.msra.mxu0 0.0
      %1243 = vmatprep.subr.mxu0 0.0
      %1244 = vmatpush1.msra.mxu0 0.0
      %1245 = vmatprep.subr.mxu0 0.0
      %1246 = vmatpush1.msra.mxu0 0.0
      %1247 = vmatprep.subr.mxu0 0.0
      %1248 = vmatpush1.msra.mxu0 0.0
      %1249 = vmatprep.subr.mxu0 0.0
      %1250 = vmatpush1.msra.mxu0 0.0
      %1251 = vmatprep.subr.mxu0 0.0
      %1252 = vmatpush1.msra.mxu0 0.0
      %1253 = vmatprep.subr.mxu0 0.0
      %1254 = vmatpush1.msra.mxu0 0.0
      %1255 = vmatprep.mubr.f32.mxu0 0.0
      %1256 = vmatmul.mubr.f32.gmra.mrb[0].mxu0 %v1189
      %v1257 = vpop.f32.mrb[0].mxu0
      %v1258 = vadd.f32 0.0, %v1257
      %v1259 = vpop.f32.mrb[0].mxu0
      %1260 = vdwg.mxu0
      %v1261 = vadd.f32 %v1018, %v1258
      %v1262 = vsel %vm240, %v1261, 0.0
      %1263 = vadd.xlane.f32.xlu0 %v1262
      %v1264 = vpop.xlane.xlu0 %1263
      %v1265 = vmul.f32 %v1264, %v244
      %v1266 = vsub.f32 %v1261, %v1265
      %v1267 = vmul.f32 %v1266, %v1266
      %v1268 = vsel %vm240, %v1267, 0.0
      %1269 = vadd.xlane.f32.xlu0 %v1268
      %v1270 = vpop.xlane.xlu0 %1269
      %v1271 = vmul.f32 %v1270, %v244
      %v1272 = vadd.f32 %v1271, 1e-05
      %v1273 = vrsqrt.pop %v1272
      %v1274 = vmul.f32 %v1266, %v1273
      %v1275 = vld [vmem:[%s4 + $0x20] ss:$0 sm:$0xff]
      %v1276 = vmul.f32 %v1274, %v1275
      %v1277 = vld [vmem:[%s4 + $0x21] ss:$0 sm:$0xff]
      %v1278 = vadd.f32 %v1276, %v1277
      %v1279 = vpack.c.bf16 %v1278, %v1278
      %v1280 = vld [vmem:[%s2 + $0x80] sm:$0xf]
      %v1281 = vld [vmem:[%s2 + $0x84] sm:$0xf]
      %v1282 = vld [vmem:[%s2 + $0x88] sm:$0xf]
      %v1283 = vld [vmem:[%s2 + $0x8c] sm:$0xf]
      %v1284 = vld [vmem:[%s4 + $0x22] ss:$0 sm:$0xff]
      %v1289 = vunpack.c.l.b16 %v1280
      %v1290 = vunpack.c.l.b16 %v1281
      %v1291 = vunpack.c.l.b16 %v1282
      %v1292 = vunpack.c.l.b16 %v1283
      %v1293 = vpack.c.b16 %v1290, %v1289
      %v1294 = vpack.c.b16 %v1292, %v1291
      %v1298 = vsel %vm240, %v1279, 0
      %1300 = vmatprep.subr.bf16.mxu0 0
      %1301 = vmatpush1.bf16.msra.mxu0 %v1293
      %1302 = vmatprep.subr.bf16.mxu0 0
      %1303 = vmatpush1.bf16.msra.mxu0 %v1294
      %1304 = vmatprep.subr.bf16.mxu0 0
      %1305 = vmatpush1.bf16.msra.mxu0 0
      %1306 = vmatprep.subr.bf16.mxu0 0
      %1307 = vmatpush1.bf16.msra.mxu0 0
      %1308 = vmatprep.subr.bf16.mxu0 0
      %1309 = vmatpush1.bf16.msra.mxu0 0
      %1310 = vmatprep.subr.bf16.mxu0 0
      %1311 = vmatpush1.bf16.msra.mxu0 0
      %1312 = vmatprep.subr.bf16.mxu0 0
      %1313 = vmatpush1.bf16.msra.mxu0 0
      %1314 = vmatprep.subr.bf16.mxu0 0
      %1315 = vmatpush1.bf16.msra.mxu0 0
      %1316 = vmatprep.subr.bf16.mxu0 0
      %1317 = vmatpush1.bf16.msra.mxu0 0
      %1318 = vmatprep.subr.bf16.mxu0 0
      %1319 = vmatpush1.bf16.msra.mxu0 0
      %1320 = vmatprep.subr.bf16.mxu0 0
      %1321 = vmatpush1.bf16.msra.mxu0 0
      %1322 = vmatprep.subr.bf16.mxu0 0
      %1323 = vmatpush1.bf16.msra.mxu0 0
      %1324 = vmatprep.subr.bf16.mxu0 0
      %1325 = vmatpush1.bf16.msra.mxu0 0
      %1326 = vmatprep.subr.bf16.mxu0 0
      %1327 = vmatpush1.bf16.msra.mxu0 0
      %1328 = vmatprep.subr.bf16.mxu0 0
      %1329 = vmatpush1.bf16.msra.mxu0 0
      %1330 = vmatprep.subr.bf16.mxu0 0
      %1331 = vmatpush1.bf16.msra.mxu0 0
      %1332 = vmatprep.mubr.bf16.mxu0 0
      %1333 = vmatmul.mubr.bf16.gmra.mrb[0].mxu0 %v1298
      %v1334 = vpop.f32.mrb[0].mxu0
      %v1335 = vadd.f32 %v1284, %v1334
      %v1336 = vpop.f32.mrb[0].mxu0
      %v1337 = vpop.f32.mrb[0].mxu0
      %v1338 = vpop.f32.mrb[0].mxu0
      %1339 = vdwg.mxu0
      %v1340 = vmul.f32 %v1335, 0.5
      %v1341 = vmul.f32 %v1335, 0.044715
      %v1342 = vmul.f32 %v1341, %v1335
      %v1343 = vmul.f32 %v1342, %v1335
      %v1344 = vadd.f32 %v1335, %v1343
      %v1345 = vmul.f32 %v1344, 0.7978846
      %v1346 = vtanh.pop %v1345
      %v1347 = vadd.f32 %v1346, 1.0
      %v1348 = vmul.f32 %v1340, %v1347
      %v1349 = vpack.c.bf16 %v1348, %v1348
      %v1350 = vld [vmem:[%s2 + $0x90] sm:$0xf]
      %v1351 = vld [vmem:[%s2 + $0x94] sm:$0xf]
      %v1352 = vld [vmem:[%s2 + $0x98] sm:$0xf]
      %v1353 = vld [vmem:[%s2 + $0x9c] sm:$0xf]
      %v1354 = vld [vmem:[%s2 + $0xa0] sm:$0xf]
      %v1355 = vld [vmem:[%s2 + $0xa4] sm:$0xf]
      %v1356 = vld [vmem:[%s2 + $0xa8] sm:$0xf]
      %v1357 = vld [vmem:[%s2 + $0xac] sm:$0xf]
      %v1366 = vunpack.c.l.b16 %v1350
      %v1367 = vunpack.c.l.b16 %v1351
      %v1368 = vunpack.c.l.b16 %v1352
      %v1369 = vunpack.c.l.b16 %v1353
      %v1370 = vunpack.c.l.b16 %v1354
      %v1371 = vunpack.c.l.b16 %v1355
      %v1372 = vunpack.c.l.b16 %v1356
      %v1373 = vunpack.c.l.b16 %v1357
      %v1374 = vpack.c.b16 %v1367, %v1366
      %v1375 = vpack.c.b16 %v1369, %v1368
      %v1376 = vpack.c.b16 %v1371, %v1370
      %v1377 = vpack.c.b16 %v1373, %v1372
      %v1383 = vsel %vm623, %v1349, 0
      %1385 = vmatprep.subr.bf16.mxu0 0
      %1386 = vmatpush1.bf16.msra.mxu0 %v1374
      %1387 = vmatprep.subr.bf16.mxu0 0
      %1388 = vmatpush1.bf16.msra.mxu0 %v1375
      %1389 = vmatprep.subr.bf16.mxu0 0
      %1390 = vmatpush1.bf16.msra.mxu0 %v1376
      %1391 = vmatprep.subr.bf16.mxu0 0
      %1392 = vmatpush1.bf16.msra.mxu0 %v1377
      %1393 = vmatprep.subr.bf16.mxu0 0
      %1394 = vmatpush1.bf16.msra.mxu0 0
      %1395 = vmatprep.subr.bf16.mxu0 0
      %1396 = vmatpush1.bf16.msra.mxu0 0
      %1397 = vmatprep.subr.bf16.mxu0 0
      %1398 = vmatpush1.bf16.msra.mxu0 0
      %1399 = vmatprep.subr.bf16.mxu0 0
      %1400 = vmatpush1.bf16.msra.mxu0 0
      %1401 = vmatprep.subr.bf16.mxu0 0
      %1402 = vmatpush1.bf16.msra.mxu0 0
      %1403 = vmatprep.subr.bf16.mxu0 0
      %1404 = vmatpush1.bf16.msra.mxu0 0
      %1405 = vmatprep.subr.bf16.mxu0 0
      %1406 = vmatpush1.bf16.msra.mxu0 0
      %1407 = vmatprep.subr.bf16.mxu0 0
      %1408 = vmatpush1.bf16.msra.mxu0 0
      %1409 = vmatprep.subr.bf16.mxu0 0
      %1410 = vmatpush1.bf16.msra.mxu0 0
      %1411 = vmatprep.subr.bf16.mxu0 0
      %1412 = vmatpush1.bf16.msra.mxu0 0
      %1413 = vmatprep.subr.bf16.mxu0 0
      %1414 = vmatpush1.bf16.msra.mxu0 0
      %1415 = vmatprep.subr.bf16.mxu0 0
      %1416 = vmatpush1.bf16.msra.mxu0 0
      %1417 = vmatprep.mubr.bf16.mxu0 0
      %1418 = vmatmul.mubr.bf16.gmra.mrb[0].mxu0 %v1383
      %v1419 = vpop.f32.mrb[0].mxu0
      %v1420 = vadd.f32 0.0, %v1419
      %v1421 = vpop.f32.mrb[0].mxu0
      %v1422 = vpop.f32.mrb[0].mxu0
      %v1423 = vpop.f32.mrb[0].mxu0
      %1424 = vdwg.mxu0
      %v1425 = vadd.f32 %v1261, %v1420
      %v1426 = vld [vmem:[%s4 + $0x23] ss:$0 sm:$0xff]
      %v1427 = vadd.f32 %v1425, %v1426
      %1428 = vrot.lane.b32.xlu0 %v1094, 48
      %v1429 = vpop.permute.xlu0 %1428
      %1430 = vrot.lane.b32.xlu0 %v1091, 40
      %v1431 = vpop.permute.xlu0 %1430
      %v1432 = vsel %vm343, %v1429, 0
      %v1434 = vsel %vm343, %v1431, 0
      %1436 = vmatprep.subr.mxu0 0.0
      %1437 = vmatpush1.xpose.msra.mxu0 %v1434
      %1438 = vmatprep.subr.mxu0 0.0
      %1439 = vmatpush1.xpose.msra.mxu0 0.0
      %1440 = vmatprep.subr.mxu0 0.0
      %1441 = vmatpush1.xpose.msra.mxu0 0.0
      %1442 = vmatprep.subr.mxu0 0.0
      %1443 = vmatpush1.xpose.msra.mxu0 0.0
      %1444 = vmatprep.subr.mxu0 0.0
      %1445 = vmatpush1.xpose.msra.mxu0 0.0
      %1446 = vmatprep.subr.mxu0 0.0
      %1447 = vmatpush1.xpose.msra.mxu0 0.0
      %1448 = vmatprep.subr.mxu0 0.0
      %1449 = vmatpush1.xpose.msra.mxu0 0.0
      %1450 = vmatprep.subr.mxu0 0.0
      %1451 = vmatpush1.xpose.msra.mxu0 0.0
      %1452 = vmatprep.subr.mxu0 0.0
      %1453 = vmatpush1.xpose.msra.mxu0 0.0
      %1454 = vmatprep.subr.mxu0 0.0
      %1455 = vmatpush1.xpose.msra.mxu0 0.0
      %1456 = vmatprep.subr.mxu0 0.0
      %1457 = vmatpush1.xpose.msra.mxu0 0.0
      %1458 = vmatprep.subr.mxu0 0.0
      %1459 = vmatpush1.xpose.msra.mxu0 0.0
      %1460 = vmatprep.subr.mxu0 0.0
      %1461 = vmatpush1.xpose.msra.mxu0 0.0
      %1462 = vmatprep.subr.mxu0 0.0
      %1463 = vmatpush1.xpose.msra.mxu0 0.0
      %1464 = vmatprep.subr.mxu0 0.0
      %1465 = vmatpush1.xpose.msra.mxu0 0.0
      %1466 = vmatprep.subr.mxu0 0.0
      %1467 = vmatpush1.xpose.msra.mxu0 0.0
      %1468 = vmatprep.subr.mxu0 0.0
      %1469 = vmatpush1.xpose.msra.mxu0 0.0
      %1470 = vmatprep.subr.mxu0 0.0
      %1471 = vmatpush1.xpose.msra.mxu0 0.0
      %1472 = vmatprep.subr.mxu0 0.0
      %1473 = vmatpush1.xpose.msra.mxu0 0.0
      %1474 = vmatprep.subr.mxu0 0.0
      %1475 = vmatpush1.xpose.msra.mxu0 0.0
      %1476 = vmatprep.subr.mxu0 0.0
      %1477 = vmatpush1.xpose.msra.mxu0 0.0
      %1478 = vmatprep.subr.mxu0 0.0
      %1479 = vmatpush1.xpose.msra.mxu0 0.0
      %1480 = vmatprep.subr.mxu0 0.0
      %1481 = vmatpush1.xpose.msra.mxu0 0.0
      %1482 = vmatprep.subr.mxu0 0.0
      %1483 = vmatpush1.xpose.msra.mxu0 0.0
      %1484 = vmatprep.subr.mxu0 0.0
      %1485 = vmatpush1.xpose.msra.mxu0 0.0
      %1486 = vmatprep.subr.mxu0 0.0
      %1487 = vmatpush1.xpose.msra.mxu0 0.0
      %1488 = vmatprep.subr.mxu0 0.0
      %1489 = vmatpush1.xpose.msra.mxu0 0.0
      %1490 = vmatprep.subr.mxu0 0.0
      %1491 = vmatpush1.xpose.msra.mxu0 0.0
      %1492 = vmatprep.subr.mxu0 0.0
      %1493 = vmatpush1.xpose.msra.mxu0 0.0
      %1494 = vmatprep.subr.mxu0 0.0
      %1495 = vmatpush1.xpose.msra.mxu0 0.0
      %1496 = vmatprep.subr.mxu0 0.0
      %1497 = vmatpush1.xpose.msra.mxu0 0.0
      %1498 = vmatprep.subr.mxu0 0.0
      %1499 = vmatpush1.xpose.msra.mxu0 0.0
      %1500 = vmatprep.mubr.f32.mxu0 0.0
      %1501 = vmatmul.mubr.f32.gmra.mrb[0].mxu0 %v1432
      %v1502 = vpop.f32.mrb[0].mxu0
      %v1503 = vadd.f32 0.0, %v1502
      %v1504 = vpop.f32.mrb[0].mxu0
      %1505 = vdwg.mxu0
      %v1506 = vsel %vm343, %v1503, -inf
      %1507 = vmax.xlane.f32.xlu0 %v1506
      %v1508 = vpop.xlane.xlu0 %1507
      %v1509 = vsub.f32 %v1503, %v1508
      %v1510 = vmul.f32 %v1509, 1.442695
      %v1511 = vpow.pop %v1510
      %v1512 = vsel %vm343, %v1511, 0.0
      %1513 = vadd.xlane.f32.xlu0 %v1512
      %v1514 = vpop.xlane.xlu0 %1513
      %v1515 = vrcp.pop %v1514
      %v1516 = vmul.f32 %v1511, %v1515
      %1517 = vrot.lane.b32.xlu0 %v1091, 96
      %v1518 = vpop.permute.xlu0 %1517
      %v1521 = vsel %vm343, %v1516, 0
      %1523 = vmatprep.subr.mxu0 0.0
      %1524 = vmatpush1.msra.mxu0 %v1518
      %1525 = vmatprep.subr.mxu0 0.0
      %1526 = vmatpush1.msra.mxu0 0.0
      %1527 = vmatprep.subr.mxu0 0.0
      %1528 = vmatpush1.msra.mxu0 0.0
      %1529 = vmatprep.subr.mxu0 0.0
      %1530 = vmatpush1.msra.mxu0 0.0
      %1531 = vmatprep.subr.mxu0 0.0
      %1532 = vmatpush1.msra.mxu0 0.0
      %1533 = vmatprep.subr.mxu0 0.0
      %1534 = vmatpush1.msra.mxu0 0.0
      %1535 = vmatprep.subr.mxu0 0.0
      %1536 = vmatpush1.msra.mxu0 0.0
      %1537 = vmatprep.subr.mxu0 0.0
      %1538 = vmatpush1.msra.mxu0 0.0
      %1539 = vmatprep.subr.mxu0 0.0
      %1540 = vmatpush1.msra.mxu0 0.0
      %1541 = vmatprep.subr.mxu0 0.0
      %1542 = vmatpush1.msra.mxu0 0.0
      %1543 = vmatprep.subr.mxu0 0.0
      %1544 = vmatpush1.msra.mxu0 0.0
      %1545 = vmatprep.subr.mxu0 0.0
      %1546 = vmatpush1.msra.mxu0 0.0
      %1547 = vmatprep.subr.mxu0 0.0
      %1548 = vmatpush1.msra.mxu0 0.0
      %1549 = vmatprep.subr.mxu0 0.0
      %1550 = vmatpush1.msra.mxu0 0.0
      %1551 = vmatprep.subr.mxu0 0.0
      %1552 = vmatpush1.msra.mxu0 0.0
      %1553 = vmatprep.subr.mxu0 0.0
      %1554 = vmatpush1.msra.mxu0 0.0
      %1555 = vmatprep.subr.mxu0 0.0
      %1556 = vmatpush1.msra.mxu0 0.0
      %1557 = vmatprep.subr.mxu0 0.0
      %1558 = vmatpush1.msra.mxu0 0.0
      %1559 = vmatprep.subr.mxu0 0.0
      %1560 = vmatpush1.msra.mxu0 0.0
      %1561 = vmatprep.subr.mxu0 0.0
      %1562 = vmatpush1.msra.mxu0 0.0
      %1563 = vmatprep.subr.mxu0 0.0
      %1564 = vmatpush1.msra.mxu0 0.0
      %1565 = vmatprep.subr.mxu0 0.0
      %1566 = vmatpush1.msra.mxu0 0.0
      %1567 = vmatprep.subr.mxu0 0.0
      %1568 = vmatpush1.msra.mxu0 0.0
      %1569 = vmatprep.subr.mxu0 0.0
      %1570 = vmatpush1.msra.mxu0 0.0
      %1571 = vmatprep.subr.mxu0 0.0
      %1572 = vmatpush1.msra.mxu0 0.0
      %1573 = vmatprep.subr.mxu0 0.0
      %1574 = vmatpush1.msra.mxu0 0.0
      %1575 = vmatprep.subr.mxu0 0.0
      %1576 = vmatpush1.msra.mxu0 0.0
      %1577 = vmatprep.subr.mxu0 0.0
      %1578 = vmatpush1.msra.mxu0 0.0
      %1579 = vmatprep.subr.mxu0 0.0
      %1580 = vmatpush1.msra.mxu0 0.0
      %1581 = vmatprep.subr.mxu0 0.0
      %1582 = vmatpush1.msra.mxu0 0.0
      %1583 = vmatprep.subr.mxu0 0.0
      %1584 = vmatpush1.msra.mxu0 0.0
      %1585 = vmatprep.subr.mxu0 0.0
      %1586 = vmatpush1.msra.mxu0 0.0
      %1587 = vmatprep.mubr.f32.mxu0 0.0
      %1588 = vmatmul.mubr.f32.gmra.mrb[0].mxu0 %v1521
      %v1589 = vpop.f32.mrb[0].mxu0
      %v1590 = vadd.f32 0.0, %v1589
      %v1591 = vpop.f32.mrb[0].mxu0
      %1592 = vdwg.mxu0
      %v1593 = vadd.f32 %v1035, %v1590
      %v1594 = vsel %vm240, %v1593, 0.0
      %1595 = vadd.xlane.f32.xlu0 %v1594
      %v1596 = vpop.xlane.xlu0 %1595
      %v1597 = vmul.f32 %v1596, %v244
      %v1598 = vsub.f32 %v1593, %v1597
      %v1599 = vmul.f32 %v1598, %v1598
      %v1600 = vsel %vm240, %v1599, 0.0
      %1601 = vadd.xlane.f32.xlu0 %v1600
      %v1602 = vpop.xlane.xlu0 %1601
      %v1603 = vmul.f32 %v1602, %v244
      %v1604 = vadd.f32 %v1603, 1e-05
      %v1605 = vrsqrt.pop %v1604
      %v1606 = vmul.f32 %v1598, %v1605
      %v1607 = vld [vmem:[%s4 + $0x24] ss:$0 sm:$0xff]
      %v1608 = vmul.f32 %v1606, %v1607
      %v1609 = vld [vmem:[%s4 + $0x25] ss:$0 sm:$0xff]
      %v1610 = vadd.f32 %v1608, %v1609
      %v1611 = vpack.c.bf16 %v1610, %v1610
      %v1612 = vld [vmem:[%s2 + $0xb0] sm:$0xf]
      %v1613 = vld [vmem:[%s2 + $0xb4] sm:$0xf]
      %v1614 = vld [vmem:[%s2 + $0xb8] sm:$0xf]
      %v1615 = vld [vmem:[%s2 + $0xbc] sm:$0xf]
      %v1616 = vld [vmem:[%s4 + $0x26] ss:$0 sm:$0xff]
      %v1621 = vunpack.c.l.b16 %v1612
      %v1622 = vunpack.c.l.b16 %v1613
      %v1623 = vunpack.c.l.b16 %v1614
      %v1624 = vunpack.c.l.b16 %v1615
      %v1625 = vpack.c.b16 %v1622, %v1621
      %v1626 = vpack.c.b16 %v1624, %v1623
      %v1630 = vsel %vm240, %v1611, 0
      %1632 = vmatprep.subr.bf16.mxu0 0
      %1633 = vmatpush1.bf16.msra.mxu0 %v1625
      %1634 = vmatprep.subr.bf16.mxu0 0
      %1635 = vmatpush1.bf16.msra.mxu0 %v1626
      %1636 = vmatprep.subr.bf16.mxu0 0
      %1637 = vmatpush1.bf16.msra.mxu0 0
      %1638 = vmatprep.subr.bf16.mxu0 0
      %1639 = vmatpush1.bf16.msra.mxu0 0
      %1640 = vmatprep.subr.bf16.mxu0 0
      %1641 = vmatpush1.bf16.msra.mxu0 0
      %1642 = vmatprep.subr.bf16.mxu0 0
      %1643 = vmatpush1.bf16.msra.mxu0 0
      %1644 = vmatprep.subr.bf16.mxu0 0
      %1645 = vmatpush1.bf16.msra.mxu0 0
      %1646 = vmatprep.subr.bf16.mxu0 0
      %1647 = vmatpush1.bf16.msra.mxu0 0
      %1648 = vmatprep.subr.bf16.mxu0 0
      %1649 = vmatpush1.bf16.msra.mxu0 0
      %1650 = vmatprep.subr.bf16.mxu0 0
      %1651 = vmatpush1.bf16.msra.mxu0 0
      %1652 = vmatprep.subr.bf16.mxu0 0
      %1653 = vmatpush1.bf16.msra.mxu0 0
      %1654 = vmatprep.subr.bf16.mxu0 0
      %1655 = vmatpush1.bf16.msra.mxu0 0
      %1656 = vmatprep.subr.bf16.mxu0 0
      %1657 = vmatpush1.bf16.msra.mxu0 0
      %1658 = vmatprep.subr.bf16.mxu0 0
      %1659 = vmatpush1.bf16.msra.mxu0 0
      %1660 = vmatprep.subr.bf16.mxu0 0
      %1661 = vmatpush1.bf16.msra.mxu0 0
      %1662 = vmatprep.subr.bf16.mxu0 0
      %1663 = vmatpush1.bf16.msra.mxu0 0
      %1664 = vmatprep.mubr.bf16.mxu0 0
      %1665 = vmatmul.mubr.bf16.gmra.mrb[0].mxu0 %v1630
      %v1666 = vpop.f32.mrb[0].mxu0
      %v1667 = vadd.f32 %v1616, %v1666
      %v1668 = vpop.f32.mrb[0].mxu0
      %v1669 = vpop.f32.mrb[0].mxu0
      %v1670 = vpop.f32.mrb[0].mxu0
      %1671 = vdwg.mxu0
      %v1672 = vmul.f32 %v1667, 0.5
      %v1673 = vmul.f32 %v1667, 0.044715
      %v1674 = vmul.f32 %v1673, %v1667
      %v1675 = vmul.f32 %v1674, %v1667
      %v1676 = vadd.f32 %v1667, %v1675
      %v1677 = vmul.f32 %v1676, 0.7978846
      %v1678 = vtanh.pop %v1677
      %v1679 = vadd.f32 %v1678, 1.0
      %v1680 = vmul.f32 %v1672, %v1679
      %v1681 = vpack.c.bf16 %v1680, %v1680
      %v1682 = vld [vmem:[%s2 + $0xc0] sm:$0xf]
      %v1683 = vld [vmem:[%s2 + $0xc4] sm:$0xf]
      %v1684 = vld [vmem:[%s2 + $0xc8] sm:$0xf]
      %v1685 = vld [vmem:[%s2 + $0xcc] sm:$0xf]
      %v1686 = vld [vmem:[%s2 + $0xd0] sm:$0xf]
      %v1687 = vld [vmem:[%s2 + $0xd4] sm:$0xf]
      %v1688 = vld [vmem:[%s2 + $0xd8] sm:$0xf]
      %v1689 = vld [vmem:[%s2 + $0xdc] sm:$0xf]
      %v1698 = vunpack.c.l.b16 %v1682
      %v1699 = vunpack.c.l.b16 %v1683
      %v1700 = vunpack.c.l.b16 %v1684
      %v1701 = vunpack.c.l.b16 %v1685
      %v1702 = vunpack.c.l.b16 %v1686
      %v1703 = vunpack.c.l.b16 %v1687
      %v1704 = vunpack.c.l.b16 %v1688
      %v1705 = vunpack.c.l.b16 %v1689
      %v1706 = vpack.c.b16 %v1699, %v1698
      %v1707 = vpack.c.b16 %v1701, %v1700
      %v1708 = vpack.c.b16 %v1703, %v1702
      %v1709 = vpack.c.b16 %v1705, %v1704
      %v1715 = vsel %vm623, %v1681, 0
      %1717 = vmatprep.subr.bf16.mxu0 0
      %1718 = vmatpush1.bf16.msra.mxu0 %v1706
      %1719 = vmatprep.subr.bf16.mxu0 0
      %1720 = vmatpush1.bf16.msra.mxu0 %v1707
      %1721 = vmatprep.subr.bf16.mxu0 0
      %1722 = vmatpush1.bf16.msra.mxu0 %v1708
      %1723 = vmatprep.subr.bf16.mxu0 0
      %1724 = vmatpush1.bf16.msra.mxu0 %v1709
      %1725 = vmatprep.subr.bf16.mxu0 0
      %1726 = vmatpush1.bf16.msra.mxu0 0
      %1727 = vmatprep.subr.bf16.mxu0 0
      %1728 = vmatpush1.bf16.msra.mxu0 0
      %1729 = vmatprep.subr.bf16.mxu0 0
      %1730 = vmatpush1.bf16.msra.mxu0 0
      %1731 = vmatprep.subr.bf16.mxu0 0
      %1732 = vmatpush1.bf16.msra.mxu0 0
      %1733 = vmatprep.subr.bf16.mxu0 0
      %1734 = vmatpush1.bf16.msra.mxu0 0
      %1735 = vmatprep.subr.bf16.mxu0 0
      %1736 = vmatpush1.bf16.msra.mxu0 0
      %1737 = vmatprep.subr.bf16.mxu0 0
      %1738 = vmatpush1.bf16.msra.mxu0 0
      %1739 = vmatprep.subr.bf16.mxu0 0
      %1740 = vmatpush1.bf16.msra.mxu0 0
      %1741 = vmatprep.subr.bf16.mxu0 0
      %1742 = vmatpush1.bf16.msra.mxu0 0
      %1743 = vmatprep.subr.bf16.mxu0 0
      %1744 = vmatpush1.bf16.msra.mxu0 0
      %1745 = vmatprep.subr.bf16.mxu0 0
      %1746 = vmatpush1.bf16.msra.mxu0 0
      %1747 = vmatprep.subr.bf16.mxu0 0
      %1748 = vmatpush1.bf16.msra.mxu0 0
      %1749 = vmatprep.mubr.bf16.mxu0 0
      %1750 = vmatmul.mubr.bf16.gmra.mrb[0].mxu0 %v1715
      %v1751 = vpop.f32.mrb[0].mxu0
      %v1752 = vadd.f32 0.0, %v1751
      %v1753 = vpop.f32.mrb[0].mxu0
      %v1754 = vpop.f32.mrb[0].mxu0
      %v1755 = vpop.f32.mrb[0].mxu0
      %1756 = vdwg.mxu0
      %v1757 = vadd.f32 %v1593, %v1752
      %v1758 = vld [vmem:[%s4 + $0x27] ss:$0 sm:$0xff]
      %v1759 = vadd.f32 %v1757, %v1758
      %v1760 = vpack.c.bf16 %v1427, %v1427
      %v1761 = vld [vmem:[%s2 + $0xe0] sm:$0xf]
      %v1762 = vld [vmem:[%s2 + $0xe4] sm:$0xf]
      %v1763 = vld [vmem:[%s2 + $0xe8] sm:$0xf]
      %v1764 = vld [vmem:[%s2 + $0xec] sm:$0xf]
      %v1765 = vld [vmem:[%s4 + $0x30] ss:$0 sm:$0xff]
      %v1770 = vunpack.c.l.b16 %v1761
      %v1771 = vunpack.c.l.b16 %v1762
      %v1772 = vunpack.c.l.b16 %v1763
      %v1773 = vunpack.c.l.b16 %v1764
      %v1774 = vpack.c.b16 %v1771, %v1770
      %v1775 = vpack.c.b16 %v1773, %v1772
      %v1779 = vsel %vm240, %v1760, 0
      %1781 = vmatprep.subr.bf16.mxu0 0
      %1782 = vmatpush1.bf16.msra.mxu0 %v1774
      %1783 = vmatprep.subr.bf16.mxu0 0
      %1784 = vmatpush1.bf16.msra.mxu0 %v1775
      %1785 = vmatprep.subr.bf16.mxu0 0
      %1786 = vmatpush1.bf16.msra.mxu0 0
      %1787 = vmatprep.subr.bf16.mxu0 0
      %1788 = vmatpush1.bf16.msra.mxu0 0
      %1789 = vmatprep.subr.bf16.mxu0 0
      %1790 = vmatpush1.bf16.msra.mxu0 0
      %1791 = vmatprep.subr.bf16.mxu0 0
      %1792 = vmatpush1.bf16.msra.mxu0 0
      %1793 = vmatprep.subr.bf16.mxu0 0
      %1794 = vmatpush1.bf16.msra.mxu0 0
      %1795 = vmatprep.subr.bf16.mxu0 0
      %1796 = vmatpush1.bf16.msra.mxu0 0
      %1797 = vmatprep.subr.bf16.mxu0 0
      %1798 = vmatpush1.bf16.msra.mxu0 0
      %1799 = vmatprep.subr.bf16.mxu0 0
      %1800 = vmatpush1.bf16.msra.mxu0 0
      %1801 = vmatprep.subr.bf16.mxu0 0
      %1802 = vmatpush1.bf16.msra.mxu0 0
      %1803 = vmatprep.subr.bf16.mxu0 0
      %1804 = vmatpush1.bf16.msra.mxu0 0
      %1805 = vmatprep.subr.bf16.mxu0 0
      %1806 = vmatpush1.bf16.msra.mxu0 0
      %1807 = vmatprep.subr.bf16.mxu0 0
      %1808 = vmatpush1.bf16.msra.mxu0 0
      %1809 = vmatprep.subr.bf16.mxu0 0
      %1810 = vmatpush1.bf16.msra.mxu0 0
      %1811 = vmatprep.subr.bf16.mxu0 0
      %1812 = vmatpush1.bf16.msra.mxu0 0
      %1813 = vmatprep.mubr.bf16.mxu0 0
      %1814 = vmatmul.mubr.bf16.gmra.mrb[0].mxu0 %v1779
      %v1815 = vpop.f32.mrb[0].mxu0
      %v1816 = vadd.f32 %v1765, %v1815
      %v1817 = vpop.f32.mrb[0].mxu0
      %v1818 = vpop.f32.mrb[0].mxu0
      %v1819 = vpop.f32.mrb[0].mxu0
      %1820 = vdwg.mxu0
      %v1821 = vpack.c.bf16 %v1816, %v1816
      %v1822 = vld [vmem:[%s3] sm:$0xff]
      %v1823 = vld [vmem:[%s3 + $0x8] sm:$0xff]
      %s1824 = scalar_lea.vmem %s4, 49
      %v1825 = vld [vmem:[%s1824] ss:$8 sm:$0x3]
      %v1827 = vlaneseq
      %v1828 = vshrl.u32 %v1827, 7
      %v1829 = vsub.s32 0, %v1828
      %v1830 = vrot.slane %v1825, %v1829
      %v1831 = vlaneseq
      %v1832 = vshrl.u32 %v1831, 7
      %v1833 = vsub.s32 1, %v1832
      %v1834 = vrot.slane %v1825, %v1833
      %v1839 = vunpack.c.l.b16 %v1822
      %v1840 = vunpack.c.h.b16 %v1822
      %v1841 = vunpack.c.l.b16 %v1823
      %v1842 = vunpack.c.h.b16 %v1823
      %v1843 = vpack.c.b16 %v1841, %v1839
      %v1844 = vpack.c.b16 %v1842, %v1840
      %vm1847 = vcmask 130048
      %v1849 = vsel %vm1847, %v1821, 0
      %1851 = vmatprep.subr.bf16.mxu0 %v1844
      %1852 = vmatpush1.bf16.msra.mxu0 %v1843
      %1853 = vmatprep.subr.bf16.mxu0 0
      %1854 = vmatpush1.bf16.msra.mxu0 0
      %1855 = vmatprep.subr.bf16.mxu0 0
      %1856 = vmatpush1.bf16.msra.mxu0 0
      %1857 = vmatprep.subr.bf16.mxu0 0
      %1858 = vmatpush1.bf16.msra.mxu0 0
      %1859 = vmatprep.subr.bf16.mxu0 0
      %1860 = vmatpush1.bf16.msra.mxu0 0
      %1861 = vmatprep.subr.bf16.mxu0 0
      %1862 = vmatpush1.bf16.msra.mxu0 0
      %1863 = vmatprep.subr.bf16.mxu0 0
      %1864 = vmatpush1.bf16.msra.mxu0 0
      %1865 = vmatprep.subr.bf16.mxu0 0
      %1866 = vmatpush1.bf16.msra.mxu0 0
      %1867 = vmatprep.subr.bf16.mxu0 0
      %1868 = vmatpush1.bf16.msra.mxu0 0
      %1869 = vmatprep.subr.bf16.mxu0 0
      %1870 = vmatpush1.bf16.msra.mxu0 0
      %1871 = vmatprep.subr.bf16.mxu0 0
      %1872 = vmatpush1.bf16.msra.mxu0 0
      %1873 = vmatprep.subr.bf16.mxu0 0
      %1874 = vmatpush1.bf16.msra.mxu0 0
      %1875 = vmatprep.subr.bf16.mxu0 0
      %1876 = vmatpush1.bf16.msra.mxu0 0
      %1877 = vmatprep.subr.bf16.mxu0 0
      %1878 = vmatpush1.bf16.msra.mxu0 0
      %1879 = vmatprep.subr.bf16.mxu0 0
      %1880 = vmatpush1.bf16.msra.mxu0 0
      %1881 = vmatprep.subr.bf16.mxu0 0
      %1882 = vmatpush1.bf16.msra.mxu0 0
      %1883 = vmatprep.mubr.bf16.mxu0 0
      %1884 = vmatmul.mubr.bf16.gmra.mrb[0].mxu0 %v1849
      %v1885 = vpop.f32.mrb[0].mxu0
      %v1886 = vadd.f32 %v1830, %v1885
      %v1887 = vpop.f32.mrb[0].mxu0
      %v1888 = vadd.f32 %v1834, %v1887
      %v1889 = vpop.f32.mrb[0].mxu0
      %v1890 = vpop.f32.mrb[0].mxu0
      %1891 = vdwg.mxu0
      %v1892 = vpack.c.bf16 %v1886, %v1886
      %v1893 = vpack.c.bf16 %v1888, %v1888
      %v1894 = vld [vmem:[%s2 + $0xf0] sm:$0xf]
      %v1895 = vld [vmem:[%s2 + $0xf4] sm:$0xf]
      %v1896 = vld [vmem:[%s2 + $0xf8] sm:$0xf]
      %v1897 = vld [vmem:[%s2 + $0xfc] sm:$0xf]
      %v1898 = vld [vmem:[%s2 + $0x100] sm:$0xf]
      %v1899 = vld [vmem:[%s2 + $0x104] sm:$0xf]
      %v1900 = vld [vmem:[%s2 + $0x108] sm:$0xf]
      %v1901 = vld [vmem:[%s2 + $0x10c] sm:$0xf]
      %v1902 = vld [vmem:[%s2 + $0x110] sm:$0xf]
      %v1903 = vld [vmem:[%s2 + $0x114] sm:$0xf]
      %v1904 = vld [vmem:[%s2 + $0x118] sm:$0xf]
      %v1905 = vld [vmem:[%s2 + $0x11c] sm:$0xf]
      %v1906 = vld [vmem:[%s2 + $0x120] sm:$0xf]
      %v1907 = vld [vmem:[%s2 + $0x124] sm:$0xf]
      %v1908 = vld [vmem:[%s2 + $0x128] sm:$0xf]
      %v1909 = vld [vmem:[%s2 + $0x12c] sm:$0xf]
      %v1910 = vld [vmem:[%s2 + $0x130] sm:$0xf]
      %v1911 = vld [vmem:[%s2 + $0x134] sm:$0xf]
      %v1912 = vld [vmem:[%s2 + $0x138] sm:$0xf]
      %v1913 = vld [vmem:[%s2 + $0x13c] sm:$0xf]
      %v1914 = vld [vmem:[%s2 + $0x140] sm:$0xf]
      %v1915 = vld [vmem:[%s2 + $0x144] sm:$0xf]
      %v1916 = vld [vmem:[%s2 + $0x148] sm:$0xf]
      %v1917 = vld [vmem:[%s2 + $0x14c] sm:$0xf]
      %v1918 = vld [vmem:[%s2 + $0x150] sm:$0xf]
      %v1919 = vld [vmem:[%s2 + $0x154] sm:$0xf]
      %v1920 = vld [vmem:[%s2 + $0x158] sm:$0xf]
      %v1921 = vld [vmem:[%s2 + $0x15c] sm:$0xf]
      %v1922 = vld [vmem:[%s2 + $0x160] sm:$0xf]
      %v1923 = vld [vmem:[%s2 + $0x164] sm:$0xf]
      %v1924 = vld [vmem:[%s2 + $0x168] sm:$0xf]
      %v1925 = vld [vmem:[%s2 + $0x16c] sm:$0xf]
      %v1926 = vld [vmem:[%s4 + $0x32] ss:$0 sm:$0xff]
      %v1959 = vunpack.c.l.b16 %v1894
      %v1960 = vunpack.c.l.b16 %v1895
      %v1961 = vunpack.c.l.b16 %v1896
      %v1962 = vunpack.c.l.b16 %v1897
      %v1963 = vunpack.c.l.b16 %v1898
      %v1964 = vunpack.c.l.b16 %v1899
      %v1965 = vunpack.c.l.b16 %v1900
      %v1966 = vunpack.c.l.b16 %v1901
      %v1967 = vunpack.c.l.b16 %v1902
      %v1968 = vunpack.c.l.b16 %v1903
      %v1969 = vunpack.c.l.b16 %v1904
      %v1970 = vunpack.c.l.b16 %v1905
      %v1971 = vunpack.c.l.b16 %v1906
      %v1972 = vunpack.c.l.b16 %v1907
      %v1973 = vunpack.c.l.b16 %v1908
      %v1974 = vunpack.c.l.b16 %v1909
      %v1975 = vunpack.c.l.b16 %v1910
      %v1976 = vunpack.c.l.b16 %v1911
      %v1977 = vunpack.c.l.b16 %v1912
      %v1978 = vunpack.c.l.b16 %v1913
      %v1979 = vunpack.c.l.b16 %v1914
      %v1980 = vunpack.c.l.b16 %v1915
      %v1981 = vunpack.c.l.b16 %v1916
      %v1982 = vunpack.c.l.b16 %v1917
      %v1983 = vunpack.c.l.b16 %v1918
      %v1984 = vunpack.c.l.b16 %v1919
      %v1985 = vunpack.c.l.b16 %v1920
      %v1986 = vunpack.c.l.b16 %v1921
      %v1987 = vunpack.c.l.b16 %v1922
      %v1988 = vunpack.c.l.b16 %v1923
      %v1989 = vunpack.c.l.b16 %v1924
      %v1990 = vunpack.c.l.b16 %v1925
      %v1991 = vpack.c.b16 %v1960, %v1959
      %v1992 = vpack.c.b16 %v1962, %v1961
      %v1993 = vpack.c.b16 %v1964, %v1963
      %v1994 = vpack.c.b16 %v1966, %v1965
      %v1995 = vpack.c.b16 %v1968, %v1967
      %v1996 = vpack.c.b16 %v1970, %v1969
      %v1997 = vpack.c.b16 %v1972, %v1971
      %v1998 = vpack.c.b16 %v1974, %v1973
      %v1999 = vpack.c.b16 %v1976, %v1975
      %v2000 = vpack.c.b16 %v1978, %v1977
      %v2001 = vpack.c.b16 %v1980, %v1979
      %v2002 = vpack.c.b16 %v1982, %v1981
      %v2003 = vpack.c.b16 %v1984, %v1983
      %v2004 = vpack.c.b16 %v1986, %v1985
      %v2005 = vpack.c.b16 %v1988, %v1987
      %v2006 = vpack.c.b16 %v1990, %v1989
      %2023 = vmatprep.subr.bf16.mxu0 0
      %2024 = vmatpush1.bf16.msra.mxu0 %v1991
      %2025 = vmatprep.subr.bf16.mxu0 0
      %2026 = vmatpush1.bf16.msra.mxu0 %v1992
      %2027 = vmatprep.subr.bf16.mxu0 0
      %2028 = vmatpush1.bf16.msra.mxu0 %v1993
      %2029 = vmatprep.subr.bf16.mxu0 0
      %2030 = vmatpush1.bf16.msra.mxu0 %v1994
      %2031 = vmatprep.subr.bf16.mxu0 0
      %2032 = vmatpush1.bf16.msra.mxu0 %v1995
      %2033 = vmatprep.subr.bf16.mxu0 0
      %2034 = vmatpush1.bf16.msra.mxu0 %v1996
      %2035 = vmatprep.subr.bf16.mxu0 0
      %2036 = vmatpush1.bf16.msra.mxu0 %v1997
      %2037 = vmatprep.subr.bf16.mxu0 0
      %2038 = vmatpush1.bf16.msra.mxu0 %v1998
      %2039 = vmatprep.subr.bf16.mxu0 0
      %2040 = vmatpush1.bf16.msra.mxu0 %v1999
      %2041 = vmatprep.subr.bf16.mxu0 0
      %2042 = vmatpush1.bf16.msra.mxu0 %v2000
      %2043 = vmatprep.subr.bf16.mxu0 0
      %2044 = vmatpush1.bf16.msra.mxu0 %v2001
      %2045 = vmatprep.subr.bf16.mxu0 0
      %2046 = vmatpush1.bf16.msra.mxu0 %v2002
      %2047 = vmatprep.subr.bf16.mxu0 0
      %2048 = vmatpush1.bf16.msra.mxu0 %v2003
      %2049 = vmatprep.subr.bf16.mxu0 0
      %2050 = vmatpush1.bf16.msra.mxu0 %v2004
      %2051 = vmatprep.subr.bf16.mxu0 0
      %2052 = vmatpush1.bf16.msra.mxu0 %v2005
      %2053 = vmatprep.subr.bf16.mxu0 0
      %2054 = vmatpush1.bf16.msra.mxu0 %v2006
      %2055 = vmatprep.mubr.bf16.mxu0 %v1893
      %2056 = vmatmul.mubr.bf16.gmra.mrb[0].mxu0 %v1892
      %v2057 = vpop.f32.mrb[0].mxu0
      %v2058 = vadd.f32 %v1926, %v2057
      %v2059 = vpop.f32.mrb[0].mxu0
      %v2060 = vpop.f32.mrb[0].mxu0
      %v2061 = vpop.f32.mrb[0].mxu0
      %2062 = vdwg.mxu0
      %v2063 = vpack.c.bf16 %v1759, %v1759
      %v2064 = vld [vmem:[%s2 + $0x170] sm:$0xf]
      %v2065 = vld [vmem:[%s2 + $0x174] sm:$0xf]
      %v2066 = vld [vmem:[%s2 + $0x178] sm:$0xf]
      %v2067 = vld [vmem:[%s2 + $0x17c] sm:$0xf]
      %v2068 = vld [vmem:[%s4 + $0x33] ss:$0 sm:$0xff]
      %v2073 = vunpack.c.l.b16 %v2064
      %v2074 = vunpack.c.l.b16 %v2065
      %v2075 = vunpack.c.l.b16 %v2066
      %v2076 = vunpack.c.l.b16 %v2067
      %v2077 = vpack.c.b16 %v2074, %v2073
      %v2078 = vpack.c.b16 %v2076, %v2075
      %v2082 = vsel %vm240, %v2063, 0
      %2084 = vmatprep.subr.bf16.mxu0 0
      %2085 = vmatpush1.bf16.msra.mxu0 %v2077
      %2086 = vmatprep.subr.bf16.mxu0 0
      %2087 = vmatpush1.bf16.msra.mxu0 %v2078
      %2088 = vmatprep.subr.bf16.mxu0 0
      %2089 = vmatpush1.bf16.msra.mxu0 0
      %2090 = vmatprep.subr.bf16.mxu0 0
      %2091 = vmatpush1.bf16.msra.mxu0 0
      %2092 = vmatprep.subr.bf16.mxu0 0
      %2093 = vmatpush1.bf16.msra.mxu0 0
      %2094 = vmatprep.subr.bf16.mxu0 0
      %2095 = vmatpush1.bf16.msra.mxu0 0
      %2096 = vmatprep.subr.bf16.mxu0 0
      %2097 = vmatpush1.bf16.msra.mxu0 0
      %2098 = vmatprep.subr.bf16.mxu0 0
      %2099 = vmatpush1.bf16.msra.mxu0 0
      %2100 = vmatprep.subr.bf16.mxu0 0
      %2101 = vmatpush1.bf16.msra.mxu0 0
      %2102 = vmatprep.subr.bf16.mxu0 0
      %2103 = vmatpush1.bf16.msra.mxu0 0
      %2104 = vmatprep.subr.bf16.mxu0 0
      %2105 = vmatpush1.bf16.msra.mxu0 0
      %2106 = vmatprep.subr.bf16.mxu0 0
      %2107 = vmatpush1.bf16.msra.mxu0 0
      %2108 = vmatprep.subr.bf16.mxu0 0
      %2109 = vmatpush1.bf16.msra.mxu0 0
      %2110 = vmatprep.subr.bf16.mxu0 0
      %2111 = vmatpush1.bf16.msra.mxu0 0
      %2112 = vmatprep.subr.bf16.mxu0 0
      %2113 = vmatpush1.bf16.msra.mxu0 0
      %2114 = vmatprep.subr.bf16.mxu0 0
      %2115 = vmatpush1.bf16.msra.mxu0 0
      %2116 = vmatprep.mubr.bf16.mxu0 0
      %2117 = vmatmul.mubr.bf16.gmra.mrb[0].mxu0 %v2082
      %v2118 = vpop.f32.mrb[0].mxu0
      %v2119 = vadd.f32 %v2068, %v2118
      %v2120 = vpop.f32.mrb[0].mxu0
      %v2121 = vpop.f32.mrb[0].mxu0
      %v2122 = vpop.f32.mrb[0].mxu0
      %2123 = vdwg.mxu0
      %v2124 = vpack.c.bf16 %v2119, %v2119
      %v2125 = vld [vmem:[%s3 + $0x10] sm:$0xff]
      %v2126 = vld [vmem:[%s3 + $0x18] sm:$0xff]
      %s2127 = scalar_lea.vmem %s4, 52
      %v2128 = vld [vmem:[%s2127] ss:$8 sm:$0x3]
      %v2130 = vlaneseq
      %v2131 = vshrl.u32 %v2130, 7
      %v2132 = vsub.s32 0, %v2131
      %v2133 = vrot.slane %v2128, %v2132
      %v2134 = vlaneseq
      %v2135 = vshrl.u32 %v2134, 7
      %v2136 = vsub.s32 1, %v2135
      %v2137 = vrot.slane %v2128, %v2136
      %v2142 = vunpack.c.l.b16 %v2125
      %v2143 = vunpack.c.h.b16 %v2125
      %v2144 = vunpack.c.l.b16 %v2126
      %v2145 = vunpack.c.h.b16 %v2126
      %v2146 = vpack.c.b16 %v2144, %v2142
      %v2147 = vpack.c.b16 %v2145, %v2143
      %v2151 = vsel %vm1847, %v2124, 0
      %2153 = vmatprep.subr.bf16.mxu0 %v2147
      %2154 = vmatpush1.bf16.msra.mxu0 %v2146
      %2155 = vmatprep.subr.bf16.mxu0 0
      %2156 = vmatpush1.bf16.msra.mxu0 0
      %2157 = vmatprep.subr.bf16.mxu0 0
      %2158 = vmatpush1.bf16.msra.mxu0 0
      %2159 = vmatprep.subr.bf16.mxu0 0
      %2160 = vmatpush1.bf16.msra.mxu0 0
      %2161 = vmatprep.subr.bf16.mxu0 0
      %2162 = vmatpush1.bf16.msra.mxu0 0
      %2163 = vmatprep.subr.bf16.mxu0 0
      %2164 = vmatpush1.bf16.msra.mxu0 0
      %2165 = vmatprep.subr.bf16.mxu0 0
      %2166 = vmatpush1.bf16.msra.mxu0 0
      %2167 = vmatprep.subr.bf16.mxu0 0
      %2168 = vmatpush1.bf16.msra.mxu0 0
      %2169 = vmatprep.subr.bf16.mxu0 0
      %2170 = vmatpush1.bf16.msra.mxu0 0
      %2171 = vmatprep.subr.bf16.mxu0 0
      %2172 = vmatpush1.bf16.msra.mxu0 0
      %2173 = vmatprep.subr.bf16.mxu0 0
      %2174 = vmatpush1.bf16.msra.mxu0 0
      %2175 = vmatprep.subr.bf16.mxu0 0
      %2176 = vmatpush1.bf16.msra.mxu0 0
      %2177 = vmatprep.subr.bf16.mxu0 0
      %2178 = vmatpush1.bf16.msra.mxu0 0
      %2179 = vmatprep.subr.bf16.mxu0 0
      %2180 = vmatpush1.bf16.msra.mxu0 0
      %2181 = vmatprep.subr.bf16.mxu0 0
      %2182 = vmatpush1.bf16.msra.mxu0 0
      %2183 = vmatprep.subr.bf16.mxu0 0
      %2184 = vmatpush1.bf16.msra.mxu0 0
      %2185 = vmatprep.mubr.bf16.mxu0 0
      %2186 = vmatmul.mubr.bf16.gmra.mrb[0].mxu0 %v2151
      %v2187 = vpop.f32.mrb[0].mxu0
      %v2188 = vadd.f32 %v2133, %v2187
      %v2189 = vpop.f32.mrb[0].mxu0
      %v2190 = vadd.f32 %v2137, %v2189
      %v2191 = vpop.f32.mrb[0].mxu0
      %v2192 = vpop.f32.mrb[0].mxu0
      %2193 = vdwg.mxu0
      %v2194 = vpack.c.bf16 %v2188, %v2188
      %v2195 = vpack.c.bf16 %v2190, %v2190
      %v2196 = vld [vmem:[%s2 + $0x180] sm:$0xf]
      %v2197 = vld [vmem:[%s2 + $0x184] sm:$0xf]
      %v2198 = vld [vmem:[%s2 + $0x188] sm:$0xf]
      %v2199 = vld [vmem:[%s2 + $0x18c] sm:$0xf]
      %v2200 = vld [vmem:[%s2 + $0x190] sm:$0xf]
      %v2201 = vld [vmem:[%s2 + $0x194] sm:$0xf]
      %v2202 = vld [vmem:[%s2 + $0x198] sm:$0xf]
      %v2203 = vld [vmem:[%s2 + $0x19c] sm:$0xf]
      %v2204 = vld [vmem:[%s2 + $0x1a0] sm:$0xf]
      %v2205 = vld [vmem:[%s2 + $0x1a4] sm:$0xf]
      %v2206 = vld [vmem:[%s2 + $0x1a8] sm:$0xf]
      %v2207 = vld [vmem:[%s2 + $0x1ac] sm:$0xf]
      %v2208 = vld [vmem:[%s2 + $0x1b0] sm:$0xf]
      %v2209 = vld [vmem:[%s2 + $0x1b4] sm:$0xf]
      %v2210 = vld [vmem:[%s2 + $0x1b8] sm:$0xf]
      %v2211 = vld [vmem:[%s2 + $0x1bc] sm:$0xf]
      %v2212 = vld [vmem:[%s2 + $0x1c0] sm:$0xf]
      %v2213 = vld [vmem:[%s2 + $0x1c4] sm:$0xf]
      %v2214 = vld [vmem:[%s2 + $0x1c8] sm:$0xf]
      %v2215 = vld [vmem:[%s2 + $0x1cc] sm:$0xf]
      %v2216 = vld [vmem:[%s2 + $0x1d0] sm:$0xf]
      %v2217 = vld [vmem:[%s2 + $0x1d4] sm:$0xf]
      %v2218 = vld [vmem:[%s2 + $0x1d8] sm:$0xf]
      %v2219 = vld [vmem:[%s2 + $0x1dc] sm:$0xf]
      %v2220 = vld [vmem:[%s2 + $0x1e0] sm:$0xf]
      %v2221 = vld [vmem:[%s2 + $0x1e4] sm:$0xf]
      %v2222 = vld [vmem:[%s2 + $0x1e8] sm:$0xf]
      %v2223 = vld [vmem:[%s2 + $0x1ec] sm:$0xf]
      %v2224 = vld [vmem:[%s2 + $0x1f0] sm:$0xf]
      %v2225 = vld [vmem:[%s2 + $0x1f4] sm:$0xf]
      %v2226 = vld [vmem:[%s2 + $0x1f8] sm:$0xf]
      %v2227 = vld [vmem:[%s2 + $0x1fc] sm:$0xf]
      %v2228 = vld [vmem:[%s4 + $0x35] ss:$0 sm:$0xff]
      %v2261 = vunpack.c.l.b16 %v2196
      %v2262 = vunpack.c.l.b16 %v2197
      %v2263 = vunpack.c.l.b16 %v2198
      %v2264 = vunpack.c.l.b16 %v2199
      %v2265 = vunpack.c.l.b16 %v2200
      %v2266 = vunpack.c.l.b16 %v2201
      %v2267 = vunpack.c.l.b16 %v2202
      %v2268 = vunpack.c.l.b16 %v2203
      %v2269 = vunpack.c.l.b16 %v2204
      %v2270 = vunpack.c.l.b16 %v2205
      %v2271 = vunpack.c.l.b16 %v2206
      %v2272 = vunpack.c.l.b16 %v2207
      %v2273 = vunpack.c.l.b16 %v2208
      %v2274 = vunpack.c.l.b16 %v2209
      %v2275 = vunpack.c.l.b16 %v2210
      %v2276 = vunpack.c.l.b16 %v2211
      %v2277 = vunpack.c.l.b16 %v2212
      %v2278 = vunpack.c.l.b16 %v2213
      %v2279 = vunpack.c.l.b16 %v2214
      %v2280 = vunpack.c.l.b16 %v2215
      %v2281 = vunpack.c.l.b16 %v2216
      %v2282 = vunpack.c.l.b16 %v2217
      %v2283 = vunpack.c.l.b16 %v2218
      %v2284 = vunpack.c.l.b16 %v2219
      %v2285 = vunpack.c.l.b16 %v2220
      %v2286 = vunpack.c.l.b16 %v2221
      %v2287 = vunpack.c.l.b16 %v2222
      %v2288 = vunpack.c.l.b16 %v2223
      %v2289 = vunpack.c.l.b16 %v2224
      %v2290 = vunpack.c.l.b16 %v2225
      %v2291 = vunpack.c.l.b16 %v2226
      %v2292 = vunpack.c.l.b16 %v2227
      %v2293 = vpack.c.b16 %v2262, %v2261
      %v2294 = vpack.c.b16 %v2264, %v2263
      %v2295 = vpack.c.b16 %v2266, %v2265
      %v2296 = vpack.c.b16 %v2268, %v2267
      %v2297 = vpack.c.b16 %v2270, %v2269
      %v2298 = vpack.c.b16 %v2272, %v2271
      %v2299 = vpack.c.b16 %v2274, %v2273
      %v2300 = vpack.c.b16 %v2276, %v2275
      %v2301 = vpack.c.b16 %v2278, %v2277
      %v2302 = vpack.c.b16 %v2280, %v2279
      %v2303 = vpack.c.b16 %v2282, %v2281
      %v2304 = vpack.c.b16 %v2284, %v2283
      %v2305 = vpack.c.b16 %v2286, %v2285
      %v2306 = vpack.c.b16 %v2288, %v2287
      %v2307 = vpack.c.b16 %v2290, %v2289
      %v2308 = vpack.c.b16 %v2292, %v2291
      %2325 = vmatprep.subr.bf16.mxu0 0
      %2326 = vmatpush1.bf16.msra.mxu0 %v2293
      %2327 = vmatprep.subr.bf16.mxu0 0
      %2328 = vmatpush1.bf16.msra.mxu0 %v2294
      %2329 = vmatprep.subr.bf16.mxu0 0
      %2330 = vmatpush1.bf16.msra.mxu0 %v2295
      %2331 = vmatprep.subr.bf16.mxu0 0
      %2332 = vmatpush1.bf16.msra.mxu0 %v2296
      %2333 = vmatprep.subr.bf16.mxu0 0
      %2334 = vmatpush1.bf16.msra.mxu0 %v2297
      %2335 = vmatprep.subr.bf16.mxu0 0
      %2336 = vmatpush1.bf16.msra.mxu0 %v2298
      %2337 = vmatprep.subr.bf16.mxu0 0
      %2338 = vmatpush1.bf16.msra.mxu0 %v2299
      %2339 = vmatprep.subr.bf16.mxu0 0
      %2340 = vmatpush1.bf16.msra.mxu0 %v2300
      %2341 = vmatprep.subr.bf16.mxu0 0
      %2342 = vmatpush1.bf16.msra.mxu0 %v2301
      %2343 = vmatprep.subr.bf16.mxu0 0
      %2344 = vmatpush1.bf16.msra.mxu0 %v2302
      %2345 = vmatprep.subr.bf16.mxu0 0
      %2346 = vmatpush1.bf16.msra.mxu0 %v2303
      %2347 = vmatprep.subr.bf16.mxu0 0
      %2348 = vmatpush1.bf16.msra.mxu0 %v2304
      %2349 = vmatprep.subr.bf16.mxu0 0
      %2350 = vmatpush1.bf16.msra.mxu0 %v2305
      %2351 = vmatprep.subr.bf16.mxu0 0
      %2352 = vmatpush1.bf16.msra.mxu0 %v2306
      %2353 = vmatprep.subr.bf16.mxu0 0
      %2354 = vmatpush1.bf16.msra.mxu0 %v2307
      %2355 = vmatprep.subr.bf16.mxu0 0
      %2356 = vmatpush1.bf16.msra.mxu0 %v2308
      %2357 = vmatprep.mubr.bf16.mxu0 %v2195
      %2358 = vmatmul.mubr.bf16.gmra.mrb[0].mxu0 %v2194
      %v2359 = vpop.f32.mrb[0].mxu0
      %v2360 = vadd.f32 %v2228, %v2359
      %v2361 = vpop.f32.mrb[0].mxu0
      %v2362 = vpop.f32.mrb[0].mxu0
      %v2363 = vpop.f32.mrb[0].mxu0
      %2364 = vdwg.mxu0
      %v2365 = vrot.slane %v2058, 4
      %v2366 = vadd.f32 %v2058, %v2365
      %v2367 = vrot.slane %v2366, 2
      %v2368 = vadd.f32 %v2366, %v2367
      %v2369 = vrot.slane %v2368, 1
      %v2370 = vadd.f32 %v2368, %v2369
      %v2371 = vrcp.pop 8.0
      %v2372 = vmul.f32 %v2370, %v2371
      %v2373 = vrot.slane %v2360, 4
      %v2374 = vadd.f32 %v2360, %v2373
      %v2375 = vrot.slane %v2374, 2
      %v2376 = vadd.f32 %v2374, %v2375
      %v2377 = vrot.slane %v2376, 1
      %v2378 = vadd.f32 %v2376, %v2377
      %v2379 = vmul.f32 %v2378, %v2371
      %v2380 = vadd.f32 %v2372, %v2379
      %v2381 = vpack.c.bf16 %v2380, %v2380
      %v2382 = vld [vmem:[%s2 + $0x200] sm:$0xf]
      %v2383 = vld [vmem:[%s2 + $0x204] sm:$0xf]
      %v2384 = vld [vmem:[%s2 + $0x208] sm:$0xf]
      %v2385 = vld [vmem:[%s2 + $0x20c] sm:$0xf]
      %v2386 = vld [vmem:[%s2 + $0x210] sm:$0xf]
      %v2387 = vld [vmem:[%s2 + $0x214] sm:$0xf]
      %v2388 = vld [vmem:[%s2 + $0x218] sm:$0xf]
      %v2389 = vld [vmem:[%s2 + $0x21c] sm:$0xf]
      %v2390 = vld [vmem:[%s2 + $0x220] sm:$0xf]
      %v2391 = vld [vmem:[%s2 + $0x224] sm:$0xf]
      %v2392 = vld [vmem:[%s2 + $0x228] sm:$0xf]
      %v2393 = vld [vmem:[%s2 + $0x22c] sm:$0xf]
      %v2394 = vld [vmem:[%s2 + $0x230] sm:$0xf]
      %v2395 = vld [vmem:[%s2 + $0x234] sm:$0xf]
      %v2396 = vld [vmem:[%s2 + $0x238] sm:$0xf]
      %v2397 = vld [vmem:[%s2 + $0x23c] sm:$0xf]
      %v2398 = vld [vmem:[%s4 + $0x36] ss:$0 sm:$0xff]
      %v2415 = vunpack.c.l.b16 %v2382
      %v2416 = vunpack.c.l.b16 %v2383
      %v2417 = vunpack.c.l.b16 %v2384
      %v2418 = vunpack.c.l.b16 %v2385
      %v2419 = vunpack.c.l.b16 %v2386
      %v2420 = vunpack.c.l.b16 %v2387
      %v2421 = vunpack.c.l.b16 %v2388
      %v2422 = vunpack.c.l.b16 %v2389
      %v2423 = vunpack.c.l.b16 %v2390
      %v2424 = vunpack.c.l.b16 %v2391
      %v2425 = vunpack.c.l.b16 %v2392
      %v2426 = vunpack.c.l.b16 %v2393
      %v2427 = vunpack.c.l.b16 %v2394
      %v2428 = vunpack.c.l.b16 %v2395
      %v2429 = vunpack.c.l.b16 %v2396
      %v2430 = vunpack.c.l.b16 %v2397
      %v2431 = vpack.c.b16 %v2416, %v2415
      %v2432 = vpack.c.b16 %v2418, %v2417
      %v2433 = vpack.c.b16 %v2420, %v2419
      %v2434 = vpack.c.b16 %v2422, %v2421
      %v2435 = vpack.c.b16 %v2424, %v2423
      %v2436 = vpack.c.b16 %v2426, %v2425
      %v2437 = vpack.c.b16 %v2428, %v2427
      %v2438 = vpack.c.b16 %v2430, %v2429
      %2447 = vmatprep.subr.bf16.mxu0 0
      %2448 = vmatpush1.bf16.msra.mxu0 %v2431
      %2449 = vmatprep.subr.bf16.mxu0 0
      %2450 = vmatpush1.bf16.msra.mxu0 %v2432
      %2451 = vmatprep.subr.bf16.mxu0 0
      %2452 = vmatpush1.bf16.msra.mxu0 %v2433
      %2453 = vmatprep.subr.bf16.mxu0 0
      %2454 = vmatpush1.bf16.msra.mxu0 %v2434
      %2455 = vmatprep.subr.bf16.mxu0 0
      %2456 = vmatpush1.bf16.msra.mxu0 %v2435
      %2457 = vmatprep.subr.bf16.mxu0 0
      %2458 = vmatpush1.bf16.msra.mxu0 %v2436
      %2459 = vmatprep.subr.bf16.mxu0 0
      %2460 = vmatpush1.bf16.msra.mxu0 %v2437
      %2461 = vmatprep.subr.bf16.mxu0 0
      %2462 = vmatpush1.bf16.msra.mxu0 %v2438
      %2463 = vmatprep.subr.bf16.mxu0 0
      %2464 = vmatpush1.bf16.msra.mxu0 0
      %2465 = vmatprep.subr.bf16.mxu0 0
      %2466 = vmatpush1.bf16.msra.mxu0 0
      %2467 = vmatprep.subr.bf16.mxu0 0
      %2468 = vmatpush1.bf16.msra.mxu0 0
      %2469 = vmatprep.subr.bf16.mxu0 0
      %2470 = vmatpush1.bf16.msra.mxu0 0
      %2471 = vmatprep.subr.bf16.mxu0 0
      %2472 = vmatpush1.bf16.msra.mxu0 0
      %2473 = vmatprep.subr.bf16.mxu0 0
      %2474 = vmatpush1.bf16.msra.mxu0 0
      %2475 = vmatprep.subr.bf16.mxu0 0
      %2476 = vmatpush1.bf16.msra.mxu0 0
      %2477 = vmatprep.subr.bf16.mxu0 0
      %2478 = vmatpush1.bf16.msra.mxu0 0
      %2479 = vmatprep.mubr.bf16.mxu0 0
      %2480 = vmatmul.mubr.bf16.gmra.mrb[0].mxu0 %v2381
      %v2481 = vpop.f32.mrb[0].mxu0
      %v2482 = vadd.f32 %v2398, %v2481
      %v2483 = vpop.f32.mrb[0].mxu0
      %v2484 = vpop.f32.mrb[0].mxu0
      %v2485 = vpop.f32.mrb[0].mxu0
      %2486 = vdwg.mxu0
      %v2487 = vpack.c.bf16 %v2482, %v2482
      %v2488 = vld [vmem:[%s3 + $0x20] sm:$0xff]
      %v2489 = vld [vmem:[%s3 + $0x28] sm:$0xff]
      %v2490 = vld [vmem:[%s3 + $0x30] sm:$0xff]
      %v2491 = vld [vmem:[%s3 + $0x38] sm:$0xff]
      %v2492 = vld [vmem:[%s3 + $0x40] sm:$0xff]
      %v2493 = vld [vmem:[%s3 + $0x48] sm:$0xff]
      %v2494 = vld [vmem:[%s3 + $0x50] sm:$0xff]
      %v2495 = vld [vmem:[%s3 + $0x58] sm:$0xff]
      %s2496 = scalar_lea.vmem %s4, 55
      %v2497 = vld [vmem:[%s2496] ss:$8 sm:$0x3]
      %v2506 = vunpack.c.l.b16 %v2488
      %v2507 = vunpack.c.h.b16 %v2488
      %v2508 = vunpack.c.l.b16 %v2489
      %v2509 = vunpack.c.h.b16 %v2489
      %v2510 = vunpack.c.l.b16 %v2490
      %v2511 = vunpack.c.h.b16 %v2490
      %v2512 = vunpack.c.l.b16 %v2491
      %v2513 = vunpack.c.h.b16 %v2491
      %v2514 = vunpack.c.l.b16 %v2492
      %v2515 = vunpack.c.h.b16 %v2492
      %v2516 = vunpack.c.l.b16 %v2493
      %v2517 = vunpack.c.h.b16 %v2493
      %v2518 = vunpack.c.l.b16 %v2494
      %v2519 = vunpack.c.h.b16 %v2494
      %v2520 = vunpack.c.l.b16 %v2495
      %v2521 = vunpack.c.h.b16 %v2495
      %v2522 = vpack.c.b16 %v2508, %v2506
      %v2523 = vpack.c.b16 %v2509, %v2507
      %v2524 = vpack.c.b16 %v2512, %v2510
      %v2525 = vpack.c.b16 %v2513, %v2511
      %v2526 = vpack.c.b16 %v2516, %v2514
      %v2527 = vpack.c.b16 %v2517, %v2515
      %v2528 = vpack.c.b16 %v2520, %v2518
      %v2529 = vpack.c.b16 %v2521, %v2519
      %v2539 = vlaneseq
      %v2540 = vshrl.u32 %v2539, 7
      %v2541 = vsub.s32 0, %v2540
      %v2542 = vrot.slane %v2497, %v2541
      %v2543 = vlaneseq
      %v2544 = vshrl.u32 %v2543, 7
      %v2545 = vsub.s32 1, %v2544
      %v2546 = vrot.slane %v2497, %v2545
      %v2550 = vsel %vm623, %v2487, 0
      %2552 = vmatprep.subr.bf16.mxu0 %v2523
      %2553 = vmatpush1.bf16.msra.mxu0 %v2522
      %2554 = vmatprep.subr.bf16.mxu0 %v2525
      %2555 = vmatpush1.bf16.msra.mxu0 %v2524
      %2556 = vmatprep.subr.bf16.mxu0 %v2527
      %2557 = vmatpush1.bf16.msra.mxu0 %v2526
      %2558 = vmatprep.subr.bf16.mxu0 %v2529
      %2559 = vmatpush1.bf16.msra.mxu0 %v2528
      %2560 = vmatprep.subr.bf16.mxu0 0
      %2561 = vmatpush1.bf16.msra.mxu0 0
      %2562 = vmatprep.subr.bf16.mxu0 0
      %2563 = vmatpush1.bf16.msra.mxu0 0
      %2564 = vmatprep.subr.bf16.mxu0 0
      %2565 = vmatpush1.bf16.msra.mxu0 0
      %2566 = vmatprep.subr.bf16.mxu0 0
      %2567 = vmatpush1.bf16.msra.mxu0 0
      %2568 = vmatprep.subr.bf16.mxu0 0
      %2569 = vmatpush1.bf16.msra.mxu0 0
      %2570 = vmatprep.subr.bf16.mxu0 0
      %2571 = vmatpush1.bf16.msra.mxu0 0
      %2572 = vmatprep.subr.bf16.mxu0 0
      %2573 = vmatpush1.bf16.msra.mxu0 0
      %2574 = vmatprep.subr.bf16.mxu0 0
      %2575 = vmatpush1.bf16.msra.mxu0 0
      %2576 = vmatprep.subr.bf16.mxu0 0
      %2577 = vmatpush1.bf16.msra.mxu0 0
      %2578 = vmatprep.subr.bf16.mxu0 0
      %2579 = vmatpush1.bf16.msra.mxu0 0
      %2580 = vmatprep.subr.bf16.mxu0 0
      %2581 = vmatpush1.bf16.msra.mxu0 0
      %2582 = vmatprep.subr.bf16.mxu0 0
      %2583 = vmatpush1.bf16.msra.mxu0 0
      %2584 = vmatprep.mubr.bf16.mxu0 0
      %2585 = vmatmul.mubr.bf16.gmra.mrb[0].mxu0 %v2550
      %v2586 = vpop.f32.mrb[0].mxu0
      %v2587 = vadd.f32 %v2542, %v2586
      %v2588 = vpop.f32.mrb[0].mxu0
      %v2589 = vadd.f32 %v2546, %v2588
      %v2590 = vpop.f32.mrb[0].mxu0
      %v2591 = vpop.f32.mrb[0].mxu0
      %2592 = vdwg.mxu0
      %v2593 = vpack.c.bf16 %v2587, %v2587
      %v2594 = vpack.c.bf16 %v2589, %v2589
      %v2595 = vld [vmem:[%s2 + $0x240] sm:$0xf]
      %v2596 = vld [vmem:[%s2 + $0x244] sm:$0xf]
      %v2597 = vld [vmem:[%s2 + $0x248] sm:$0xf]
      %v2598 = vld [vmem:[%s2 + $0x24c] sm:$0xf]
      %v2599 = vld [vmem:[%s2 + $0x250] sm:$0xf]
      %v2600 = vld [vmem:[%s2 + $0x254] sm:$0xf]
      %v2601 = vld [vmem:[%s2 + $0x258] sm:$0xf]
      %v2602 = vld [vmem:[%s2 + $0x25c] sm:$0xf]
      %v2603 = vld [vmem:[%s2 + $0x260] sm:$0xf]
      %v2604 = vld [vmem:[%s2 + $0x264] sm:$0xf]
      %v2605 = vld [vmem:[%s2 + $0x268] sm:$0xf]
      %v2606 = vld [vmem:[%s2 + $0x26c] sm:$0xf]
      %v2607 = vld [vmem:[%s2 + $0x270] sm:$0xf]
      %v2608 = vld [vmem:[%s2 + $0x274] sm:$0xf]
      %v2609 = vld [vmem:[%s2 + $0x278] sm:$0xf]
      %v2610 = vld [vmem:[%s2 + $0x27c] sm:$0xf]
      %v2611 = vld [vmem:[%s2 + $0x280] sm:$0xf]
      %v2612 = vld [vmem:[%s2 + $0x284] sm:$0xf]
      %v2613 = vld [vmem:[%s2 + $0x288] sm:$0xf]
      %v2614 = vld [vmem:[%s2 + $0x28c] sm:$0xf]
      %v2615 = vld [vmem:[%s2 + $0x290] sm:$0xf]
      %v2616 = vld [vmem:[%s2 + $0x294] sm:$0xf]
      %v2617 = vld [vmem:[%s2 + $0x298] sm:$0xf]
      %v2618 = vld [vmem:[%s2 + $0x29c] sm:$0xf]
      %v2619 = vld [vmem:[%s2 + $0x2a0] sm:$0xf]
      %v2620 = vld [vmem:[%s2 + $0x2a4] sm:$0xf]
      %v2621 = vld [vmem:[%s2 + $0x2a8] sm:$0xf]
      %v2622 = vld [vmem:[%s2 + $0x2ac] sm:$0xf]
      %v2623 = vld [vmem:[%s2 + $0x2b0] sm:$0xf]
      %v2624 = vld [vmem:[%s2 + $0x2b4] sm:$0xf]
      %v2625 = vld [vmem:[%s2 + $0x2b8] sm:$0xf]
      %v2626 = vld [vmem:[%s2 + $0x2bc] sm:$0xf]
      %v2627 = vld [vmem:[%s4 + $0x40] ss:$0 sm:$0xff]
      %v2660 = vunpack.c.l.b16 %v2595
      %v2661 = vunpack.c.l.b16 %v2596
      %v2662 = vunpack.c.l.b16 %v2597
      %v2663 = vunpack.c.l.b16 %v2598
      %v2664 = vunpack.c.l.b16 %v2599
      %v2665 = vunpack.c.l.b16 %v2600
      %v2666 = vunpack.c.l.b16 %v2601
      %v2667 = vunpack.c.l.b16 %v2602
      %v2668 = vunpack.c.l.b16 %v2603
      %v2669 = vunpack.c.l.b16 %v2604
      %v2670 = vunpack.c.l.b16 %v2605
      %v2671 = vunpack.c.l.b16 %v2606
      %v2672 = vunpack.c.l.b16 %v2607
      %v2673 = vunpack.c.l.b16 %v2608
      %v2674 = vunpack.c.l.b16 %v2609
      %v2675 = vunpack.c.l.b16 %v2610
      %v2676 = vunpack.c.l.b16 %v2611
      %v2677 = vunpack.c.l.b16 %v2612
      %v2678 = vunpack.c.l.b16 %v2613
      %v2679 = vunpack.c.l.b16 %v2614
      %v2680 = vunpack.c.l.b16 %v2615
      %v2681 = vunpack.c.l.b16 %v2616
      %v2682 = vunpack.c.l.b16 %v2617
      %v2683 = vunpack.c.l.b16 %v2618
      %v2684 = vunpack.c.l.b16 %v2619
      %v2685 = vunpack.c.l.b16 %v2620
      %v2686 = vunpack.c.l.b16 %v2621
      %v2687 = vunpack.c.l.b16 %v2622
      %v2688 = vunpack.c.l.b16 %v2623
      %v2689 = vunpack.c.l.b16 %v2624
      %v2690 = vunpack.c.l.b16 %v2625
      %v2691 = vunpack.c.l.b16 %v2626
      %v2692 = vpack.c.b16 %v2661, %v2660
      %v2693 = vpack.c.b16 %v2663, %v2662
      %v2694 = vpack.c.b16 %v2665, %v2664
      %v2695 = vpack.c.b16 %v2667, %v2666
      %v2696 = vpack.c.b16 %v2669, %v2668
      %v2697 = vpack.c.b16 %v2671, %v2670
      %v2698 = vpack.c.b16 %v2673, %v2672
      %v2699 = vpack.c.b16 %v2675, %v2674
      %v2700 = vpack.c.b16 %v2677, %v2676
      %v2701 = vpack.c.b16 %v2679, %v2678
      %v2702 = vpack.c.b16 %v2681, %v2680
      %v2703 = vpack.c.b16 %v2683, %v2682
      %v2704 = vpack.c.b16 %v2685, %v2684
      %v2705 = vpack.c.b16 %v2687, %v2686
      %v2706 = vpack.c.b16 %v2689, %v2688
      %v2707 = vpack.c.b16 %v2691, %v2690
      %2724 = vmatprep.subr.bf16.mxu0 0
      %2725 = vmatpush1.bf16.msra.mxu0 %v2692
      %2726 = vmatprep.subr.bf16.mxu0 0
      %2727 = vmatpush1.bf16.msra.mxu0 %v2693
      %2728 = vmatprep.subr.bf16.mxu0 0
      %2729 = vmatpush1.bf16.msra.mxu0 %v2694
      %2730 = vmatprep.subr.bf16.mxu0 0
      %2731 = vmatpush1.bf16.msra.mxu0 %v2695
      %2732 = vmatprep.subr.bf16.mxu0 0
      %2733 = vmatpush1.bf16.msra.mxu0 %v2696
      %2734 = vmatprep.subr.bf16.mxu0 0
      %2735 = vmatpush1.bf16.msra.mxu0 %v2697
      %2736 = vmatprep.subr.bf16.mxu0 0
      %2737 = vmatpush1.bf16.msra.mxu0 %v2698
      %2738 = vmatprep.subr.bf16.mxu0 0
      %2739 = vmatpush1.bf16.msra.mxu0 %v2699
      %2740 = vmatprep.subr.bf16.mxu0 0
      %2741 = vmatpush1.bf16.msra.mxu0 %v2700
      %2742 = vmatprep.subr.bf16.mxu0 0
      %2743 = vmatpush1.bf16.msra.mxu0 %v2701
      %2744 = vmatprep.subr.bf16.mxu0 0
      %2745 = vmatpush1.bf16.msra.mxu0 %v2702
      %2746 = vmatprep.subr.bf16.mxu0 0
      %2747 = vmatpush1.bf16.msra.mxu0 %v2703
      %2748 = vmatprep.subr.bf16.mxu0 0
      %2749 = vmatpush1.bf16.msra.mxu0 %v2704
      %2750 = vmatprep.subr.bf16.mxu0 0
      %2751 = vmatpush1.bf16.msra.mxu0 %v2705
      %2752 = vmatprep.subr.bf16.mxu0 0
      %2753 = vmatpush1.bf16.msra.mxu0 %v2706
      %2754 = vmatprep.subr.bf16.mxu0 0
      %2755 = vmatpush1.bf16.msra.mxu0 %v2707
      %2756 = vmatprep.mubr.bf16.mxu0 %v2594
      %2757 = vmatmul.mubr.bf16.gmra.mrb[0].mxu0 %v2593
      %v2758 = vpop.f32.mrb[0].mxu0
      %v2759 = vadd.f32 %v2627, %v2758
      %v2760 = vpop.f32.mrb[0].mxu0
      %v2761 = vpop.f32.mrb[0].mxu0
      %v2762 = vpop.f32.mrb[0].mxu0
      %2763 = vdwg.mxu0
      %v2764 = vlaneseq
      %vm2765 = vcmp.ge.s32.totalorder %v2764, 0
      %vm2766 = vcmp.lt.s32.totalorder %v2764, 128
      %vm2767 = vmand %vm2765, %vm2766
      %2768 = vst.msk [vmem:[%s236] sm:$0x1] %vm2767, %v2380
      %2769 = vst.msk [vmem:[%s236 + $0x1] sm:$0x1] %vm2767, %v2759
      %p2770 = scmp.lt.s32.totalorder %s16, 1
      %s2771 = scalar_select %p2770, %s16, 1
      %s2772 = smul.addr %s2771, 2
      %s2773 = scalar_lea.vmem %s5, %s2772
      // Predicated region
      $region41: #{_model_forward.1} parent=39 // pred_check
        %p2774 = pneg %p149
      $region42: #{_model_forward.1} parent=39 // pred_check_branch
        %2776 = sbr.rel (%p2774) target = $region44
      $region43: #{_model_forward.1} parent=39 // pred_region
        _
      $region44: #{_model_forward.1} parent=39 // pred_fallthru
        _
    $region40: #{_model_forward.1} parent=5 // pred_fallthru
      _
    %p2777 = scmp.le.s32.totalorder 2, %s11
    // Predicated region
    $region45: #{_model_forward.1} parent=5 // pred_check
      %p2778 = pneg %p2777
    $region46: #{_model_forward.1} parent=5 // pred_check_branch
      %2780 = sbr.rel (%p2778) target = $region48
    $region47: #{_model_forward.1} parent=5 // pred_region
      %s2781 = ssub.s32 %s11, 2
      // Predicated region
      $region49: #{_model_forward.1} parent=47 // pred_check
        %p2782 = pneg %p155
      $region50: #{_model_forward.1} parent=47 // pred_check_branch
        %2784 = sbr.rel (%p2782) target = $region52
      $region51: #{_model_forward.1} parent=47 // pred_region
        %p2785 = scmp.lt.s32.totalorder %s17, 1
        %s2786 = scalar_select %p2785, %s17, 1
        %s2787 = smul.addr %s2786, 2
        %s2788 = scalar_lea.vmem %s5, %s2787
      $region52: #{_model_forward.1} parent=47 // pred_fallthru
        _
    $region48: #{_model_forward.1} parent=5 // pred_fallthru
      _
  $region6: #{_model_forward.1} parent=0 // loop_footer
    %s15 = sadd.s32 1, %s11
  $region7: #{_model_forward.1} parent=0 // loop_footer_branch
    %10 = sbr.rel target = $region3
  $region8: #{_model_forward.1} parent=0 // loop_exit
    _

</llo_original>
